<compile_context>
chip_gen: v7x
topology: tpu7x:2x2x1
jax: 0.10.0
libtpu: 0.0.40
codegen_flags: <defaults>
</compile_context>

<pallas_src>
import jax
import jax.numpy as jnp
from jax.experimental import pallas as pl
from jax.experimental.pallas import tpu as pltpu


def _conv_out(size):
    # 3x3 conv, stride 2, padding 1.
    return (size - 1) // 2 + 1


def _pick_img_blk(n):
    """Largest divisor of n (<= 8 images/step); prefer an even grid length so
    the 'parallel' grid axis splits evenly across both v7x TensorCores."""
    divisors = [d for d in range(1, min(n, 8) + 1) if n % d == 0]
    even = [d for d in divisors if (n // d) % 2 == 0]
    return max(even) if even else max(divisors)


def _make_yimgnet_kernel(H, W, C1, C2, C3, C4, img_blk, cdtype):
    OH1, OW1 = _conv_out(H), _conv_out(W)
    OH2, OW2 = _conv_out(OH1), _conv_out(OW1)
    M1 = img_blk * OH1 * OW1
    M2 = img_blk * OH2 * OW2
    # Padded widths actually read by the taps (left pad = 1).
    Wp1, Wp2 = 2 * OW1 + 1, 2 * OW2 + 1
    f32 = jnp.float32

    def stage_padded(dst_ref, Hin, Win, Ho, Wp, Cc, read_row):
        # dst layout: (parity*img_blk + b, padded_row // 2, padded_col, C).
        # Padded row ph lives at (ph & 1, ph >> 1) so each tap's row window is
        # a contiguous slice; only W needs a stride-2 read.
        # Zero only the pad border the taps can actually read.
        dst_ref[pl.ds(0, img_blk), 0, :, :] = jnp.zeros((img_blk, Wp, Cc), f32)
        dst_ref[:, :, pl.ds(0, 1), :] = jnp.zeros(
            (2 * img_blk, Ho + 1, 1, Cc), f32)
        if 2 * Ho + 1 > Hin + 1:   # odd input height: bottom pad row is read
            dst_ref[pl.ds(0, img_blk), Ho, :, :] = jnp.zeros(
                (img_blk, Wp, Cc), f32)
        if Wp > Win + 1:           # odd input width: right pad col is read
            dst_ref[:, :, pl.ds(Wp - 1, 1), :] = jnp.zeros(
                (2 * img_blk, Ho + 1, 1, Cc), f32)
        # Interior: one (img_blk, Win, C) block store per input row.
        for r in range(Hin):
            ph = r + 1
            dst_ref[pl.ds((ph & 1) * img_blk, img_blk), ph >> 1,
                    pl.ds(1, Win), :] = read_row(r)

    def conv3x3_s2(src_ref, w_ref, Ho, Wo, Cin, M):
        # 9 accumulating tap matmuls; accumulator stays in f32 vregs.
        acc = None
        for ky in range(3):
            for kx in range(3):
                sl = src_ref[pl.ds((ky & 1) * img_blk, img_blk),
                             pl.ds(ky >> 1, Ho),
                             pl.ds(kx, Wo, stride=2), :]
                lhs = sl.reshape(M, Cin).astype(cdtype)
                part = jnp.dot(lhs, w_ref[ky * 3 + kx],
                               preferred_element_type=f32)
                acc = part if acc is None else acc + part
        return acc

    def kernel(x_ref, w1_ref, b1_ref, w2_ref, b2_ref, w3_ref, b3_ref,
               o_ref, xp_ref, hp_ref):
        # ---- stage padded input (VMEM) -----------------------------------
        stage_padded(xp_ref, H, W, OH1, Wp1, C1,
                     lambda r: x_ref[:, r, :, :])

        # ---- conv1 + bias + ReLU -----------------------------------------
        h1 = jnp.maximum(
            conv3x3_s2(xp_ref, w1_ref, OH1, OW1, C1, M1) + b1_ref[...], 0.0)
        h1 = h1.reshape(img_blk, OH1, OW1, C2)

        # ---- stage padded conv1 activations (still VMEM-resident) ---------
        stage_padded(hp_ref, OH1, OW1, OH2, Wp2, C2,
                     lambda r: h1[:, r, :, :])

        # ---- conv2 + bias + ReLU -----------------------------------------
        h2 = jnp.maximum(
            conv3x3_s2(hp_ref, w2_ref, OH2, OW2, C2, M2) + b2_ref[...], 0.0)

        # ---- conv3 (1x1) as a plain matmul epilogue -----------------------
        h3 = jnp.maximum(
            jnp.dot(h2.astype(cdtype), w3_ref[...],
                    preferred_element_type=f32) + b3_ref[...], 0.0)

        o_ref[...] = h3[None].astype(o_ref.dtype)

    shapes = dict(OH1=OH1, OW1=OW1, OH2=OH2, OW2=OW2,
                  xp=(2 * img_blk, OH1 + 1, Wp1, C1),
                  hp=(2 * img_blk, OH2 + 1, Wp2, C2))
    return kernel, shapes


def yimgnet_forward(params, x, l, *, use_bf16=False, img_blk=None):
    """x: (B, S, 128, H, W) NCHW, l: (B, S, np) -> (B, S, 16*OH2*OW2 + np)."""
    B, S, C, H, W = x.shape
    N = B * S
    w1, b1 = params["conv1"]
    w2, b2 = params["conv2"]
    w3, b3 = params["conv3"]
    C2, C3, C4 = w1.shape[0], w2.shape[0], w3.shape[0]

    if img_blk is None:
        img_blk = _pick_img_blk(N)
    assert N % img_blk == 0
    G = N // img_blk
    cdtype = jnp.bfloat16 if use_bf16 else jnp.float32

    # One-time layout glue (tiny here): NCHW -> NHWC so channels sit on the
    # 128-lane axis, and OIHW -> (tap, cin, cout) matmul weights.
    # TODO(synk): for large H, W fold this transpose into the producer.
    x_nhwc = jnp.transpose(x.reshape(N, C, H, W), (0, 2, 3, 1))
    w1m = jnp.transpose(w1, (2, 3, 1, 0)).reshape(9, C, C2).astype(cdtype)
    w2m = jnp.transpose(w2, (2, 3, 1, 0)).reshape(9, C2, C3).astype(cdtype)
    w3m = jnp.transpose(w3, (2, 3, 1, 0)).reshape(C3, C4).astype(cdtype)

    kernel, shp = _make_yimgnet_kernel(H, W, C, C2, C3, C4, img_blk, cdtype)
    OH2, OW2 = shp["OH2"], shp["OW2"]
    P2 = OH2 * OW2

    feat = pl.pallas_call(
        kernel,
        out_shape=jax.ShapeDtypeStruct((G, img_blk * P2, C4), jnp.float32),
        grid=(G,),
        in_specs=[
            pl.BlockSpec((img_blk, H, W, C), lambda g: (g, 0, 0, 0)),
            pl.BlockSpec((9, C, C2), lambda g: (0, 0, 0)),
            pl.BlockSpec((1, C2), lambda g: (0, 0)),
            pl.BlockSpec((9, C2, C3), lambda g: (0, 0, 0)),
            pl.BlockSpec((1, C3), lambda g: (0, 0)),
            pl.BlockSpec((C3, C4), lambda g: (0, 0)),
            pl.BlockSpec((1, C4), lambda g: (0, 0)),
        ],
        out_specs=pl.BlockSpec((1, img_blk * P2, C4), lambda g: (g, 0, 0)),
        scratch_shapes=[
            pltpu.VMEM(shp["xp"], jnp.float32),   # padded input staging
            pltpu.VMEM(shp["hp"], jnp.float32),   # padded conv1 activations
        ],
        compiler_params=pltpu.CompilerParams(
            dimension_semantics=("parallel",)),
    )(x_nhwc, w1m, b1.reshape(1, C2), w2m, b2.reshape(1, C3),
      w3m, b3.reshape(1, C4))

    # Tiny (~1 KiB) host-side reorder so the flatten matches torch's NCHW
    # .view() order.
    img = feat.reshape(N, OH2, OW2, C4).transpose(0, 3, 1, 2).reshape(B, S, -1)
    return jnp.concatenate((img, l.reshape(B, S, -1)), axis=2)


def init_params(key):
    def conv_init(k, cout, cin, kh, kw):
        k1, k2 = jax.random.split(k)
        fan_in = cin * kh * kw
        bound = 1.0 / float(fan_in) ** 0.5
        w = jax.random.uniform(k1, (cout, cin, kh, kw), jnp.float32,
                               -bound, bound)
        b = jax.random.uniform(k2, (cout,), jnp.float32, -bound, bound)
        return w, b

    k1, k2, k3 = jax.random.split(key, 3)
    return {
        "conv1": conv_init(k1, 64, 128, 3, 3),
        "conv2": conv_init(k2, 32, 64, 3, 3),
        "conv3": conv_init(k3, 16, 32, 1, 1),
    }


if __name__ == "__main__":
    key = jax.random.PRNGKey(0)
    kp, kx, kl = jax.random.split(key, 3)
    B, S, C, H, W, NP = 2, 2, 128, 8, 8, 4

    params = init_params(kp)
    x = jax.random.normal(kx, (B, S, C, H, W), jnp.float32)
    l = jax.random.normal(kl, (B, S, NP), jnp.float32)

    # Pure-JAX reference for correctness.
    def ref_conv(xn, w, bb, stride, padding):
        o = jax.lax.conv_general_dilated(
            xn, w, (stride, stride), [(padding, padding)] * 2,
            dimension_numbers=("NCHW", "OIHW", "NCHW"))
        return jax.nn.relu(o + bb[None, :, None, None])

    xr = x.reshape(B * S, C, H, W)
    xr = ref_conv(xr, *params["conv1"], 2, 1)
    xr = ref_conv(xr, *params["conv2"], 2, 1)
    xr = ref_conv(xr, *params["conv3"], 1, 0)
    ref = jnp.concatenate((xr.reshape(B, S, -1), l.reshape(B, S, -1)), axis=2)

    # f32 path (exact module semantics).
    fwd_f32 = jax.jit(lambda p, a, b: yimgnet_forward(p, a, b, use_bf16=False))
    out = jax.block_until_ready(fwd_f32(params, x, l))
    assert out.shape == (B, S, 16 * (H // 4) * (W // 4) + NP), out.shape
    assert jnp.allclose(out, ref, atol=1e-4, rtol=1e-4)

    # bf16 MXU operands with f32 accumulation (perf mode) — looser tolerance.
    fwd_bf16 = jax.jit(lambda p, a, b: yimgnet_forward(p, a, b, use_bf16=True))
    out16 = jax.block_until_ready(fwd_bf16(params, x, l))
    assert out16.shape == out.shape
    assert jnp.allclose(out16, ref, atol=5e-2, rtol=5e-2)

    print("KERNEL_OK")
</pallas_src>

<mosaic_0001>
module attributes {stable_mosaic.version = 11 : i64} {
  func.func @kernel(%arg0: i32, %arg1: memref<2x8x8x128xf32, #tpu.memory_space<vmem>>, %arg2: memref<9x128x64xf32, #tpu.memory_space<vmem>>, %arg3: memref<1x64xf32, #tpu.memory_space<vmem>>, %arg4: memref<9x64x32xf32, #tpu.memory_space<vmem>>, %arg5: memref<1x32xf32, #tpu.memory_space<vmem>>, %arg6: memref<32x16xf32, #tpu.memory_space<vmem>>, %arg7: memref<1x16xf32, #tpu.memory_space<vmem>>, %arg8: memref<1x8x16xf32, #tpu.memory_space<vmem>>, %arg9: memref<4x5x9x128xf32, #tpu.memory_space<vmem>>, %arg10: memref<4x3x5x64xf32, #tpu.memory_space<vmem>>) attributes {dimension_semantics = [#tpu.dimension_semantics<parallel>], iteration_bounds = array<i64: 2>, scalar_prefetch = 0 : i64, scratch_operands = 2 : i64, tpu.core_type = #tpu.core_type<tc>, window_params = [{transform_indices = @transform_0, window_bounds = array<i64: 2, 8, 8, 128>}, {pipeline_mode = #tpu.pipeline_mode<synchronous>, transform_indices = @transform_1, window_bounds = array<i64: 9, 128, 64>}, {pipeline_mode = #tpu.pipeline_mode<synchronous>, transform_indices = @transform_2, window_bounds = array<i64: 1, 64>}, {pipeline_mode = #tpu.pipeline_mode<synchronous>, transform_indices = @transform_3, window_bounds = array<i64: 9, 64, 32>}, {pipeline_mode = #tpu.pipeline_mode<synchronous>, transform_indices = @transform_4, window_bounds = array<i64: 1, 32>}, {pipeline_mode = #tpu.pipeline_mode<synchronous>, transform_indices = @transform_5, window_bounds = array<i64: 32, 16>}, {pipeline_mode = #tpu.pipeline_mode<synchronous>, transform_indices = @transform_6, window_bounds = array<i64: 1, 16>}, {transform_indices = @transform_7, window_bounds = array<i64: 1, 8, 16>}]} {
    %cst = arith.constant 0.000000e+00 : f32
    %0 = vector.broadcast %cst : f32 to vector<2x9x128xf32>
    %c0 = arith.constant 0 : index
    %c0_0 = arith.constant 0 : index
    %c0_1 = arith.constant 0 : index
    %c0_2 = arith.constant 0 : index
    %1 = vector.load %arg9[%c0, %c0_0, %c0_1, %c0_2] : memref<4x5x9x128xf32, #tpu.memory_space<vmem>>, vector<2x1x9x128xf32>
    %2 = vector.shape_cast %1 : vector<2x1x9x128xf32> to vector<2x9x128xf32>
    %3 = vector.shape_cast %0 : vector<2x9x128xf32> to vector<2x1x9x128xf32>
    tpu.vector_store %arg9[%c0, %c0_0, %c0_1, %c0_2], %3 {strides = array<i32>} : memref<4x5x9x128xf32, #tpu.memory_space<vmem>>, vector<2x1x9x128xf32>,
    %cst_3 = arith.constant 0.000000e+00 : f32
    %4 = vector.broadcast %cst_3 : f32 to vector<4x5x1x128xf32>
    %c0_4 = arith.constant 0 : index
    %c0_5 = arith.constant 0 : index
    %c0_6 = arith.constant 0 : index
    %c0_7 = arith.constant 0 : index
    %5 = vector.load %arg9[%c0_4, %c0_5, %c0_6, %c0_7] : memref<4x5x9x128xf32, #tpu.memory_space<vmem>>, vector<4x5x1x128xf32>
    tpu.vector_store %arg9[%c0_4, %c0_5, %c0_6, %c0_7], %4 {strides = array<i32>} : memref<4x5x9x128xf32, #tpu.memory_space<vmem>>, vector<4x5x1x128xf32>,
    %c0_8 = arith.constant 0 : index
    %c0_9 = arith.constant 0 : index
    %c0_10 = arith.constant 0 : index
    %c0_11 = arith.constant 0 : index
    %6 = vector.load %arg1[%c0_8, %c0_9, %c0_10, %c0_11] : memref<2x8x8x128xf32, #tpu.memory_space<vmem>>, vector<2x1x8x128xf32>
    %7 = vector.shape_cast %6 : vector<2x1x8x128xf32> to vector<2x8x128xf32>
    %c2 = arith.constant 2 : index
    %c0_12 = arith.constant 0 : index
    %c1 = arith.constant 1 : index
    %c0_13 = arith.constant 0 : index
    %8 = vector.load %arg9[%c2, %c0_12, %c1, %c0_13] : memref<4x5x9x128xf32, #tpu.memory_space<vmem>>, vector<2x1x8x128xf32>
    %9 = vector.shape_cast %8 : vector<2x1x8x128xf32> to vector<2x8x128xf32>
    %10 = vector.shape_cast %7 : vector<2x8x128xf32> to vector<2x1x8x128xf32>
    tpu.vector_store %arg9[%c2, %c0_12, %c1, %c0_13], %10 {strides = array<i32>} : memref<4x5x9x128xf32, #tpu.memory_space<vmem>>, vector<2x1x8x128xf32>,
    %c0_14 = arith.constant 0 : index
    %c1_15 = arith.constant 1 : index
    %c0_16 = arith.constant 0 : index
    %c0_17 = arith.constant 0 : index
    %11 = vector.load %arg1[%c0_14, %c1_15, %c0_16, %c0_17] : memref<2x8x8x128xf32, #tpu.memory_space<vmem>>, vector<2x1x8x128xf32>
    %12 = vector.shape_cast %11 : vector<2x1x8x128xf32> to vector<2x8x128xf32>
    %c0_18 = arith.constant 0 : index
    %c1_19 = arith.constant 1 : index
    %c1_20 = arith.constant 1 : index
    %c0_21 = arith.constant 0 : index
    %13 = vector.load %arg9[%c0_18, %c1_19, %c1_20, %c0_21] : memref<4x5x9x128xf32, #tpu.memory_space<vmem>>, vector<2x1x8x128xf32>
    %14 = vector.shape_cast %13 : vector<2x1x8x128xf32> to vector<2x8x128xf32>
    %15 = vector.shape_cast %12 : vector<2x8x128xf32> to vector<2x1x8x128xf32>
    tpu.vector_store %arg9[%c0_18, %c1_19, %c1_20, %c0_21], %15 {strides = array<i32>} : memref<4x5x9x128xf32, #tpu.memory_space<vmem>>, vector<2x1x8x128xf32>,
    %c0_22 = arith.constant 0 : index
    %c2_23 = arith.constant 2 : index
    %c0_24 = arith.constant 0 : index
    %c0_25 = arith.constant 0 : index
    %16 = vector.load %arg1[%c0_22, %c2_23, %c0_24, %c0_25] : memref<2x8x8x128xf32, #tpu.memory_space<vmem>>, vector<2x1x8x128xf32>
    %17 = vector.shape_cast %16 : vector<2x1x8x128xf32> to vector<2x8x128xf32>
    %c2_26 = arith.constant 2 : index
    %c1_27 = arith.constant 1 : index
    %c1_28 = arith.constant 1 : index
    %c0_29 = arith.constant 0 : index
    %18 = vector.load %arg9[%c2_26, %c1_27, %c1_28, %c0_29] : memref<4x5x9x128xf32, #tpu.memory_space<vmem>>, vector<2x1x8x128xf32>
    %19 = vector.shape_cast %18 : vector<2x1x8x128xf32> to vector<2x8x128xf32>
    %20 = vector.shape_cast %17 : vector<2x8x128xf32> to vector<2x1x8x128xf32>
    tpu.vector_store %arg9[%c2_26, %c1_27, %c1_28, %c0_29], %20 {strides = array<i32>} : memref<4x5x9x128xf32, #tpu.memory_space<vmem>>, vector<2x1x8x128xf32>,
    %c0_30 = arith.constant 0 : index
    %c3 = arith.constant 3 : index
    %c0_31 = arith.constant 0 : index
    %c0_32 = arith.constant 0 : index
    %21 = vector.load %arg1[%c0_30, %c3, %c0_31, %c0_32] : memref<2x8x8x128xf32, #tpu.memory_space<vmem>>, vector<2x1x8x128xf32>
    %22 = vector.shape_cast %21 : vector<2x1x8x128xf32> to vector<2x8x128xf32>
    %c0_33 = arith.constant 0 : index
    %c2_34 = arith.constant 2 : index
    %c1_35 = arith.constant 1 : index
    %c0_36 = arith.constant 0 : index
    %23 = vector.load %arg9[%c0_33, %c2_34, %c1_35, %c0_36] : memref<4x5x9x128xf32, #tpu.memory_space<vmem>>, vector<2x1x8x128xf32>
    %24 = vector.shape_cast %23 : vector<2x1x8x128xf32> to vector<2x8x128xf32>
    %25 = vector.shape_cast %22 : vector<2x8x128xf32> to vector<2x1x8x128xf32>
    tpu.vector_store %arg9[%c0_33, %c2_34, %c1_35, %c0_36], %25 {strides = array<i32>} : memref<4x5x9x128xf32, #tpu.memory_space<vmem>>, vector<2x1x8x128xf32>,
    %c0_37 = arith.constant 0 : index
    %c4 = arith.constant 4 : index
    %c0_38 = arith.constant 0 : index
    %c0_39 = arith.constant 0 : index
    %26 = vector.load %arg1[%c0_37, %c4, %c0_38, %c0_39] : memref<2x8x8x128xf32, #tpu.memory_space<vmem>>, vector<2x1x8x128xf32>
    %27 = vector.shape_cast %26 : vector<2x1x8x128xf32> to vector<2x8x128xf32>
    %c2_40 = arith.constant 2 : index
    %c2_41 = arith.constant 2 : index
    %c1_42 = arith.constant 1 : index
    %c0_43 = arith.constant 0 : index
    %28 = vector.load %arg9[%c2_40, %c2_41, %c1_42, %c0_43] : memref<4x5x9x128xf32, #tpu.memory_space<vmem>>, vector<2x1x8x128xf32>
    %29 = vector.shape_cast %28 : vector<2x1x8x128xf32> to vector<2x8x128xf32>
    %30 = vector.shape_cast %27 : vector<2x8x128xf32> to vector<2x1x8x128xf32>
    tpu.vector_store %arg9[%c2_40, %c2_41, %c1_42, %c0_43], %30 {strides = array<i32>} : memref<4x5x9x128xf32, #tpu.memory_space<vmem>>, vector<2x1x8x128xf32>,
    %c0_44 = arith.constant 0 : index
    %c5 = arith.constant 5 : index
    %c0_45 = arith.constant 0 : index
    %c0_46 = arith.constant 0 : index
    %31 = vector.load %arg1[%c0_44, %c5, %c0_45, %c0_46] : memref<2x8x8x128xf32, #tpu.memory_space<vmem>>, vector<2x1x8x128xf32>
    %32 = vector.shape_cast %31 : vector<2x1x8x128xf32> to vector<2x8x128xf32>
    %c0_47 = arith.constant 0 : index
    %c3_48 = arith.constant 3 : index
    %c1_49 = arith.constant 1 : index
    %c0_50 = arith.constant 0 : index
    %33 = vector.load %arg9[%c0_47, %c3_48, %c1_49, %c0_50] : memref<4x5x9x128xf32, #tpu.memory_space<vmem>>, vector<2x1x8x128xf32>
    %34 = vector.shape_cast %33 : vector<2x1x8x128xf32> to vector<2x8x128xf32>
    %35 = vector.shape_cast %32 : vector<2x8x128xf32> to vector<2x1x8x128xf32>
    tpu.vector_store %arg9[%c0_47, %c3_48, %c1_49, %c0_50], %35 {strides = array<i32>} : memref<4x5x9x128xf32, #tpu.memory_space<vmem>>, vector<2x1x8x128xf32>,
    %c0_51 = arith.constant 0 : index
    %c6 = arith.constant 6 : index
    %c0_52 = arith.constant 0 : index
    %c0_53 = arith.constant 0 : index
    %36 = vector.load %arg1[%c0_51, %c6, %c0_52, %c0_53] : memref<2x8x8x128xf32, #tpu.memory_space<vmem>>, vector<2x1x8x128xf32>
    %37 = vector.shape_cast %36 : vector<2x1x8x128xf32> to vector<2x8x128xf32>
    %c2_54 = arith.constant 2 : index
    %c3_55 = arith.constant 3 : index
    %c1_56 = arith.constant 1 : index
    %c0_57 = arith.constant 0 : index
    %38 = vector.load %arg9[%c2_54, %c3_55, %c1_56, %c0_57] : memref<4x5x9x128xf32, #tpu.memory_space<vmem>>, vector<2x1x8x128xf32>
    %39 = vector.shape_cast %38 : vector<2x1x8x128xf32> to vector<2x8x128xf32>
    %40 = vector.shape_cast %37 : vector<2x8x128xf32> to vector<2x1x8x128xf32>
    tpu.vector_store %arg9[%c2_54, %c3_55, %c1_56, %c0_57], %40 {strides = array<i32>} : memref<4x5x9x128xf32, #tpu.memory_space<vmem>>, vector<2x1x8x128xf32>,
    %c0_58 = arith.constant 0 : index
    %c7 = arith.constant 7 : index
    %c0_59 = arith.constant 0 : index
    %c0_60 = arith.constant 0 : index
    %41 = vector.load %arg1[%c0_58, %c7, %c0_59, %c0_60] : memref<2x8x8x128xf32, #tpu.memory_space<vmem>>, vector<2x1x8x128xf32>
    %42 = vector.shape_cast %41 : vector<2x1x8x128xf32> to vector<2x8x128xf32>
    %c0_61 = arith.constant 0 : index
    %c4_62 = arith.constant 4 : index
    %c1_63 = arith.constant 1 : index
    %c0_64 = arith.constant 0 : index
    %43 = vector.load %arg9[%c0_61, %c4_62, %c1_63, %c0_64] : memref<4x5x9x128xf32, #tpu.memory_space<vmem>>, vector<2x1x8x128xf32>
    %44 = vector.shape_cast %43 : vector<2x1x8x128xf32> to vector<2x8x128xf32>
    %45 = vector.shape_cast %42 : vector<2x8x128xf32> to vector<2x1x8x128xf32>
    tpu.vector_store %arg9[%c0_61, %c4_62, %c1_63, %c0_64], %45 {strides = array<i32>} : memref<4x5x9x128xf32, #tpu.memory_space<vmem>>, vector<2x1x8x128xf32>,
    %c0_65 = arith.constant 0 : index
    %c0_66 = arith.constant 0 : index
    %c0_67 = arith.constant 0 : index
    %c0_68 = arith.constant 0 : index
    %46 = tpu.strided_load %arg9[%c0_65, %c0_66, %c0_67, %c0_68] {strides = array<i32: 1, 1, 2, 1>} : memref<4x5x9x128xf32, #tpu.memory_space<vmem>>, vector<2x4x4x128xf32>
    %47 = vector.shape_cast %46 : vector<2x4x4x128xf32> to vector<32x128xf32>
    %c0_69 = arith.constant 0 : index
    %c0_70 = arith.constant 0 : index
    %c0_71 = arith.constant 0 : index
    %48 = vector.load %arg2[%c0_69, %c0_70, %c0_71] : memref<9x128x64xf32, #tpu.memory_space<vmem>>, vector<1x128x64xf32>
    %49 = vector.shape_cast %48 : vector<1x128x64xf32> to vector<128x64xf32>
    %cst_72 = arith.constant dense<0.000000e+00> : vector<32x64xf32>
    %50 = tpu.matmul %47, %49, %cst_72 {dimension_numbers = #tpu.dot_dimension_numbers<[1], [0], [0], [1], [0, 0, 1, 1], [], []>} : vector<32x128xf32>, vector<128x64xf32>, vector<32x64xf32> -> vector<32x64xf32>
    %c0_73 = arith.constant 0 : index
    %c0_74 = arith.constant 0 : index
    %c1_75 = arith.constant 1 : index
    %c0_76 = arith.constant 0 : index
    %51 = tpu.strided_load %arg9[%c0_73, %c0_74, %c1_75, %c0_76] {strides = array<i32: 1, 1, 2, 1>} : memref<4x5x9x128xf32, #tpu.memory_space<vmem>>, vector<2x4x4x128xf32>
    %52 = vector.shape_cast %51 : vector<2x4x4x128xf32> to vector<32x128xf32>
    %c1_77 = arith.constant 1 : index
    %c0_78 = arith.constant 0 : index
    %c0_79 = arith.constant 0 : index
    %53 = vector.load %arg2[%c1_77, %c0_78, %c0_79] : memref<9x128x64xf32, #tpu.memory_space<vmem>>, vector<1x128x64xf32>
    %54 = vector.shape_cast %53 : vector<1x128x64xf32> to vector<128x64xf32>
    %cst_80 = arith.constant dense<0.000000e+00> : vector<32x64xf32>
    %55 = tpu.matmul %52, %54, %cst_80 {dimension_numbers = #tpu.dot_dimension_numbers<[1], [0], [0], [1], [0, 0, 1, 1], [], []>} : vector<32x128xf32>, vector<128x64xf32>, vector<32x64xf32> -> vector<32x64xf32>
    %56 = arith.addf %50, %55 : vector<32x64xf32>
    %c0_81 = arith.constant 0 : index
    %c0_82 = arith.constant 0 : index
    %c2_83 = arith.constant 2 : index
    %c0_84 = arith.constant 0 : index
    %57 = tpu.strided_load %arg9[%c0_81, %c0_82, %c2_83, %c0_84] {strides = array<i32: 1, 1, 2, 1>} : memref<4x5x9x128xf32, #tpu.memory_space<vmem>>, vector<2x4x4x128xf32>
    %58 = vector.shape_cast %57 : vector<2x4x4x128xf32> to vector<32x128xf32>
    %c2_85 = arith.constant 2 : index
    %c0_86 = arith.constant 0 : index
    %c0_87 = arith.constant 0 : index
    %59 = vector.load %arg2[%c2_85, %c0_86, %c0_87] : memref<9x128x64xf32, #tpu.memory_space<vmem>>, vector<1x128x64xf32>
    %60 = vector.shape_cast %59 : vector<1x128x64xf32> to vector<128x64xf32>
    %cst_88 = arith.constant dense<0.000000e+00> : vector<32x64xf32>
    %61 = tpu.matmul %58, %60, %cst_88 {dimension_numbers = #tpu.dot_dimension_numbers<[1], [0], [0], [1], [0, 0, 1, 1], [], []>} : vector<32x128xf32>, vector<128x64xf32>, vector<32x64xf32> -> vector<32x64xf32>
    %62 = arith.addf %56, %61 : vector<32x64xf32>
    %c2_89 = arith.constant 2 : index
    %c0_90 = arith.constant 0 : index
    %c0_91 = arith.constant 0 : index
    %c0_92 = arith.constant 0 : index
    %63 = tpu.strided_load %arg9[%c2_89, %c0_90, %c0_91, %c0_92] {strides = array<i32: 1, 1, 2, 1>} : memref<4x5x9x128xf32, #tpu.memory_space<vmem>>, vector<2x4x4x128xf32>
    %64 = vector.shape_cast %63 : vector<2x4x4x128xf32> to vector<32x128xf32>
    %c3_93 = arith.constant 3 : index
    %c0_94 = arith.constant 0 : index
    %c0_95 = arith.constant 0 : index
    %65 = vector.load %arg2[%c3_93, %c0_94, %c0_95] : memref<9x128x64xf32, #tpu.memory_space<vmem>>, vector<1x128x64xf32>
    %66 = vector.shape_cast %65 : vector<1x128x64xf32> to vector<128x64xf32>
    %cst_96 = arith.constant dense<0.000000e+00> : vector<32x64xf32>
    %67 = tpu.matmul %64, %66, %cst_96 {dimension_numbers = #tpu.dot_dimension_numbers<[1], [0], [0], [1], [0, 0, 1, 1], [], []>} : vector<32x128xf32>, vector<128x64xf32>, vector<32x64xf32> -> vector<32x64xf32>
    %68 = arith.addf %62, %67 : vector<32x64xf32>
    %c2_97 = arith.constant 2 : index
    %c0_98 = arith.constant 0 : index
    %c1_99 = arith.constant 1 : index
    %c0_100 = arith.constant 0 : index
    %69 = tpu.strided_load %arg9[%c2_97, %c0_98, %c1_99, %c0_100] {strides = array<i32: 1, 1, 2, 1>} : memref<4x5x9x128xf32, #tpu.memory_space<vmem>>, vector<2x4x4x128xf32>
    %70 = vector.shape_cast %69 : vector<2x4x4x128xf32> to vector<32x128xf32>
    %c4_101 = arith.constant 4 : index
    %c0_102 = arith.constant 0 : index
    %c0_103 = arith.constant 0 : index
    %71 = vector.load %arg2[%c4_101, %c0_102, %c0_103] : memref<9x128x64xf32, #tpu.memory_space<vmem>>, vector<1x128x64xf32>
    %72 = vector.shape_cast %71 : vector<1x128x64xf32> to vector<128x64xf32>
    %cst_104 = arith.constant dense<0.000000e+00> : vector<32x64xf32>
    %73 = tpu.matmul %70, %72, %cst_104 {dimension_numbers = #tpu.dot_dimension_numbers<[1], [0], [0], [1], [0, 0, 1, 1], [], []>} : vector<32x128xf32>, vector<128x64xf32>, vector<32x64xf32> -> vector<32x64xf32>
    %74 = arith.addf %68, %73 : vector<32x64xf32>
    %c2_105 = arith.constant 2 : index
    %c0_106 = arith.constant 0 : index
    %c2_107 = arith.constant 2 : index
    %c0_108 = arith.constant 0 : index
    %75 = tpu.strided_load %arg9[%c2_105, %c0_106, %c2_107, %c0_108] {strides = array<i32: 1, 1, 2, 1>} : memref<4x5x9x128xf32, #tpu.memory_space<vmem>>, vector<2x4x4x128xf32>
    %76 = vector.shape_cast %75 : vector<2x4x4x128xf32> to vector<32x128xf32>
    %c5_109 = arith.constant 5 : index
    %c0_110 = arith.constant 0 : index
    %c0_111 = arith.constant 0 : index
    %77 = vector.load %arg2[%c5_109, %c0_110, %c0_111] : memref<9x128x64xf32, #tpu.memory_space<vmem>>, vector<1x128x64xf32>
    %78 = vector.shape_cast %77 : vector<1x128x64xf32> to vector<128x64xf32>
    %cst_112 = arith.constant dense<0.000000e+00> : vector<32x64xf32>
    %79 = tpu.matmul %76, %78, %cst_112 {dimension_numbers = #tpu.dot_dimension_numbers<[1], [0], [0], [1], [0, 0, 1, 1], [], []>} : vector<32x128xf32>, vector<128x64xf32>, vector<32x64xf32> -> vector<32x64xf32>
    %80 = arith.addf %74, %79 : vector<32x64xf32>
    %c0_113 = arith.constant 0 : index
    %c1_114 = arith.constant 1 : index
    %c0_115 = arith.constant 0 : index
    %c0_116 = arith.constant 0 : index
    %81 = tpu.strided_load %arg9[%c0_113, %c1_114, %c0_115, %c0_116] {strides = array<i32: 1, 1, 2, 1>} : memref<4x5x9x128xf32, #tpu.memory_space<vmem>>, vector<2x4x4x128xf32>
    %82 = vector.shape_cast %81 : vector<2x4x4x128xf32> to vector<32x128xf32>
    %c6_117 = arith.constant 6 : index
    %c0_118 = arith.constant 0 : index
    %c0_119 = arith.constant 0 : index
    %83 = vector.load %arg2[%c6_117, %c0_118, %c0_119] : memref<9x128x64xf32, #tpu.memory_space<vmem>>, vector<1x128x64xf32>
    %84 = vector.shape_cast %83 : vector<1x128x64xf32> to vector<128x64xf32>
    %cst_120 = arith.constant dense<0.000000e+00> : vector<32x64xf32>
    %85 = tpu.matmul %82, %84, %cst_120 {dimension_numbers = #tpu.dot_dimension_numbers<[1], [0], [0], [1], [0, 0, 1, 1], [], []>} : vector<32x128xf32>, vector<128x64xf32>, vector<32x64xf32> -> vector<32x64xf32>
    %86 = arith.addf %80, %85 : vector<32x64xf32>
    %c0_121 = arith.constant 0 : index
    %c1_122 = arith.constant 1 : index
    %c1_123 = arith.constant 1 : index
    %c0_124 = arith.constant 0 : index
    %87 = tpu.strided_load %arg9[%c0_121, %c1_122, %c1_123, %c0_124] {strides = array<i32: 1, 1, 2, 1>} : memref<4x5x9x128xf32, #tpu.memory_space<vmem>>, vector<2x4x4x128xf32>
    %88 = vector.shape_cast %87 : vector<2x4x4x128xf32> to vector<32x128xf32>
    %c7_125 = arith.constant 7 : index
    %c0_126 = arith.constant 0 : index
    %c0_127 = arith.constant 0 : index
    %89 = vector.load %arg2[%c7_125, %c0_126, %c0_127] : memref<9x128x64xf32, #tpu.memory_space<vmem>>, vector<1x128x64xf32>
    %90 = vector.shape_cast %89 : vector<1x128x64xf32> to vector<128x64xf32>
    %cst_128 = arith.constant dense<0.000000e+00> : vector<32x64xf32>
    %91 = tpu.matmul %88, %90, %cst_128 {dimension_numbers = #tpu.dot_dimension_numbers<[1], [0], [0], [1], [0, 0, 1, 1], [], []>} : vector<32x128xf32>, vector<128x64xf32>, vector<32x64xf32> -> vector<32x64xf32>
    %92 = arith.addf %86, %91 : vector<32x64xf32>
    %c0_129 = arith.constant 0 : index
    %c1_130 = arith.constant 1 : index
    %c2_131 = arith.constant 2 : index
    %c0_132 = arith.constant 0 : index
    %93 = tpu.strided_load %arg9[%c0_129, %c1_130, %c2_131, %c0_132] {strides = array<i32: 1, 1, 2, 1>} : memref<4x5x9x128xf32, #tpu.memory_space<vmem>>, vector<2x4x4x128xf32>
    %94 = vector.shape_cast %93 : vector<2x4x4x128xf32> to vector<32x128xf32>
    %c8 = arith.constant 8 : index
    %c0_133 = arith.constant 0 : index
    %c0_134 = arith.constant 0 : index
    %95 = vector.load %arg2[%c8, %c0_133, %c0_134] : memref<9x128x64xf32, #tpu.memory_space<vmem>>, vector<1x128x64xf32>
    %96 = vector.shape_cast %95 : vector<1x128x64xf32> to vector<128x64xf32>
    %cst_135 = arith.constant dense<0.000000e+00> : vector<32x64xf32>
    %97 = tpu.matmul %94, %96, %cst_135 {dimension_numbers = #tpu.dot_dimension_numbers<[1], [0], [0], [1], [0, 0, 1, 1], [], []>} : vector<32x128xf32>, vector<128x64xf32>, vector<32x64xf32> -> vector<32x64xf32>
    %98 = arith.addf %92, %97 : vector<32x64xf32>
    %c0_136 = arith.constant 0 : index
    %c0_137 = arith.constant 0 : index
    %99 = vector.load %arg3[%c0_136, %c0_137] : memref<1x64xf32, #tpu.memory_space<vmem>>, vector<1x64xf32>
    %100 = vector.broadcast %99 : vector<1x64xf32> to vector<32x64xf32>
    %101 = arith.addf %98, %100 : vector<32x64xf32>
    %cst_138 = arith.constant 0.000000e+00 : f32
    %102 = vector.broadcast %cst_138 : f32 to vector<32x64xf32>
    %103 = arith.maximumf %101, %102 : vector<32x64xf32>
    %104 = vector.shape_cast %103 : vector<32x64xf32> to vector<2x4x4x64xf32>
    %cst_139 = arith.constant 0.000000e+00 : f32
    %105 = vector.broadcast %cst_139 : f32 to vector<2x5x64xf32>
    %c0_140 = arith.constant 0 : index
    %c0_141 = arith.constant 0 : index
    %c0_142 = arith.constant 0 : index
    %c0_143 = arith.constant 0 : index
    %106 = vector.load %arg10[%c0_140, %c0_141, %c0_142, %c0_143] : memref<4x3x5x64xf32, #tpu.memory_space<vmem>>, vector<2x1x5x64xf32>
    %107 = vector.shape_cast %106 : vector<2x1x5x64xf32> to vector<2x5x64xf32>
    %108 = vector.shape_cast %105 : vector<2x5x64xf32> to vector<2x1x5x64xf32>
    tpu.vector_store %arg10[%c0_140, %c0_141, %c0_142, %c0_143], %108 {strides = array<i32>} : memref<4x3x5x64xf32, #tpu.memory_space<vmem>>, vector<2x1x5x64xf32>,
    %cst_144 = arith.constant 0.000000e+00 : f32
    %109 = vector.broadcast %cst_144 : f32 to vector<4x3x1x64xf32>
    %c0_145 = arith.constant 0 : index
    %c0_146 = arith.constant 0 : index
    %c0_147 = arith.constant 0 : index
    %c0_148 = arith.constant 0 : index
    %110 = vector.load %arg10[%c0_145, %c0_146, %c0_147, %c0_148] : memref<4x3x5x64xf32, #tpu.memory_space<vmem>>, vector<4x3x1x64xf32>
    tpu.vector_store %arg10[%c0_145, %c0_146, %c0_147, %c0_148], %109 {strides = array<i32>} : memref<4x3x5x64xf32, #tpu.memory_space<vmem>>, vector<4x3x1x64xf32>,
    %111 = vector.extract_strided_slice %104 {offsets = [0, 0, 0, 0], sizes = [2, 1, 4, 64], strides = [1, 1, 1, 1]} : vector<2x4x4x64xf32> to vector<2x1x4x64xf32>
    %112 = vector.shape_cast %111 : vector<2x1x4x64xf32> to vector<2x4x64xf32>
    %c2_149 = arith.constant 2 : index
    %c0_150 = arith.constant 0 : index
    %c1_151 = arith.constant 1 : index
    %c0_152 = arith.constant 0 : index
    %113 = vector.load %arg10[%c2_149, %c0_150, %c1_151, %c0_152] : memref<4x3x5x64xf32, #tpu.memory_space<vmem>>, vector<2x1x4x64xf32>
    %114 = vector.shape_cast %113 : vector<2x1x4x64xf32> to vector<2x4x64xf32>
    %115 = vector.shape_cast %112 : vector<2x4x64xf32> to vector<2x1x4x64xf32>
    tpu.vector_store %arg10[%c2_149, %c0_150, %c1_151, %c0_152], %115 {strides = array<i32>} : memref<4x3x5x64xf32, #tpu.memory_space<vmem>>, vector<2x1x4x64xf32>,
    %116 = vector.extract_strided_slice %104 {offsets = [0, 1, 0, 0], sizes = [2, 1, 4, 64], strides = [1, 1, 1, 1]} : vector<2x4x4x64xf32> to vector<2x1x4x64xf32>
    %117 = vector.shape_cast %116 : vector<2x1x4x64xf32> to vector<2x4x64xf32>
    %c0_153 = arith.constant 0 : index
    %c1_154 = arith.constant 1 : index
    %c1_155 = arith.constant 1 : index
    %c0_156 = arith.constant 0 : index
    %118 = vector.load %arg10[%c0_153, %c1_154, %c1_155, %c0_156] : memref<4x3x5x64xf32, #tpu.memory_space<vmem>>, vector<2x1x4x64xf32>
    %119 = vector.shape_cast %118 : vector<2x1x4x64xf32> to vector<2x4x64xf32>
    %120 = vector.shape_cast %117 : vector<2x4x64xf32> to vector<2x1x4x64xf32>
    tpu.vector_store %arg10[%c0_153, %c1_154, %c1_155, %c0_156], %120 {strides = array<i32>} : memref<4x3x5x64xf32, #tpu.memory_space<vmem>>, vector<2x1x4x64xf32>,
    %121 = vector.extract_strided_slice %104 {offsets = [0, 2, 0, 0], sizes = [2, 1, 4, 64], strides = [1, 1, 1, 1]} : vector<2x4x4x64xf32> to vector<2x1x4x64xf32>
    %122 = vector.shape_cast %121 : vector<2x1x4x64xf32> to vector<2x4x64xf32>
    %c2_157 = arith.constant 2 : index
    %c1_158 = arith.constant 1 : index
    %c1_159 = arith.constant 1 : index
    %c0_160 = arith.constant 0 : index
    %123 = vector.load %arg10[%c2_157, %c1_158, %c1_159, %c0_160] : memref<4x3x5x64xf32, #tpu.memory_space<vmem>>, vector<2x1x4x64xf32>
    %124 = vector.shape_cast %123 : vector<2x1x4x64xf32> to vector<2x4x64xf32>
    %125 = vector.shape_cast %122 : vector<2x4x64xf32> to vector<2x1x4x64xf32>
    tpu.vector_store %arg10[%c2_157, %c1_158, %c1_159, %c0_160], %125 {strides = array<i32>} : memref<4x3x5x64xf32, #tpu.memory_space<vmem>>, vector<2x1x4x64xf32>,
    %126 = vector.extract_strided_slice %104 {offsets = [0, 3, 0, 0], sizes = [2, 1, 4, 64], strides = [1, 1, 1, 1]} : vector<2x4x4x64xf32> to vector<2x1x4x64xf32>
    %127 = vector.shape_cast %126 : vector<2x1x4x64xf32> to vector<2x4x64xf32>
    %c0_161 = arith.constant 0 : index
    %c2_162 = arith.constant 2 : index
    %c1_163 = arith.constant 1 : index
    %c0_164 = arith.constant 0 : index
    %128 = vector.load %arg10[%c0_161, %c2_162, %c1_163, %c0_164] : memref<4x3x5x64xf32, #tpu.memory_space<vmem>>, vector<2x1x4x64xf32>
    %129 = vector.shape_cast %128 : vector<2x1x4x64xf32> to vector<2x4x64xf32>
    %130 = vector.shape_cast %127 : vector<2x4x64xf32> to vector<2x1x4x64xf32>
    tpu.vector_store %arg10[%c0_161, %c2_162, %c1_163, %c0_164], %130 {strides = array<i32>} : memref<4x3x5x64xf32, #tpu.memory_space<vmem>>, vector<2x1x4x64xf32>,
    %c0_165 = arith.constant 0 : index
    %c0_166 = arith.constant 0 : index
    %c0_167 = arith.constant 0 : index
    %c0_168 = arith.constant 0 : index
    %131 = tpu.strided_load %arg10[%c0_165, %c0_166, %c0_167, %c0_168] {strides = array<i32: 1, 1, 2, 1>} : memref<4x3x5x64xf32, #tpu.memory_space<vmem>>, vector<2x2x2x64xf32>
    %132 = vector.shape_cast %131 : vector<2x2x2x64xf32> to vector<8x64xf32>
    %c0_169 = arith.constant 0 : index
    %c0_170 = arith.constant 0 : index
    %c0_171 = arith.constant 0 : index
    %133 = vector.load %arg4[%c0_169, %c0_170, %c0_171] : memref<9x64x32xf32, #tpu.memory_space<vmem>>, vector<1x64x32xf32>
    %134 = vector.shape_cast %133 : vector<1x64x32xf32> to vector<64x32xf32>
    %cst_172 = arith.constant dense<0.000000e+00> : vector<8x32xf32>
    %135 = tpu.matmul %132, %134, %cst_172 {dimension_numbers = #tpu.dot_dimension_numbers<[1], [0], [0], [1], [0, 0, 1, 1], [], []>} : vector<8x64xf32>, vector<64x32xf32>, vector<8x32xf32> -> vector<8x32xf32>
    %c0_173 = arith.constant 0 : index
    %c0_174 = arith.constant 0 : index
    %c1_175 = arith.constant 1 : index
    %c0_176 = arith.constant 0 : index
    %136 = tpu.strided_load %arg10[%c0_173, %c0_174, %c1_175, %c0_176] {strides = array<i32: 1, 1, 2, 1>} : memref<4x3x5x64xf32, #tpu.memory_space<vmem>>, vector<2x2x2x64xf32>
    %137 = vector.shape_cast %136 : vector<2x2x2x64xf32> to vector<8x64xf32>
    %c1_177 = arith.constant 1 : index
    %c0_178 = arith.constant 0 : index
    %c0_179 = arith.constant 0 : index
    %138 = vector.load %arg4[%c1_177, %c0_178, %c0_179] : memref<9x64x32xf32, #tpu.memory_space<vmem>>, vector<1x64x32xf32>
    %139 = vector.shape_cast %138 : vector<1x64x32xf32> to vector<64x32xf32>
    %cst_180 = arith.constant dense<0.000000e+00> : vector<8x32xf32>
    %140 = tpu.matmul %137, %139, %cst_180 {dimension_numbers = #tpu.dot_dimension_numbers<[1], [0], [0], [1], [0, 0, 1, 1], [], []>} : vector<8x64xf32>, vector<64x32xf32>, vector<8x32xf32> -> vector<8x32xf32>
    %141 = arith.addf %135, %140 : vector<8x32xf32>
    %c0_181 = arith.constant 0 : index
    %c0_182 = arith.constant 0 : index
    %c2_183 = arith.constant 2 : index
    %c0_184 = arith.constant 0 : index
    %142 = tpu.strided_load %arg10[%c0_181, %c0_182, %c2_183, %c0_184] {strides = array<i32: 1, 1, 2, 1>} : memref<4x3x5x64xf32, #tpu.memory_space<vmem>>, vector<2x2x2x64xf32>
    %143 = vector.shape_cast %142 : vector<2x2x2x64xf32> to vector<8x64xf32>
    %c2_185 = arith.constant 2 : index
    %c0_186 = arith.constant 0 : index
    %c0_187 = arith.constant 0 : index
    %144 = vector.load %arg4[%c2_185, %c0_186, %c0_187] : memref<9x64x32xf32, #tpu.memory_space<vmem>>, vector<1x64x32xf32>
    %145 = vector.shape_cast %144 : vector<1x64x32xf32> to vector<64x32xf32>
    %cst_188 = arith.constant dense<0.000000e+00> : vector<8x32xf32>
    %146 = tpu.matmul %143, %145, %cst_188 {dimension_numbers = #tpu.dot_dimension_numbers<[1], [0], [0], [1], [0, 0, 1, 1], [], []>} : vector<8x64xf32>, vector<64x32xf32>, vector<8x32xf32> -> vector<8x32xf32>
    %147 = arith.addf %141, %146 : vector<8x32xf32>
    %c2_189 = arith.constant 2 : index
    %c0_190 = arith.constant 0 : index
    %c0_191 = arith.constant 0 : index
    %c0_192 = arith.constant 0 : index
    %148 = tpu.strided_load %arg10[%c2_189, %c0_190, %c0_191, %c0_192] {strides = array<i32: 1, 1, 2, 1>} : memref<4x3x5x64xf32, #tpu.memory_space<vmem>>, vector<2x2x2x64xf32>
    %149 = vector.shape_cast %148 : vector<2x2x2x64xf32> to vector<8x64xf32>
    %c3_193 = arith.constant 3 : index
    %c0_194 = arith.constant 0 : index
    %c0_195 = arith.constant 0 : index
    %150 = vector.load %arg4[%c3_193, %c0_194, %c0_195] : memref<9x64x32xf32, #tpu.memory_space<vmem>>, vector<1x64x32xf32>
    %151 = vector.shape_cast %150 : vector<1x64x32xf32> to vector<64x32xf32>
    %cst_196 = arith.constant dense<0.000000e+00> : vector<8x32xf32>
    %152 = tpu.matmul %149, %151, %cst_196 {dimension_numbers = #tpu.dot_dimension_numbers<[1], [0], [0], [1], [0, 0, 1, 1], [], []>} : vector<8x64xf32>, vector<64x32xf32>, vector<8x32xf32> -> vector<8x32xf32>
    %153 = arith.addf %147, %152 : vector<8x32xf32>
    %c2_197 = arith.constant 2 : index
    %c0_198 = arith.constant 0 : index
    %c1_199 = arith.constant 1 : index
    %c0_200 = arith.constant 0 : index
    %154 = tpu.strided_load %arg10[%c2_197, %c0_198, %c1_199, %c0_200] {strides = array<i32: 1, 1, 2, 1>} : memref<4x3x5x64xf32, #tpu.memory_space<vmem>>, vector<2x2x2x64xf32>
    %155 = vector.shape_cast %154 : vector<2x2x2x64xf32> to vector<8x64xf32>
    %c4_201 = arith.constant 4 : index
    %c0_202 = arith.constant 0 : index
    %c0_203 = arith.constant 0 : index
    %156 = vector.load %arg4[%c4_201, %c0_202, %c0_203] : memref<9x64x32xf32, #tpu.memory_space<vmem>>, vector<1x64x32xf32>
    %157 = vector.shape_cast %156 : vector<1x64x32xf32> to vector<64x32xf32>
    %cst_204 = arith.constant dense<0.000000e+00> : vector<8x32xf32>
    %158 = tpu.matmul %155, %157, %cst_204 {dimension_numbers = #tpu.dot_dimension_numbers<[1], [0], [0], [1], [0, 0, 1, 1], [], []>} : vector<8x64xf32>, vector<64x32xf32>, vector<8x32xf32> -> vector<8x32xf32>
    %159 = arith.addf %153, %158 : vector<8x32xf32>
    %c2_205 = arith.constant 2 : index
    %c0_206 = arith.constant 0 : index
    %c2_207 = arith.constant 2 : index
    %c0_208 = arith.constant 0 : index
    %160 = tpu.strided_load %arg10[%c2_205, %c0_206, %c2_207, %c0_208] {strides = array<i32: 1, 1, 2, 1>} : memref<4x3x5x64xf32, #tpu.memory_space<vmem>>, vector<2x2x2x64xf32>
    %161 = vector.shape_cast %160 : vector<2x2x2x64xf32> to vector<8x64xf32>
    %c5_209 = arith.constant 5 : index
    %c0_210 = arith.constant 0 : index
    %c0_211 = arith.constant 0 : index
    %162 = vector.load %arg4[%c5_209, %c0_210, %c0_211] : memref<9x64x32xf32, #tpu.memory_space<vmem>>, vector<1x64x32xf32>
    %163 = vector.shape_cast %162 : vector<1x64x32xf32> to vector<64x32xf32>
    %cst_212 = arith.constant dense<0.000000e+00> : vector<8x32xf32>
    %164 = tpu.matmul %161, %163, %cst_212 {dimension_numbers = #tpu.dot_dimension_numbers<[1], [0], [0], [1], [0, 0, 1, 1], [], []>} : vector<8x64xf32>, vector<64x32xf32>, vector<8x32xf32> -> vector<8x32xf32>
    %165 = arith.addf %159, %164 : vector<8x32xf32>
    %c0_213 = arith.constant 0 : index
    %c1_214 = arith.constant 1 : index
    %c0_215 = arith.constant 0 : index
    %c0_216 = arith.constant 0 : index
    %166 = tpu.strided_load %arg10[%c0_213, %c1_214, %c0_215, %c0_216] {strides = array<i32: 1, 1, 2, 1>} : memref<4x3x5x64xf32, #tpu.memory_space<vmem>>, vector<2x2x2x64xf32>
    %167 = vector.shape_cast %166 : vector<2x2x2x64xf32> to vector<8x64xf32>
    %c6_217 = arith.constant 6 : index
    %c0_218 = arith.constant 0 : index
    %c0_219 = arith.constant 0 : index
    %168 = vector.load %arg4[%c6_217, %c0_218, %c0_219] : memref<9x64x32xf32, #tpu.memory_space<vmem>>, vector<1x64x32xf32>
    %169 = vector.shape_cast %168 : vector<1x64x32xf32> to vector<64x32xf32>
    %cst_220 = arith.constant dense<0.000000e+00> : vector<8x32xf32>
    %170 = tpu.matmul %167, %169, %cst_220 {dimension_numbers = #tpu.dot_dimension_numbers<[1], [0], [0], [1], [0, 0, 1, 1], [], []>} : vector<8x64xf32>, vector<64x32xf32>, vector<8x32xf32> -> vector<8x32xf32>
    %171 = arith.addf %165, %170 : vector<8x32xf32>
    %c0_221 = arith.constant 0 : index
    %c1_222 = arith.constant 1 : index
    %c1_223 = arith.constant 1 : index
    %c0_224 = arith.constant 0 : index
    %172 = tpu.strided_load %arg10[%c0_221, %c1_222, %c1_223, %c0_224] {strides = array<i32: 1, 1, 2, 1>} : memref<4x3x5x64xf32, #tpu.memory_space<vmem>>, vector<2x2x2x64xf32>
    %173 = vector.shape_cast %172 : vector<2x2x2x64xf32> to vector<8x64xf32>
    %c7_225 = arith.constant 7 : index
    %c0_226 = arith.constant 0 : index
    %c0_227 = arith.constant 0 : index
    %174 = vector.load %arg4[%c7_225, %c0_226, %c0_227] : memref<9x64x32xf32, #tpu.memory_space<vmem>>, vector<1x64x32xf32>
    %175 = vector.shape_cast %174 : vector<1x64x32xf32> to vector<64x32xf32>
    %cst_228 = arith.constant dense<0.000000e+00> : vector<8x32xf32>
    %176 = tpu.matmul %173, %175, %cst_228 {dimension_numbers = #tpu.dot_dimension_numbers<[1], [0], [0], [1], [0, 0, 1, 1], [], []>} : vector<8x64xf32>, vector<64x32xf32>, vector<8x32xf32> -> vector<8x32xf32>
    %177 = arith.addf %171, %176 : vector<8x32xf32>
    %c0_229 = arith.constant 0 : index
    %c1_230 = arith.constant 1 : index
    %c2_231 = arith.constant 2 : index
    %c0_232 = arith.constant 0 : index
    %178 = tpu.strided_load %arg10[%c0_229, %c1_230, %c2_231, %c0_232] {strides = array<i32: 1, 1, 2, 1>} : memref<4x3x5x64xf32, #tpu.memory_space<vmem>>, vector<2x2x2x64xf32>
    %179 = vector.shape_cast %178 : vector<2x2x2x64xf32> to vector<8x64xf32>
    %c8_233 = arith.constant 8 : index
    %c0_234 = arith.constant 0 : index
    %c0_235 = arith.constant 0 : index
    %180 = vector.load %arg4[%c8_233, %c0_234, %c0_235] : memref<9x64x32xf32, #tpu.memory_space<vmem>>, vector<1x64x32xf32>
    %181 = vector.shape_cast %180 : vector<1x64x32xf32> to vector<64x32xf32>
    %cst_236 = arith.constant dense<0.000000e+00> : vector<8x32xf32>
    %182 = tpu.matmul %179, %181, %cst_236 {dimension_numbers = #tpu.dot_dimension_numbers<[1], [0], [0], [1], [0, 0, 1, 1], [], []>} : vector<8x64xf32>, vector<64x32xf32>, vector<8x32xf32> -> vector<8x32xf32>
    %183 = arith.addf %177, %182 : vector<8x32xf32>
    %c0_237 = arith.constant 0 : index
    %c0_238 = arith.constant 0 : index
    %184 = vector.load %arg5[%c0_237, %c0_238] : memref<1x32xf32, #tpu.memory_space<vmem>>, vector<1x32xf32>
    %185 = vector.broadcast %184 : vector<1x32xf32> to vector<8x32xf32>
    %186 = arith.addf %183, %185 : vector<8x32xf32>
    %cst_239 = arith.constant 0.000000e+00 : f32
    %187 = vector.broadcast %cst_239 : f32 to vector<8x32xf32>
    %188 = arith.maximumf %186, %187 : vector<8x32xf32>
    %c0_240 = arith.constant 0 : index
    %c0_241 = arith.constant 0 : index
    %189 = vector.load %arg6[%c0_240, %c0_241] : memref<32x16xf32, #tpu.memory_space<vmem>>, vector<32x16xf32>
    %cst_242 = arith.constant dense<0.000000e+00> : vector<8x16xf32>
    %190 = tpu.matmul %188, %189, %cst_242 {dimension_numbers = #tpu.dot_dimension_numbers<[1], [0], [0], [1], [0, 0, 1, 1], [], []>} : vector<8x32xf32>, vector<32x16xf32>, vector<8x16xf32> -> vector<8x16xf32>
    %c0_243 = arith.constant 0 : index
    %c0_244 = arith.constant 0 : index
    %191 = vector.load %arg7[%c0_243, %c0_244] : memref<1x16xf32, #tpu.memory_space<vmem>>, vector<1x16xf32>
    %192 = vector.broadcast %191 : vector<1x16xf32> to vector<8x16xf32>
    %193 = arith.addf %190, %192 : vector<8x16xf32>
    %cst_245 = arith.constant 0.000000e+00 : f32
    %194 = vector.broadcast %cst_245 : f32 to vector<8x16xf32>
    %195 = arith.maximumf %193, %194 : vector<8x16xf32>
    %196 = vector.shape_cast %195 : vector<8x16xf32> to vector<1x8x16xf32>
    %c0_246 = arith.constant 0 : index
    %c0_247 = arith.constant 0 : index
    %c0_248 = arith.constant 0 : index
    %197 = vector.load %arg8[%c0_246, %c0_247, %c0_248] : memref<1x8x16xf32, #tpu.memory_space<vmem>>, vector<1x8x16xf32>
    tpu.vector_store %arg8[%c0_246, %c0_247, %c0_248], %196 {strides = array<i32>} : memref<1x8x16xf32, #tpu.memory_space<vmem>>, vector<1x8x16xf32>,
    return
  }
  func.func @transform_0(%arg0: i32) -> (i32, i32, i32, i32) {
    %c0_i32 = arith.constant 0 : i32
    %c0_i32_0 = arith.constant 0 : i32
    %c0_i32_1 = arith.constant 0 : i32
    %c0_i32_2 = arith.constant 0 : i32
    return %arg0, %c0_i32, %c0_i32_0, %c0_i32_1 : i32, i32, i32, i32
  }
  func.func @transform_1(%arg0: i32) -> (i32, i32, i32) {
    %c0_i32 = arith.constant 0 : i32
    %c0_i32_0 = arith.constant 0 : i32
    %c0_i32_1 = arith.constant 0 : i32
    %c0_i32_2 = arith.constant 0 : i32
    return %c0_i32, %c0_i32_0, %c0_i32_1 : i32, i32, i32
  }
  func.func @transform_2(%arg0: i32) -> (i32, i32) {
    %c0_i32 = arith.constant 0 : i32
    %c0_i32_0 = arith.constant 0 : i32
    %c0_i32_1 = arith.constant 0 : i32
    return %c0_i32, %c0_i32_0 : i32, i32
  }
  func.func @transform_3(%arg0: i32) -> (i32, i32, i32) {
    %c0_i32 = arith.constant 0 : i32
    %c0_i32_0 = arith.constant 0 : i32
    %c0_i32_1 = arith.constant 0 : i32
    %c0_i32_2 = arith.constant 0 : i32
    return %c0_i32, %c0_i32_0, %c0_i32_1 : i32, i32, i32
  }
  func.func @transform_4(%arg0: i32) -> (i32, i32) {
    %c0_i32 = arith.constant 0 : i32
    %c0_i32_0 = arith.constant 0 : i32
    %c0_i32_1 = arith.constant 0 : i32
    return %c0_i32, %c0_i32_0 : i32, i32
  }
  func.func @transform_5(%arg0: i32) -> (i32, i32) {
    %c0_i32 = arith.constant 0 : i32
    %c0_i32_0 = arith.constant 0 : i32
    %c0_i32_1 = arith.constant 0 : i32
    return %c0_i32, %c0_i32_0 : i32, i32
  }
  func.func @transform_6(%arg0: i32) -> (i32, i32) {
    %c0_i32 = arith.constant 0 : i32
    %c0_i32_0 = arith.constant 0 : i32
    %c0_i32_1 = arith.constant 0 : i32
    return %c0_i32, %c0_i32_0 : i32, i32
  }
  func.func @transform_7(%arg0: i32) -> (i32, i32, i32) {
    %c0_i32 = arith.constant 0 : i32
    %c0_i32_0 = arith.constant 0 : i32
    %c0_i32_1 = arith.constant 0 : i32
    return %arg0, %c0_i32, %c0_i32_0 : i32, i32, i32
  }
}

</mosaic_0001>

<llo_original>
// kernel: _lambda_.1
$region0: #{_lambda_.1}
  #allocation0 [shape = 'u32[]', space=smem, size = 0x4, offset = 0x4, fixed_abs, tag = 'smem constant byte address 0x4 - core index']
  #allocation1 [shape = 'u32[144,128]{1,0:T(1,128)}', space=vmem, size = 0x12000, scoped, tag = 'internal scratch']
  #allocation2 [shape = 'f32[4,5,9,128]{3,2,1,0:T(8,128)}', space=vmem, size = 0x28000, scoped, tag = 'scratch operand']
  #allocation3 [shape = 'f32[4,3,5,64]{3,2,1,0:T(8,128)}', space=vmem, size = 0xc000, scoped, tag = 'scratch operand']
  %s0 = inlined_call_operand.vmem [shape: f32[4,8,8,128], index: 0, kind: input, shape index: {}]
  %s1 = inlined_call_operand.vmem [shape: f32[9,128,64], index: 1, kind: input, shape index: {}]
  %s2 = inlined_call_operand.vmem [shape: f32[1,64], index: 2, kind: input, shape index: {}]
  %s3 = inlined_call_operand.vmem [shape: f32[9,64,32], index: 3, kind: input, shape index: {}]
  %s4 = inlined_call_operand.vmem [shape: f32[1,32], index: 4, kind: input, shape index: {}]
  %s5 = inlined_call_operand.vmem [shape: f32[32,16], index: 5, kind: input, shape index: {}]
  %s6 = inlined_call_operand.vmem [shape: f32[1,16], index: 6, kind: input, shape index: {}]
  %s7 = inlined_call_operand.vmem [shape: f32[2,8,16], index: 7, kind: output, shape index: {}]
  %s8 = sld [smem:[#allocation0]]
  $region61: #{_lambda_.1} parent=0
    _
  %s10 = ssub.s32 1, %s8
  %s11 = scalar_select 0, %s10, %s8
  loop: start=0, step=1, limit=4
  $region2: #{_lambda_.1} parent=0 // loop_pre_header
    _
  $region3: #{_lambda_.1} parent=0 // loop_header
    %s13 = sphi 0, %s17
    %p14 = scmp.ge.s32.totalorder %s13, 4
    %s23 = sphi 0, %s25
    %s26 = sphi 0, %s23
    %s27 = sphi 0, %s26
    %s43 = sphi 0, %s27
    %s47 = sphi 0, %s47
    %s49 = sphi 0, %s47
    %s50 = sphi 0, %s49
    %s64 = sphi 0, %s50
    %s68 = sphi 0, %s68
    %s70 = sphi 0, %s68
    %s71 = sphi 0, %s70
    %s85 = sphi 0, %s71
    %s89 = sphi 0, %s89
    %s91 = sphi 0, %s89
    %s92 = sphi 0, %s91
    %s106 = sphi 0, %s92
    %s110 = sphi 0, %s110
    %s112 = sphi 0, %s110
    %s113 = sphi 0, %s112
    %s127 = sphi 0, %s113
    %s131 = sphi 0, %s131
    %s133 = sphi 0, %s131
    %s134 = sphi 0, %s133
    %s148 = sphi 0, %s134
    %s152 = sphi 0, %s152
    %s154 = sphi 0, %s152
    %s155 = sphi 0, %s154
    %s169 = sphi 0, %s155
    %s175 = sphi 0, %s177
    %s178 = sphi 0, %s175
    %s179 = sphi 0, %s178
    %s195 = sphi 0, %s179
  $region4: #{_lambda_.1} parent=0 // loop_header_branch
    %16 = sbr.rel (%p14) target = $region8
  $region5: #{_lambda_.1} parent=0 // loop_body
    %s18 = ssub.s32 %s13, 1
    %s19 = ssub.s32 %s13, 2
    %s20 = sadd.s32 %s13, 1
    %s21 = ssub.s32 %s13, %s20
    %p22 = scmp.eq.s32.totalorder %s21, 0
    %s24 = sadd.s32 %s23, 1
    %s25 = scalar_select %p22, %s23, %s24
    %p28 = pneg %p22
    %p29 = scmp.eq.s32.totalorder %s13, 1
    %p30 = por %p28, %p29
    %p31 = scmp.ne.s32.totalorder %s23, %s26
    %p32 = scmp.eq.s32.totalorder %s13, 0
    %p33 = por %p31, %p32
    %p34 = scmp.ne.s32.totalorder %s23, %s26
    %p35 = scmp.eq.s32.totalorder %s18, 1
    %p36 = por %p34, %p35
    %p37 = scmp.ne.s32.totalorder %s26, %s27
    %p38 = scmp.eq.s32.totalorder %s18, 0
    %p39 = por %p37, %p38
    %p40 = scmp.ne.s32.totalorder %s26, %s27
    %p41 = scmp.eq.s32.totalorder %s19, 1
    %p42 = por %p40, %p41
    %p44 = scmp.ne.s32.totalorder %s27, %s43
    %p45 = scmp.eq.s32.totalorder %s19, 0
    %p46 = por %p44, %p45
    %s48 = sadd.s32 %s47, 1
    %p51 = scmp.eq.s32.totalorder %s13, 1
    %p52 = scmp.ne.s32.totalorder %s47, %s49
    %p53 = scmp.eq.s32.totalorder %s13, 0
    %p54 = por %p52, %p53
    %p55 = scmp.ne.s32.totalorder %s47, %s49
    %p56 = scmp.eq.s32.totalorder %s18, 1
    %p57 = por %p55, %p56
    %p58 = scmp.ne.s32.totalorder %s49, %s50
    %p59 = scmp.eq.s32.totalorder %s18, 0
    %p60 = por %p58, %p59
    %p61 = scmp.ne.s32.totalorder %s49, %s50
    %p62 = scmp.eq.s32.totalorder %s19, 1
    %p63 = por %p61, %p62
    %p65 = scmp.ne.s32.totalorder %s50, %s64
    %p66 = scmp.eq.s32.totalorder %s19, 0
    %p67 = por %p65, %p66
    %s69 = sadd.s32 %s68, 1
    %p72 = scmp.eq.s32.totalorder %s13, 1
    %p73 = scmp.ne.s32.totalorder %s68, %s70
    %p74 = scmp.eq.s32.totalorder %s13, 0
    %p75 = por %p73, %p74
    %p76 = scmp.ne.s32.totalorder %s68, %s70
    %p77 = scmp.eq.s32.totalorder %s18, 1
    %p78 = por %p76, %p77
    %p79 = scmp.ne.s32.totalorder %s70, %s71
    %p80 = scmp.eq.s32.totalorder %s18, 0
    %p81 = por %p79, %p80
    %p82 = scmp.ne.s32.totalorder %s70, %s71
    %p83 = scmp.eq.s32.totalorder %s19, 1
    %p84 = por %p82, %p83
    %p86 = scmp.ne.s32.totalorder %s71, %s85
    %p87 = scmp.eq.s32.totalorder %s19, 0
    %p88 = por %p86, %p87
    %s90 = sadd.s32 %s89, 1
    %p93 = scmp.eq.s32.totalorder %s13, 1
    %p94 = scmp.ne.s32.totalorder %s89, %s91
    %p95 = scmp.eq.s32.totalorder %s13, 0
    %p96 = por %p94, %p95
    %p97 = scmp.ne.s32.totalorder %s89, %s91
    %p98 = scmp.eq.s32.totalorder %s18, 1
    %p99 = por %p97, %p98
    %p100 = scmp.ne.s32.totalorder %s91, %s92
    %p101 = scmp.eq.s32.totalorder %s18, 0
    %p102 = por %p100, %p101
    %p103 = scmp.ne.s32.totalorder %s91, %s92
    %p104 = scmp.eq.s32.totalorder %s19, 1
    %p105 = por %p103, %p104
    %p107 = scmp.ne.s32.totalorder %s92, %s106
    %p108 = scmp.eq.s32.totalorder %s19, 0
    %p109 = por %p107, %p108
    %s111 = sadd.s32 %s110, 1
    %p114 = scmp.eq.s32.totalorder %s13, 1
    %p115 = scmp.ne.s32.totalorder %s110, %s112
    %p116 = scmp.eq.s32.totalorder %s13, 0
    %p117 = por %p115, %p116
    %p118 = scmp.ne.s32.totalorder %s110, %s112
    %p119 = scmp.eq.s32.totalorder %s18, 1
    %p120 = por %p118, %p119
    %p121 = scmp.ne.s32.totalorder %s112, %s113
    %p122 = scmp.eq.s32.totalorder %s18, 0
    %p123 = por %p121, %p122
    %p124 = scmp.ne.s32.totalorder %s112, %s113
    %p125 = scmp.eq.s32.totalorder %s19, 1
    %p126 = por %p124, %p125
    %p128 = scmp.ne.s32.totalorder %s113, %s127
    %p129 = scmp.eq.s32.totalorder %s19, 0
    %p130 = por %p128, %p129
    %s132 = sadd.s32 %s131, 1
    %p135 = scmp.eq.s32.totalorder %s13, 1
    %p136 = scmp.ne.s32.totalorder %s131, %s133
    %p137 = scmp.eq.s32.totalorder %s13, 0
    %p138 = por %p136, %p137
    %p139 = scmp.ne.s32.totalorder %s131, %s133
    %p140 = scmp.eq.s32.totalorder %s18, 1
    %p141 = por %p139, %p140
    %p142 = scmp.ne.s32.totalorder %s133, %s134
    %p143 = scmp.eq.s32.totalorder %s18, 0
    %p144 = por %p142, %p143
    %p145 = scmp.ne.s32.totalorder %s133, %s134
    %p146 = scmp.eq.s32.totalorder %s19, 1
    %p147 = por %p145, %p146
    %p149 = scmp.ne.s32.totalorder %s134, %s148
    %p150 = scmp.eq.s32.totalorder %s19, 0
    %p151 = por %p149, %p150
    %s153 = sadd.s32 %s152, 1
    %p156 = scmp.eq.s32.totalorder %s13, 1
    %p157 = scmp.ne.s32.totalorder %s152, %s154
    %p158 = scmp.eq.s32.totalorder %s13, 0
    %p159 = por %p157, %p158
    %p160 = scmp.ne.s32.totalorder %s152, %s154
    %p161 = scmp.eq.s32.totalorder %s18, 1
    %p162 = por %p160, %p161
    %p163 = scmp.ne.s32.totalorder %s154, %s155
    %p164 = scmp.eq.s32.totalorder %s18, 0
    %p165 = por %p163, %p164
    %p166 = scmp.ne.s32.totalorder %s154, %s155
    %p167 = scmp.eq.s32.totalorder %s19, 1
    %p168 = por %p166, %p167
    %p170 = scmp.ne.s32.totalorder %s155, %s169
    %p171 = scmp.eq.s32.totalorder %s19, 0
    %p172 = por %p170, %p171
    %s173 = ssub.s32 %s13, %s20
    %p174 = scmp.eq.s32.totalorder %s173, 0
    %s176 = sadd.s32 %s175, 1
    %s177 = scalar_select %p174, %s175, %s176
    %p180 = pneg %p174
    %p181 = scmp.eq.s32.totalorder %s13, 1
    %p182 = por %p180, %p181
    %p183 = scmp.ne.s32.totalorder %s175, %s178
    %p184 = scmp.eq.s32.totalorder %s13, 0
    %p185 = por %p183, %p184
    %p186 = scmp.ne.s32.totalorder %s175, %s178
    %p187 = scmp.eq.s32.totalorder %s18, 1
    %p188 = por %p186, %p187
    %p189 = scmp.ne.s32.totalorder %s178, %s179
    %p190 = scmp.eq.s32.totalorder %s18, 0
    %p191 = por %p189, %p190
    %p192 = scmp.ne.s32.totalorder %s178, %s179
    %p193 = scmp.eq.s32.totalorder %s19, 1
    %p194 = por %p192, %p193
    %p196 = scmp.ne.s32.totalorder %s179, %s195
    %p197 = scmp.eq.s32.totalorder %s19, 0
    %p198 = por %p196, %p197
    %p199 = scmp.le.s32.totalorder 1, %s13
    %p200 = scmp.lt.s32.totalorder %s13, 3
    %p201 = pnand %p199, %p200
    %p202 = pneg %p201
    // Predicated region
    $region9: #{_lambda_.1} parent=5 // pred_check
      _
    $region10: #{_lambda_.1} parent=5 // pred_check_branch
      %204 = sbr.rel (%p201) target = $region12
    $region11: #{_lambda_.1} parent=5 // pred_region
      %s205 = ssub.s32 %s13, 1
      // Predicated region
      $region13: #{_lambda_.1} parent=11 // pred_check
        %p206 = pneg %p60
      $region14: #{_lambda_.1} parent=11 // pred_check_branch
        %208 = sbr.rel (%p206) target = $region16
      $region15: #{_lambda_.1} parent=11 // pred_region
        _
      $region16: #{_lambda_.1} parent=11 // pred_fallthru
        _
      // Predicated region
      $region17: #{_lambda_.1} parent=11 // pred_check
        %p209 = pneg %p81
      $region18: #{_lambda_.1} parent=11 // pred_check_branch
        %211 = sbr.rel (%p209) target = $region20
      $region19: #{_lambda_.1} parent=11 // pred_region
        _
      $region20: #{_lambda_.1} parent=11 // pred_fallthru
        _
      // Predicated region
      $region21: #{_lambda_.1} parent=11 // pred_check
        %p212 = pneg %p102
      $region22: #{_lambda_.1} parent=11 // pred_check_branch
        %214 = sbr.rel (%p212) target = $region24
      $region23: #{_lambda_.1} parent=11 // pred_region
        _
      $region24: #{_lambda_.1} parent=11 // pred_fallthru
        _
      // Predicated region
      $region25: #{_lambda_.1} parent=11 // pred_check
        %p215 = pneg %p123
      $region26: #{_lambda_.1} parent=11 // pred_check_branch
        %217 = sbr.rel (%p215) target = $region28
      $region27: #{_lambda_.1} parent=11 // pred_region
        _
      $region28: #{_lambda_.1} parent=11 // pred_fallthru
        _
      // Predicated region
      $region29: #{_lambda_.1} parent=11 // pred_check
        %p218 = pneg %p144
      $region30: #{_lambda_.1} parent=11 // pred_check_branch
        %220 = sbr.rel (%p218) target = $region32
      $region31: #{_lambda_.1} parent=11 // pred_region
        _
      $region32: #{_lambda_.1} parent=11 // pred_fallthru
        _
      // Predicated region
      $region33: #{_lambda_.1} parent=11 // pred_check
        %p221 = pneg %p165
      $region34: #{_lambda_.1} parent=11 // pred_check_branch
        %223 = sbr.rel (%p221) target = $region36
      $region35: #{_lambda_.1} parent=11 // pred_region
        _
      $region36: #{_lambda_.1} parent=11 // pred_fallthru
        _
    $region12: #{_lambda_.1} parent=5 // pred_fallthru
      _
    %p224 = scmp.lt.s32.totalorder %s13, 2
    // Predicated region
    $region37: #{_lambda_.1} parent=5 // pred_check
      %p225 = pneg %p224
    $region38: #{_lambda_.1} parent=5 // pred_check_branch
      %227 = sbr.rel (%p225) target = $region40
    $region39: #{_lambda_.1} parent=5 // pred_region
      // Predicated region
      $region41: #{_lambda_.1} parent=39 // pred_check
        %p228 = pneg %p33
      $region42: #{_lambda_.1} parent=39 // pred_check_branch
        %230 = sbr.rel (%p228) target = $region44
      $region43: #{_lambda_.1} parent=39 // pred_region
        %s231 = smul.u32 2, %s13
        %p232 = scmp.lt.s32.totalorder %s231, 3
        %s233 = scalar_select %p232, %s231, 3
        %s234 = smul.addr %s233, 8
        %s235 = smul.addr %s234, 8
        %s236 = scalar_lea.vmem %s0, %s235
        %s237 = smul.u32 2, %s13
      $region44: #{_lambda_.1} parent=39 // pred_fallthru
        _
    $region40: #{_lambda_.1} parent=5 // pred_fallthru
      _
    %p238 = scmp.le.s32.totalorder 1, %s13
    %p239 = scmp.lt.s32.totalorder %s13, 3
    %p240 = pnand %p238, %p239
    %p241 = pneg %p240
    // Predicated region
    $region45: #{_lambda_.1} parent=5 // pred_check
      _
    $region46: #{_lambda_.1} parent=5 // pred_check_branch
      %243 = sbr.rel (%p240) target = $region48
    $region47: #{_lambda_.1} parent=5 // pred_region
      %s244 = ssub.s32 %s13, 1
      %s245 = smul.u32 2, %s18
      %p246 = scmp.lt.s32.totalorder %s245, 3
      %s247 = scalar_select %p246, %s245, 3
      %s248 = smul.addr %s247, 8
      %s249 = smul.addr %s248, 8
      %s250 = scalar_lea.vmem %s0, %s249
      %p251 = pneg %p39
      %p252 = pneg %p36
      %p253 = pneg %p60
      %p254 = pneg %p57
      %p255 = pneg %p81
      %p256 = pneg %p78
      %p257 = pneg %p102
      %p258 = pneg %p99
      %p259 = pneg %p123
      %p260 = pneg %p120
      %p261 = pneg %p144
      %p262 = pneg %p141
      %p263 = pneg %p165
      %p264 = pneg %p162
      %p265 = pneg %p191
      %p266 = pneg %p188
      %p267 = scmp.lt.s32.totalorder %s18, 1
      %s268 = scalar_select %p267, %s18, 1
      %s269 = smul.addr %s268, 8
      %s270 = scalar_lea.vmem %s7, %s269
      %s271 = smul.u32 2, %s18
      %p272 = scmp.lt.s32.totalorder %s271, 3
      %s273 = scalar_select %p272, %s271, 3
      %s274 = smul.addr %s273, 8
      %s275 = smul.addr %s274, 8
      %s276 = scalar_lea.vmem %s0, %s275
      %s277 = smul.u32 2, %s18
      %p278 = scmp.lt.s32.totalorder %s18, 1
      %s279 = scalar_select %p278, %s18, 1
      %s280 = smul.addr %s279, 8
      %s281 = scalar_lea.vmem %s7, %s280
      %282 = vst [vmem:[#allocation2] sm:$0xff] 0.0
      %283 = vst [vmem:[#allocation2 + $0x8] sm:$0x1] 0.0
      %284 = vst [vmem:[#allocation2 + $0x50] sm:$0xff] 0.0
      %285 = vst [vmem:[#allocation2 + $0x58] sm:$0x1] 0.0
      %286 = vst [vmem:[#allocation2] sm:$0x1] 0.0
      %287 = vst [vmem:[#allocation2 + $0x10] sm:$0x1] 0.0
      %288 = vst [vmem:[#allocation2 + $0x20] sm:$0x1] 0.0
      %289 = vst [vmem:[#allocation2 + $0x30] sm:$0x1] 0.0
      %290 = vst [vmem:[#allocation2 + $0x40] sm:$0x1] 0.0
      %291 = vst [vmem:[#allocation2 + $0x50] sm:$0x1] 0.0
      %292 = vst [vmem:[#allocation2 + $0x60] sm:$0x1] 0.0
      %293 = vst [vmem:[#allocation2 + $0x70] sm:$0x1] 0.0
      %294 = vst [vmem:[#allocation2 + $0x80] sm:$0x1] 0.0
      %295 = vst [vmem:[#allocation2 + $0x90] sm:$0x1] 0.0
      %296 = vst [vmem:[#allocation2 + $0xa0] sm:$0x1] 0.0
      %297 = vst [vmem:[#allocation2 + $0xb0] sm:$0x1] 0.0
      %298 = vst [vmem:[#allocation2 + $0xc0] sm:$0x1] 0.0
      %299 = vst [vmem:[#allocation2 + $0xd0] sm:$0x1] 0.0
      %300 = vst [vmem:[#allocation2 + $0xe0] sm:$0x1] 0.0
      %301 = vst [vmem:[#allocation2 + $0xf0] sm:$0x1] 0.0
      %302 = vst [vmem:[#allocation2 + $0x100] sm:$0x1] 0.0
      %303 = vst [vmem:[#allocation2 + $0x110] sm:$0x1] 0.0
      %304 = vst [vmem:[#allocation2 + $0x120] sm:$0x1] 0.0
      %305 = vst [vmem:[#allocation2 + $0x130] sm:$0x1] 0.0
      %v306 = vld [vmem:[%s276] sm:$0xff]
      %v307 = vld [vmem:[%s276 + $0x40] sm:$0xff]
      %s308 = scalar_lea.vmem [#allocation2], 160
      %309 = vst [vmem:[%s308 + $0x1] sm:$0xff] %v306
      %310 = vst [vmem:[%s308 + $0x51] sm:$0xff] %v307
      %s311 = scalar_lea.vmem %s276, 8
      %v312 = vld [vmem:[%s311] sm:$0xff]
      %v313 = vld [vmem:[%s311 + $0x40] sm:$0xff]
      %s314 = scalar_lea.vmem [#allocation2], 16
      %315 = vst [vmem:[%s314 + $0x1] sm:$0xff] %v312
      %316 = vst [vmem:[%s314 + $0x51] sm:$0xff] %v313
      %s317 = scalar_lea.vmem %s276, 16
      %v318 = vld [vmem:[%s317] sm:$0xff]
      %v319 = vld [vmem:[%s317 + $0x40] sm:$0xff]
      %s320 = scalar_lea.vmem [#allocation2], 176
      %321 = vst [vmem:[%s320 + $0x1] sm:$0xff] %v318
      %322 = vst [vmem:[%s320 + $0x51] sm:$0xff] %v319
      %s323 = scalar_lea.vmem %s276, 24
      %v324 = vld [vmem:[%s323] sm:$0xff]
      %v325 = vld [vmem:[%s323 + $0x40] sm:$0xff]
      %s326 = scalar_lea.vmem [#allocation2], 32
      %327 = vst [vmem:[%s326 + $0x1] sm:$0xff] %v324
      %328 = vst [vmem:[%s326 + $0x51] sm:$0xff] %v325
      %s329 = scalar_lea.vmem %s276, 32
      %v330 = vld [vmem:[%s329] sm:$0xff]
      %v331 = vld [vmem:[%s329 + $0x40] sm:$0xff]
      %s332 = scalar_lea.vmem [#allocation2], 192
      %333 = vst [vmem:[%s332 + $0x1] sm:$0xff] %v330
      %334 = vst [vmem:[%s332 + $0x51] sm:$0xff] %v331
      %s335 = scalar_lea.vmem %s276, 40
      %v336 = vld [vmem:[%s335] sm:$0xff]
      %v337 = vld [vmem:[%s335 + $0x40] sm:$0xff]
      %s338 = scalar_lea.vmem [#allocation2], 48
      %339 = vst [vmem:[%s338 + $0x1] sm:$0xff] %v336
      %340 = vst [vmem:[%s338 + $0x51] sm:$0xff] %v337
      %s341 = scalar_lea.vmem %s276, 48
      %v342 = vld [vmem:[%s341] sm:$0xff]
      %v343 = vld [vmem:[%s341 + $0x40] sm:$0xff]
      %s344 = scalar_lea.vmem [#allocation2], 208
      %345 = vst [vmem:[%s344 + $0x1] sm:$0xff] %v342
      %346 = vst [vmem:[%s344 + $0x51] sm:$0xff] %v343
      %s347 = scalar_lea.vmem %s276, 56
      %v348 = vld [vmem:[%s347] sm:$0xff]
      %v349 = vld [vmem:[%s347 + $0x40] sm:$0xff]
      %s350 = scalar_lea.vmem [#allocation2], 64
      %351 = vst [vmem:[%s350 + $0x1] sm:$0xff] %v348
      %352 = vst [vmem:[%s350 + $0x51] sm:$0xff] %v349
      %v353 = vld [vmem:[#allocation2] ss:$2 sm:$0xf]
      %s354 = scalar_lea.vmem [#allocation2], 16
      %v355 = vld [vmem:[%s354] ss:$2 sm:$0xf]
      %s356 = scalar_lea.vmem [#allocation2], 32
      %v357 = vld [vmem:[%s356] ss:$2 sm:$0xf]
      %s358 = scalar_lea.vmem [#allocation2], 48
      %v359 = vld [vmem:[%s358] ss:$2 sm:$0xf]
      %s360 = scalar_lea.vmem [#allocation2], 80
      %v361 = vld [vmem:[%s360] ss:$2 sm:$0xf]
      %s362 = scalar_lea.vmem [#allocation2], 96
      %v363 = vld [vmem:[%s362] ss:$2 sm:$0xf]
      %s364 = scalar_lea.vmem [#allocation2], 112
      %v365 = vld [vmem:[%s364] ss:$2 sm:$0xf]
      %s366 = scalar_lea.vmem [#allocation2], 128
      %v367 = vld [vmem:[%s366] ss:$2 sm:$0xf]
      %v368 = vld [vmem:[%s1] sm:$0xff]
      %v369 = vld [vmem:[%s1 + $0x8] sm:$0xff]
      %v370 = vld [vmem:[%s1 + $0x10] sm:$0xff]
      %v371 = vld [vmem:[%s1 + $0x18] sm:$0xff]
      %v372 = vld [vmem:[%s1 + $0x20] sm:$0xff]
      %v373 = vld [vmem:[%s1 + $0x28] sm:$0xff]
      %v374 = vld [vmem:[%s1 + $0x30] sm:$0xff]
      %v375 = vld [vmem:[%s1 + $0x38] sm:$0xff]
      %v376 = vld [vmem:[%s1 + $0x40] sm:$0xff]
      %v377 = vld [vmem:[%s1 + $0x48] sm:$0xff]
      %v378 = vld [vmem:[%s1 + $0x50] sm:$0xff]
      %v379 = vld [vmem:[%s1 + $0x58] sm:$0xff]
      %v380 = vld [vmem:[%s1 + $0x60] sm:$0xff]
      %v381 = vld [vmem:[%s1 + $0x68] sm:$0xff]
      %v382 = vld [vmem:[%s1 + $0x70] sm:$0xff]
      %v383 = vld [vmem:[%s1 + $0x78] sm:$0xff]
      %s384 = scalar_lea.vmem [#allocation2], 1
      %v385 = vld [vmem:[%s384] ss:$2 sm:$0xf]
      %s386 = scalar_lea.vmem [#allocation2], 17
      %v387 = vld [vmem:[%s386] ss:$2 sm:$0xf]
      %s388 = scalar_lea.vmem [#allocation2], 33
      %v389 = vld [vmem:[%s388] ss:$2 sm:$0xf]
      %s390 = scalar_lea.vmem [#allocation2], 49
      %v391 = vld [vmem:[%s390] ss:$2 sm:$0xf]
      %s392 = scalar_lea.vmem [#allocation2], 81
      %v393 = vld [vmem:[%s392] ss:$2 sm:$0xf]
      %s394 = scalar_lea.vmem [#allocation2], 97
      %v395 = vld [vmem:[%s394] ss:$2 sm:$0xf]
      %s396 = scalar_lea.vmem [#allocation2], 113
      %v397 = vld [vmem:[%s396] ss:$2 sm:$0xf]
      %s398 = scalar_lea.vmem [#allocation2], 129
      %v399 = vld [vmem:[%s398] ss:$2 sm:$0xf]
      %s400 = scalar_lea.vmem %s1, 128
      %v401 = vld [vmem:[%s400] sm:$0xff]
      %v402 = vld [vmem:[%s400 + $0x8] sm:$0xff]
      %v403 = vld [vmem:[%s400 + $0x10] sm:$0xff]
      %v404 = vld [vmem:[%s400 + $0x18] sm:$0xff]
      %v405 = vld [vmem:[%s400 + $0x20] sm:$0xff]
      %v406 = vld [vmem:[%s400 + $0x28] sm:$0xff]
      %v407 = vld [vmem:[%s400 + $0x30] sm:$0xff]
      %v408 = vld [vmem:[%s400 + $0x38] sm:$0xff]
      %v409 = vld [vmem:[%s400 + $0x40] sm:$0xff]
      %v410 = vld [vmem:[%s400 + $0x48] sm:$0xff]
      %v411 = vld [vmem:[%s400 + $0x50] sm:$0xff]
      %v412 = vld [vmem:[%s400 + $0x58] sm:$0xff]
      %v413 = vld [vmem:[%s400 + $0x60] sm:$0xff]
      %v414 = vld [vmem:[%s400 + $0x68] sm:$0xff]
      %v415 = vld [vmem:[%s400 + $0x70] sm:$0xff]
      %v416 = vld [vmem:[%s400 + $0x78] sm:$0xff]
      %v425 = vcombine.low %v385, %v387
      %v426 = vcombine.low %v389, %v391
      %v427 = vcombine.low %v393, %v395
      %v428 = vcombine.low %v397, %v399
      %433 = vmatprep.subr.mxu0 0.0
      %434 = vmatpush1.msra.mxu0 %v401
      %435 = vmatprep.subr.mxu0 0.0
      %436 = vmatpush1.msra.mxu0 %v402
      %437 = vmatprep.subr.mxu0 0.0
      %438 = vmatpush1.msra.mxu0 %v403
      %439 = vmatprep.subr.mxu0 0.0
      %440 = vmatpush1.msra.mxu0 %v404
      %441 = vmatprep.subr.mxu0 0.0
      %442 = vmatpush1.msra.mxu0 %v405
      %443 = vmatprep.subr.mxu0 0.0
      %444 = vmatpush1.msra.mxu0 %v406
      %445 = vmatprep.subr.mxu0 0.0
      %446 = vmatpush1.msra.mxu0 %v407
      %447 = vmatprep.subr.mxu0 0.0
      %448 = vmatpush1.msra.mxu0 %v408
      %449 = vmatprep.subr.mxu0 0.0
      %450 = vmatpush1.msra.mxu0 %v409
      %451 = vmatprep.subr.mxu0 0.0
      %452 = vmatpush1.msra.mxu0 %v410
      %453 = vmatprep.subr.mxu0 0.0
      %454 = vmatpush1.msra.mxu0 %v411
      %455 = vmatprep.subr.mxu0 0.0
      %456 = vmatpush1.msra.mxu0 %v412
      %457 = vmatprep.subr.mxu0 0.0
      %458 = vmatpush1.msra.mxu0 %v413
      %459 = vmatprep.subr.mxu0 0.0
      %460 = vmatpush1.msra.mxu0 %v414
      %461 = vmatprep.subr.mxu0 0.0
      %462 = vmatpush1.msra.mxu0 %v415
      %463 = vmatprep.subr.mxu0 0.0
      %464 = vmatpush1.msra.mxu0 %v416
      %465 = vmatprep.subr.mxu0 0.0
      %466 = vmatpush1.msra.mxu0 0.0
      %467 = vmatprep.subr.mxu0 0.0
      %468 = vmatpush1.msra.mxu0 0.0
      %469 = vmatprep.subr.mxu0 0.0
      %470 = vmatpush1.msra.mxu0 0.0
      %471 = vmatprep.subr.mxu0 0.0
      %472 = vmatpush1.msra.mxu0 0.0
      %473 = vmatprep.subr.mxu0 0.0
      %474 = vmatpush1.msra.mxu0 0.0
      %475 = vmatprep.subr.mxu0 0.0
      %476 = vmatpush1.msra.mxu0 0.0
      %477 = vmatprep.subr.mxu0 0.0
      %478 = vmatpush1.msra.mxu0 0.0
      %479 = vmatprep.subr.mxu0 0.0
      %480 = vmatpush1.msra.mxu0 0.0
      %481 = vmatprep.subr.mxu0 0.0
      %482 = vmatpush1.msra.mxu0 0.0
      %483 = vmatprep.subr.mxu0 0.0
      %484 = vmatpush1.msra.mxu0 0.0
      %485 = vmatprep.subr.mxu0 0.0
      %486 = vmatpush1.msra.mxu0 0.0
      %487 = vmatprep.subr.mxu0 0.0
      %488 = vmatpush1.msra.mxu0 0.0
      %489 = vmatprep.subr.mxu0 0.0
      %490 = vmatpush1.msra.mxu0 0.0
      %491 = vmatprep.subr.mxu0 0.0
      %492 = vmatpush1.msra.mxu0 0.0
      %493 = vmatprep.subr.mxu0 0.0
      %494 = vmatpush1.msra.mxu0 0.0
      %495 = vmatprep.subr.mxu0 0.0
      %496 = vmatpush1.msra.mxu0 0.0
      %497 = vmatprep.mubr.f32.mxu0 0.0
      %498 = vmatmul.mubr.f32.gmra.mrb[0].mxu0 %v425
      %v499 = vpop.f32.mrb[0].mxu0
      %v500 = vadd.f32 0.0, %v499
      %v501 = vpop.f32.mrb[0].mxu0
      %502 = vmatprep.mubr.f32.mxu0 0.0
      %503 = vmatmul.mubr.f32.gmra.mrb[0].mxu0 %v426
      %v504 = vpop.f32.mrb[0].mxu0
      %v505 = vadd.f32 0.0, %v504
      %v506 = vpop.f32.mrb[0].mxu0
      %507 = vmatprep.mubr.f32.mxu0 0.0
      %508 = vmatmul.mubr.f32.gmra.mrb[0].mxu0 %v427
      %v509 = vpop.f32.mrb[0].mxu0
      %v510 = vadd.f32 0.0, %v509
      %v511 = vpop.f32.mrb[0].mxu0
      %512 = vmatprep.mubr.f32.mxu0 0.0
      %513 = vmatmul.mubr.f32.gmra.mrb[0].mxu0 %v428
      %v514 = vpop.f32.mrb[0].mxu0
      %v515 = vadd.f32 0.0, %v514
      %v516 = vpop.f32.mrb[0].mxu0
      %517 = vdwg.mxu0
      %v526 = vcombine.low %v353, %v355
      %v527 = vcombine.low %v357, %v359
      %v528 = vcombine.low %v361, %v363
      %v529 = vcombine.low %v365, %v367
      %534 = vmatprep.subr.mxu0 0.0
      %535 = vmatpush1.msra.mxu0 %v368
      %536 = vmatprep.subr.mxu0 0.0
      %537 = vmatpush1.msra.mxu0 %v369
      %538 = vmatprep.subr.mxu0 0.0
      %539 = vmatpush1.msra.mxu0 %v370
      %540 = vmatprep.subr.mxu0 0.0
      %541 = vmatpush1.msra.mxu0 %v371
      %542 = vmatprep.subr.mxu0 0.0
      %543 = vmatpush1.msra.mxu0 %v372
      %544 = vmatprep.subr.mxu0 0.0
      %545 = vmatpush1.msra.mxu0 %v373
      %546 = vmatprep.subr.mxu0 0.0
      %547 = vmatpush1.msra.mxu0 %v374
      %548 = vmatprep.subr.mxu0 0.0
      %549 = vmatpush1.msra.mxu0 %v375
      %550 = vmatprep.subr.mxu0 0.0
      %551 = vmatpush1.msra.mxu0 %v376
      %552 = vmatprep.subr.mxu0 0.0
      %553 = vmatpush1.msra.mxu0 %v377
      %554 = vmatprep.subr.mxu0 0.0
      %555 = vmatpush1.msra.mxu0 %v378
      %556 = vmatprep.subr.mxu0 0.0
      %557 = vmatpush1.msra.mxu0 %v379
      %558 = vmatprep.subr.mxu0 0.0
      %559 = vmatpush1.msra.mxu0 %v380
      %560 = vmatprep.subr.mxu0 0.0
      %561 = vmatpush1.msra.mxu0 %v381
      %562 = vmatprep.subr.mxu0 0.0
      %563 = vmatpush1.msra.mxu0 %v382
      %564 = vmatprep.subr.mxu0 0.0
      %565 = vmatpush1.msra.mxu0 %v383
      %566 = vmatprep.subr.mxu0 0.0
      %567 = vmatpush1.msra.mxu0 0.0
      %568 = vmatprep.subr.mxu0 0.0
      %569 = vmatpush1.msra.mxu0 0.0
      %570 = vmatprep.subr.mxu0 0.0
      %571 = vmatpush1.msra.mxu0 0.0
      %572 = vmatprep.subr.mxu0 0.0
      %573 = vmatpush1.msra.mxu0 0.0
      %574 = vmatprep.subr.mxu0 0.0
      %575 = vmatpush1.msra.mxu0 0.0
      %576 = vmatprep.subr.mxu0 0.0
      %577 = vmatpush1.msra.mxu0 0.0
      %578 = vmatprep.subr.mxu0 0.0
      %579 = vmatpush1.msra.mxu0 0.0
      %580 = vmatprep.subr.mxu0 0.0
      %581 = vmatpush1.msra.mxu0 0.0
      %582 = vmatprep.subr.mxu0 0.0
      %583 = vmatpush1.msra.mxu0 0.0
      %584 = vmatprep.subr.mxu0 0.0
      %585 = vmatpush1.msra.mxu0 0.0
      %586 = vmatprep.subr.mxu0 0.0
      %587 = vmatpush1.msra.mxu0 0.0
      %588 = vmatprep.subr.mxu0 0.0
      %589 = vmatpush1.msra.mxu0 0.0
      %590 = vmatprep.subr.mxu0 0.0
      %591 = vmatpush1.msra.mxu0 0.0
      %592 = vmatprep.subr.mxu0 0.0
      %593 = vmatpush1.msra.mxu0 0.0
      %594 = vmatprep.subr.mxu0 0.0
      %595 = vmatpush1.msra.mxu0 0.0
      %596 = vmatprep.subr.mxu0 0.0
      %597 = vmatpush1.msra.mxu0 0.0
      %598 = vmatprep.mubr.f32.mxu0 0.0
      %599 = vmatmul.mubr.f32.gmra.mrb[0].mxu0 %v526
      %v600 = vpop.f32.mrb[0].mxu0
      %v601 = vadd.f32 %v500, %v600
      %v602 = vpop.f32.mrb[0].mxu0
      %603 = vmatprep.mubr.f32.mxu0 0.0
      %604 = vmatmul.mubr.f32.gmra.mrb[0].mxu0 %v527
      %v605 = vpop.f32.mrb[0].mxu0
      %v606 = vadd.f32 %v505, %v605
      %v607 = vpop.f32.mrb[0].mxu0
      %608 = vmatprep.mubr.f32.mxu0 0.0
      %609 = vmatmul.mubr.f32.gmra.mrb[0].mxu0 %v528
      %v610 = vpop.f32.mrb[0].mxu0
      %v611 = vadd.f32 %v510, %v610
      %v612 = vpop.f32.mrb[0].mxu0
      %613 = vmatprep.mubr.f32.mxu0 0.0
      %614 = vmatmul.mubr.f32.gmra.mrb[0].mxu0 %v529
      %v615 = vpop.f32.mrb[0].mxu0
      %v616 = vadd.f32 %v515, %v615
      %v617 = vpop.f32.mrb[0].mxu0
      %618 = vdwg.mxu0
      %s619 = scalar_lea.vmem [#allocation2], 2
      %v620 = vld [vmem:[%s619] ss:$2 sm:$0xf]
      %s621 = scalar_lea.vmem [#allocation2], 18
      %v622 = vld [vmem:[%s621] ss:$2 sm:$0xf]
      %s623 = scalar_lea.vmem [#allocation2], 34
      %v624 = vld [vmem:[%s623] ss:$2 sm:$0xf]
      %s625 = scalar_lea.vmem [#allocation2], 50
      %v626 = vld [vmem:[%s625] ss:$2 sm:$0xf]
      %s627 = scalar_lea.vmem [#allocation2], 82
      %v628 = vld [vmem:[%s627] ss:$2 sm:$0xf]
      %s629 = scalar_lea.vmem [#allocation2], 98
      %v630 = vld [vmem:[%s629] ss:$2 sm:$0xf]
      %s631 = scalar_lea.vmem [#allocation2], 114
      %v632 = vld [vmem:[%s631] ss:$2 sm:$0xf]
      %s633 = scalar_lea.vmem [#allocation2], 130
      %v634 = vld [vmem:[%s633] ss:$2 sm:$0xf]
      %s635 = scalar_lea.vmem %s1, 256
      %v636 = vld [vmem:[%s635] sm:$0xff]
      %v637 = vld [vmem:[%s635 + $0x8] sm:$0xff]
      %v638 = vld [vmem:[%s635 + $0x10] sm:$0xff]
      %v639 = vld [vmem:[%s635 + $0x18] sm:$0xff]
      %v640 = vld [vmem:[%s635 + $0x20] sm:$0xff]
      %v641 = vld [vmem:[%s635 + $0x28] sm:$0xff]
      %v642 = vld [vmem:[%s635 + $0x30] sm:$0xff]
      %v643 = vld [vmem:[%s635 + $0x38] sm:$0xff]
      %v644 = vld [vmem:[%s635 + $0x40] sm:$0xff]
      %v645 = vld [vmem:[%s635 + $0x48] sm:$0xff]
      %v646 = vld [vmem:[%s635 + $0x50] sm:$0xff]
      %v647 = vld [vmem:[%s635 + $0x58] sm:$0xff]
      %v648 = vld [vmem:[%s635 + $0x60] sm:$0xff]
      %v649 = vld [vmem:[%s635 + $0x68] sm:$0xff]
      %v650 = vld [vmem:[%s635 + $0x70] sm:$0xff]
      %v651 = vld [vmem:[%s635 + $0x78] sm:$0xff]
      %v660 = vcombine.low %v620, %v622
      %v661 = vcombine.low %v624, %v626
      %v662 = vcombine.low %v628, %v630
      %v663 = vcombine.low %v632, %v634
      %668 = vmatprep.subr.mxu0 0.0
      %669 = vmatpush1.msra.mxu0 %v636
      %670 = vmatprep.subr.mxu0 0.0
      %671 = vmatpush1.msra.mxu0 %v637
      %672 = vmatprep.subr.mxu0 0.0
      %673 = vmatpush1.msra.mxu0 %v638
      %674 = vmatprep.subr.mxu0 0.0
      %675 = vmatpush1.msra.mxu0 %v639
      %676 = vmatprep.subr.mxu0 0.0
      %677 = vmatpush1.msra.mxu0 %v640
      %678 = vmatprep.subr.mxu0 0.0
      %679 = vmatpush1.msra.mxu0 %v641
      %680 = vmatprep.subr.mxu0 0.0
      %681 = vmatpush1.msra.mxu0 %v642
      %682 = vmatprep.subr.mxu0 0.0
      %683 = vmatpush1.msra.mxu0 %v643
      %684 = vmatprep.subr.mxu0 0.0
      %685 = vmatpush1.msra.mxu0 %v644
      %686 = vmatprep.subr.mxu0 0.0
      %687 = vmatpush1.msra.mxu0 %v645
      %688 = vmatprep.subr.mxu0 0.0
      %689 = vmatpush1.msra.mxu0 %v646
      %690 = vmatprep.subr.mxu0 0.0
      %691 = vmatpush1.msra.mxu0 %v647
      %692 = vmatprep.subr.mxu0 0.0
      %693 = vmatpush1.msra.mxu0 %v648
      %694 = vmatprep.subr.mxu0 0.0
      %695 = vmatpush1.msra.mxu0 %v649
      %696 = vmatprep.subr.mxu0 0.0
      %697 = vmatpush1.msra.mxu0 %v650
      %698 = vmatprep.subr.mxu0 0.0
      %699 = vmatpush1.msra.mxu0 %v651
      %700 = vmatprep.subr.mxu0 0.0
      %701 = vmatpush1.msra.mxu0 0.0
      %702 = vmatprep.subr.mxu0 0.0
      %703 = vmatpush1.msra.mxu0 0.0
      %704 = vmatprep.subr.mxu0 0.0
      %705 = vmatpush1.msra.mxu0 0.0
      %706 = vmatprep.subr.mxu0 0.0
      %707 = vmatpush1.msra.mxu0 0.0
      %708 = vmatprep.subr.mxu0 0.0
      %709 = vmatpush1.msra.mxu0 0.0
      %710 = vmatprep.subr.mxu0 0.0
      %711 = vmatpush1.msra.mxu0 0.0
      %712 = vmatprep.subr.mxu0 0.0
      %713 = vmatpush1.msra.mxu0 0.0
      %714 = vmatprep.subr.mxu0 0.0
      %715 = vmatpush1.msra.mxu0 0.0
      %716 = vmatprep.subr.mxu0 0.0
      %717 = vmatpush1.msra.mxu0 0.0
      %718 = vmatprep.subr.mxu0 0.0
      %719 = vmatpush1.msra.mxu0 0.0
      %720 = vmatprep.subr.mxu0 0.0
      %721 = vmatpush1.msra.mxu0 0.0
      %722 = vmatprep.subr.mxu0 0.0
      %723 = vmatpush1.msra.mxu0 0.0
      %724 = vmatprep.subr.mxu0 0.0
      %725 = vmatpush1.msra.mxu0 0.0
      %726 = vmatprep.subr.mxu0 0.0
      %727 = vmatpush1.msra.mxu0 0.0
      %728 = vmatprep.subr.mxu0 0.0
      %729 = vmatpush1.msra.mxu0 0.0
      %730 = vmatprep.subr.mxu0 0.0
      %731 = vmatpush1.msra.mxu0 0.0
      %732 = vmatprep.mubr.f32.mxu0 0.0
      %733 = vmatmul.mubr.f32.gmra.mrb[0].mxu0 %v660
      %v734 = vpop.f32.mrb[0].mxu0
      %v735 = vadd.f32 0.0, %v734
      %v736 = vpop.f32.mrb[0].mxu0
      %737 = vmatprep.mubr.f32.mxu0 0.0
      %738 = vmatmul.mubr.f32.gmra.mrb[0].mxu0 %v661
      %v739 = vpop.f32.mrb[0].mxu0
      %v740 = vadd.f32 0.0, %v739
      %v741 = vpop.f32.mrb[0].mxu0
      %742 = vmatprep.mubr.f32.mxu0 0.0
      %743 = vmatmul.mubr.f32.gmra.mrb[0].mxu0 %v662
      %v744 = vpop.f32.mrb[0].mxu0
      %v745 = vadd.f32 0.0, %v744
      %v746 = vpop.f32.mrb[0].mxu0
      %747 = vmatprep.mubr.f32.mxu0 0.0
      %748 = vmatmul.mubr.f32.gmra.mrb[0].mxu0 %v663
      %v749 = vpop.f32.mrb[0].mxu0
      %v750 = vadd.f32 0.0, %v749
      %v751 = vpop.f32.mrb[0].mxu0
      %752 = vdwg.mxu0
      %v753 = vadd.f32 %v601, %v735
      %v754 = vadd.f32 %v606, %v740
      %v755 = vadd.f32 %v611, %v745
      %v756 = vadd.f32 %v616, %v750
      %v757 = vld [vmem:[%s308] ss:$2 sm:$0xf]
      %s758 = scalar_lea.vmem %s308, 16 [#allocation2]
      %v759 = vld [vmem:[%s758] ss:$2 sm:$0xf]
      %s760 = scalar_lea.vmem %s308, 32 [#allocation2]
      %v761 = vld [vmem:[%s760] ss:$2 sm:$0xf]
      %s762 = scalar_lea.vmem %s308, 48 [#allocation2]
      %v763 = vld [vmem:[%s762] ss:$2 sm:$0xf]
      %s764 = scalar_lea.vmem %s308, 80 [#allocation2]
      %v765 = vld [vmem:[%s764] ss:$2 sm:$0xf]
      %s766 = scalar_lea.vmem %s308, 96 [#allocation2]
      %v767 = vld [vmem:[%s766] ss:$2 sm:$0xf]
      %s768 = scalar_lea.vmem %s308, 112 [#allocation2]
      %v769 = vld [vmem:[%s768] ss:$2 sm:$0xf]
      %s770 = scalar_lea.vmem %s308, 128 [#allocation2]
      %v771 = vld [vmem:[%s770] ss:$2 sm:$0xf]
      %s772 = scalar_lea.vmem %s1, 384
      %v773 = vld [vmem:[%s772] sm:$0xff]
      %v774 = vld [vmem:[%s772 + $0x8] sm:$0xff]
      %v775 = vld [vmem:[%s772 + $0x10] sm:$0xff]
      %v776 = vld [vmem:[%s772 + $0x18] sm:$0xff]
      %v777 = vld [vmem:[%s772 + $0x20] sm:$0xff]
      %v778 = vld [vmem:[%s772 + $0x28] sm:$0xff]
      %v779 = vld [vmem:[%s772 + $0x30] sm:$0xff]
      %v780 = vld [vmem:[%s772 + $0x38] sm:$0xff]
      %v781 = vld [vmem:[%s772 + $0x40] sm:$0xff]
      %v782 = vld [vmem:[%s772 + $0x48] sm:$0xff]
      %v783 = vld [vmem:[%s772 + $0x50] sm:$0xff]
      %v784 = vld [vmem:[%s772 + $0x58] sm:$0xff]
      %v785 = vld [vmem:[%s772 + $0x60] sm:$0xff]
      %v786 = vld [vmem:[%s772 + $0x68] sm:$0xff]
      %v787 = vld [vmem:[%s772 + $0x70] sm:$0xff]
      %v788 = vld [vmem:[%s772 + $0x78] sm:$0xff]
      %v797 = vcombine.low %v757, %v759
      %v798 = vcombine.low %v761, %v763
      %v799 = vcombine.low %v765, %v767
      %v800 = vcombine.low %v769, %v771
      %805 = vmatprep.subr.mxu0 0.0
      %806 = vmatpush1.msra.mxu0 %v773
      %807 = vmatprep.subr.mxu0 0.0
      %808 = vmatpush1.msra.mxu0 %v774
      %809 = vmatprep.subr.mxu0 0.0
      %810 = vmatpush1.msra.mxu0 %v775
      %811 = vmatprep.subr.mxu0 0.0
      %812 = vmatpush1.msra.mxu0 %v776
      %813 = vmatprep.subr.mxu0 0.0
      %814 = vmatpush1.msra.mxu0 %v777
      %815 = vmatprep.subr.mxu0 0.0
      %816 = vmatpush1.msra.mxu0 %v778
      %817 = vmatprep.subr.mxu0 0.0
      %818 = vmatpush1.msra.mxu0 %v779
      %819 = vmatprep.subr.mxu0 0.0
      %820 = vmatpush1.msra.mxu0 %v780
      %821 = vmatprep.subr.mxu0 0.0
      %822 = vmatpush1.msra.mxu0 %v781
      %823 = vmatprep.subr.mxu0 0.0
      %824 = vmatpush1.msra.mxu0 %v782
      %825 = vmatprep.subr.mxu0 0.0
      %826 = vmatpush1.msra.mxu0 %v783
      %827 = vmatprep.subr.mxu0 0.0
      %828 = vmatpush1.msra.mxu0 %v784
      %829 = vmatprep.subr.mxu0 0.0
      %830 = vmatpush1.msra.mxu0 %v785
      %831 = vmatprep.subr.mxu0 0.0
      %832 = vmatpush1.msra.mxu0 %v786
      %833 = vmatprep.subr.mxu0 0.0
      %834 = vmatpush1.msra.mxu0 %v787
      %835 = vmatprep.subr.mxu0 0.0
      %836 = vmatpush1.msra.mxu0 %v788
      %837 = vmatprep.subr.mxu0 0.0
      %838 = vmatpush1.msra.mxu0 0.0
      %839 = vmatprep.subr.mxu0 0.0
      %840 = vmatpush1.msra.mxu0 0.0
      %841 = vmatprep.subr.mxu0 0.0
      %842 = vmatpush1.msra.mxu0 0.0
      %843 = vmatprep.subr.mxu0 0.0
      %844 = vmatpush1.msra.mxu0 0.0
      %845 = vmatprep.subr.mxu0 0.0
      %846 = vmatpush1.msra.mxu0 0.0
      %847 = vmatprep.subr.mxu0 0.0
      %848 = vmatpush1.msra.mxu0 0.0
      %849 = vmatprep.subr.mxu0 0.0
      %850 = vmatpush1.msra.mxu0 0.0
      %851 = vmatprep.subr.mxu0 0.0
      %852 = vmatpush1.msra.mxu0 0.0
      %853 = vmatprep.subr.mxu0 0.0
      %854 = vmatpush1.msra.mxu0 0.0
      %855 = vmatprep.subr.mxu0 0.0
      %856 = vmatpush1.msra.mxu0 0.0
      %857 = vmatprep.subr.mxu0 0.0
      %858 = vmatpush1.msra.mxu0 0.0
      %859 = vmatprep.subr.mxu0 0.0
      %860 = vmatpush1.msra.mxu0 0.0
      %861 = vmatprep.subr.mxu0 0.0
      %862 = vmatpush1.msra.mxu0 0.0
      %863 = vmatprep.subr.mxu0 0.0
      %864 = vmatpush1.msra.mxu0 0.0
      %865 = vmatprep.subr.mxu0 0.0
      %866 = vmatpush1.msra.mxu0 0.0
      %867 = vmatprep.subr.mxu0 0.0
      %868 = vmatpush1.msra.mxu0 0.0
      %869 = vmatprep.mubr.f32.mxu0 0.0
      %870 = vmatmul.mubr.f32.gmra.mrb[0].mxu0 %v797
      %v871 = vpop.f32.mrb[0].mxu0
      %v872 = vadd.f32 0.0, %v871
      %v873 = vpop.f32.mrb[0].mxu0
      %874 = vmatprep.mubr.f32.mxu0 0.0
      %875 = vmatmul.mubr.f32.gmra.mrb[0].mxu0 %v798
      %v876 = vpop.f32.mrb[0].mxu0
      %v877 = vadd.f32 0.0, %v876
      %v878 = vpop.f32.mrb[0].mxu0
      %879 = vmatprep.mubr.f32.mxu0 0.0
      %880 = vmatmul.mubr.f32.gmra.mrb[0].mxu0 %v799
      %v881 = vpop.f32.mrb[0].mxu0
      %v882 = vadd.f32 0.0, %v881
      %v883 = vpop.f32.mrb[0].mxu0
      %884 = vmatprep.mubr.f32.mxu0 0.0
      %885 = vmatmul.mubr.f32.gmra.mrb[0].mxu0 %v800
      %v886 = vpop.f32.mrb[0].mxu0
      %v887 = vadd.f32 0.0, %v886
      %v888 = vpop.f32.mrb[0].mxu0
      %889 = vdwg.mxu0
      %v890 = vadd.f32 %v753, %v872
      %v891 = vadd.f32 %v754, %v877
      %v892 = vadd.f32 %v755, %v882
      %v893 = vadd.f32 %v756, %v887
      %s894 = scalar_lea.vmem %s308, 1 [#allocation2]
      %v895 = vld [vmem:[%s894] ss:$2 sm:$0xf]
      %s896 = scalar_lea.vmem %s308, 17 [#allocation2]
      %v897 = vld [vmem:[%s896] ss:$2 sm:$0xf]
      %s898 = scalar_lea.vmem %s308, 33 [#allocation2]
      %v899 = vld [vmem:[%s898] ss:$2 sm:$0xf]
      %s900 = scalar_lea.vmem %s308, 49 [#allocation2]
      %v901 = vld [vmem:[%s900] ss:$2 sm:$0xf]
      %s902 = scalar_lea.vmem %s308, 81 [#allocation2]
      %v903 = vld [vmem:[%s902] ss:$2 sm:$0xf]
      %s904 = scalar_lea.vmem %s308, 97 [#allocation2]
      %v905 = vld [vmem:[%s904] ss:$2 sm:$0xf]
      %s906 = scalar_lea.vmem %s308, 113 [#allocation2]
      %v907 = vld [vmem:[%s906] ss:$2 sm:$0xf]
      %s908 = scalar_lea.vmem %s308, 129 [#allocation2]
      %v909 = vld [vmem:[%s908] ss:$2 sm:$0xf]
      %s910 = scalar_lea.vmem %s1, 512
      %v911 = vld [vmem:[%s910] sm:$0xff]
      %v912 = vld [vmem:[%s910 + $0x8] sm:$0xff]
      %v913 = vld [vmem:[%s910 + $0x10] sm:$0xff]
      %v914 = vld [vmem:[%s910 + $0x18] sm:$0xff]
      %v915 = vld [vmem:[%s910 + $0x20] sm:$0xff]
      %v916 = vld [vmem:[%s910 + $0x28] sm:$0xff]
      %v917 = vld [vmem:[%s910 + $0x30] sm:$0xff]
      %v918 = vld [vmem:[%s910 + $0x38] sm:$0xff]
      %v919 = vld [vmem:[%s910 + $0x40] sm:$0xff]
      %v920 = vld [vmem:[%s910 + $0x48] sm:$0xff]
      %v921 = vld [vmem:[%s910 + $0x50] sm:$0xff]
      %v922 = vld [vmem:[%s910 + $0x58] sm:$0xff]
      %v923 = vld [vmem:[%s910 + $0x60] sm:$0xff]
      %v924 = vld [vmem:[%s910 + $0x68] sm:$0xff]
      %v925 = vld [vmem:[%s910 + $0x70] sm:$0xff]
      %v926 = vld [vmem:[%s910 + $0x78] sm:$0xff]
      %v935 = vcombine.low %v895, %v897
      %v936 = vcombine.low %v899, %v901
      %v937 = vcombine.low %v903, %v905
      %v938 = vcombine.low %v907, %v909
      %943 = vmatprep.subr.mxu0 0.0
      %944 = vmatpush1.msra.mxu0 %v911
      %945 = vmatprep.subr.mxu0 0.0
      %946 = vmatpush1.msra.mxu0 %v912
      %947 = vmatprep.subr.mxu0 0.0
      %948 = vmatpush1.msra.mxu0 %v913
      %949 = vmatprep.subr.mxu0 0.0
      %950 = vmatpush1.msra.mxu0 %v914
      %951 = vmatprep.subr.mxu0 0.0
      %952 = vmatpush1.msra.mxu0 %v915
      %953 = vmatprep.subr.mxu0 0.0
      %954 = vmatpush1.msra.mxu0 %v916
      %955 = vmatprep.subr.mxu0 0.0
      %956 = vmatpush1.msra.mxu0 %v917
      %957 = vmatprep.subr.mxu0 0.0
      %958 = vmatpush1.msra.mxu0 %v918
      %959 = vmatprep.subr.mxu0 0.0
      %960 = vmatpush1.msra.mxu0 %v919
      %961 = vmatprep.subr.mxu0 0.0
      %962 = vmatpush1.msra.mxu0 %v920
      %963 = vmatprep.subr.mxu0 0.0
      %964 = vmatpush1.msra.mxu0 %v921
      %965 = vmatprep.subr.mxu0 0.0
      %966 = vmatpush1.msra.mxu0 %v922
      %967 = vmatprep.subr.mxu0 0.0
      %968 = vmatpush1.msra.mxu0 %v923
      %969 = vmatprep.subr.mxu0 0.0
      %970 = vmatpush1.msra.mxu0 %v924
      %971 = vmatprep.subr.mxu0 0.0
      %972 = vmatpush1.msra.mxu0 %v925
      %973 = vmatprep.subr.mxu0 0.0
      %974 = vmatpush1.msra.mxu0 %v926
      %975 = vmatprep.subr.mxu0 0.0
      %976 = vmatpush1.msra.mxu0 0.0
      %977 = vmatprep.subr.mxu0 0.0
      %978 = vmatpush1.msra.mxu0 0.0
      %979 = vmatprep.subr.mxu0 0.0
      %980 = vmatpush1.msra.mxu0 0.0
      %981 = vmatprep.subr.mxu0 0.0
      %982 = vmatpush1.msra.mxu0 0.0
      %983 = vmatprep.subr.mxu0 0.0
      %984 = vmatpush1.msra.mxu0 0.0
      %985 = vmatprep.subr.mxu0 0.0
      %986 = vmatpush1.msra.mxu0 0.0
      %987 = vmatprep.subr.mxu0 0.0
      %988 = vmatpush1.msra.mxu0 0.0
      %989 = vmatprep.subr.mxu0 0.0
      %990 = vmatpush1.msra.mxu0 0.0
      %991 = vmatprep.subr.mxu0 0.0
      %992 = vmatpush1.msra.mxu0 0.0
      %993 = vmatprep.subr.mxu0 0.0
      %994 = vmatpush1.msra.mxu0 0.0
      %995 = vmatprep.subr.mxu0 0.0
      %996 = vmatpush1.msra.mxu0 0.0
      %997 = vmatprep.subr.mxu0 0.0
      %998 = vmatpush1.msra.mxu0 0.0
      %999 = vmatprep.subr.mxu0 0.0
      %1000 = vmatpush1.msra.mxu0 0.0
      %1001 = vmatprep.subr.mxu0 0.0
      %1002 = vmatpush1.msra.mxu0 0.0
      %1003 = vmatprep.subr.mxu0 0.0
      %1004 = vmatpush1.msra.mxu0 0.0
      %1005 = vmatprep.subr.mxu0 0.0
      %1006 = vmatpush1.msra.mxu0 0.0
      %1007 = vmatprep.mubr.f32.mxu0 0.0
      %1008 = vmatmul.mubr.f32.gmra.mrb[0].mxu0 %v935
      %v1009 = vpop.f32.mrb[0].mxu0
      %v1010 = vadd.f32 0.0, %v1009
      %v1011 = vpop.f32.mrb[0].mxu0
      %1012 = vmatprep.mubr.f32.mxu0 0.0
      %1013 = vmatmul.mubr.f32.gmra.mrb[0].mxu0 %v936
      %v1014 = vpop.f32.mrb[0].mxu0
      %v1015 = vadd.f32 0.0, %v1014
      %v1016 = vpop.f32.mrb[0].mxu0
      %1017 = vmatprep.mubr.f32.mxu0 0.0
      %1018 = vmatmul.mubr.f32.gmra.mrb[0].mxu0 %v937
      %v1019 = vpop.f32.mrb[0].mxu0
      %v1020 = vadd.f32 0.0, %v1019
      %v1021 = vpop.f32.mrb[0].mxu0
      %1022 = vmatprep.mubr.f32.mxu0 0.0
      %1023 = vmatmul.mubr.f32.gmra.mrb[0].mxu0 %v938
      %v1024 = vpop.f32.mrb[0].mxu0
      %v1025 = vadd.f32 0.0, %v1024
      %v1026 = vpop.f32.mrb[0].mxu0
      %1027 = vdwg.mxu0
      %v1028 = vadd.f32 %v890, %v1010
      %v1029 = vadd.f32 %v891, %v1015
      %v1030 = vadd.f32 %v892, %v1020
      %v1031 = vadd.f32 %v893, %v1025
      %s1032 = scalar_lea.vmem %s308, 2 [#allocation2]
      %v1033 = vld [vmem:[%s1032] ss:$2 sm:$0xf]
      %s1034 = scalar_lea.vmem %s308, 18 [#allocation2]
      %v1035 = vld [vmem:[%s1034] ss:$2 sm:$0xf]
      %s1036 = scalar_lea.vmem %s308, 34 [#allocation2]
      %v1037 = vld [vmem:[%s1036] ss:$2 sm:$0xf]
      %s1038 = scalar_lea.vmem %s308, 50 [#allocation2]
      %v1039 = vld [vmem:[%s1038] ss:$2 sm:$0xf]
      %s1040 = scalar_lea.vmem %s308, 82 [#allocation2]
      %v1041 = vld [vmem:[%s1040] ss:$2 sm:$0xf]
      %s1042 = scalar_lea.vmem %s308, 98 [#allocation2]
      %v1043 = vld [vmem:[%s1042] ss:$2 sm:$0xf]
      %s1044 = scalar_lea.vmem %s308, 114 [#allocation2]
      %v1045 = vld [vmem:[%s1044] ss:$2 sm:$0xf]
      %s1046 = scalar_lea.vmem %s308, 130 [#allocation2]
      %v1047 = vld [vmem:[%s1046] ss:$2 sm:$0xf]
      %s1048 = scalar_lea.vmem %s1, 640
      %v1049 = vld [vmem:[%s1048] sm:$0xff]
      %v1050 = vld [vmem:[%s1048 + $0x8] sm:$0xff]
      %v1051 = vld [vmem:[%s1048 + $0x10] sm:$0xff]
      %v1052 = vld [vmem:[%s1048 + $0x18] sm:$0xff]
      %v1053 = vld [vmem:[%s1048 + $0x20] sm:$0xff]
      %v1054 = vld [vmem:[%s1048 + $0x28] sm:$0xff]
      %v1055 = vld [vmem:[%s1048 + $0x30] sm:$0xff]
      %v1056 = vld [vmem:[%s1048 + $0x38] sm:$0xff]
      %v1057 = vld [vmem:[%s1048 + $0x40] sm:$0xff]
      %v1058 = vld [vmem:[%s1048 + $0x48] sm:$0xff]
      %v1059 = vld [vmem:[%s1048 + $0x50] sm:$0xff]
      %v1060 = vld [vmem:[%s1048 + $0x58] sm:$0xff]
      %v1061 = vld [vmem:[%s1048 + $0x60] sm:$0xff]
      %v1062 = vld [vmem:[%s1048 + $0x68] sm:$0xff]
      %v1063 = vld [vmem:[%s1048 + $0x70] sm:$0xff]
      %v1064 = vld [vmem:[%s1048 + $0x78] sm:$0xff]
      %v1073 = vcombine.low %v1033, %v1035
      %v1074 = vcombine.low %v1037, %v1039
      %v1075 = vcombine.low %v1041, %v1043
      %v1076 = vcombine.low %v1045, %v1047
      %1081 = vmatprep.subr.mxu0 0.0
      %1082 = vmatpush1.msra.mxu0 %v1049
      %1083 = vmatprep.subr.mxu0 0.0
      %1084 = vmatpush1.msra.mxu0 %v1050
      %1085 = vmatprep.subr.mxu0 0.0
      %1086 = vmatpush1.msra.mxu0 %v1051
      %1087 = vmatprep.subr.mxu0 0.0
      %1088 = vmatpush1.msra.mxu0 %v1052
      %1089 = vmatprep.subr.mxu0 0.0
      %1090 = vmatpush1.msra.mxu0 %v1053
      %1091 = vmatprep.subr.mxu0 0.0
      %1092 = vmatpush1.msra.mxu0 %v1054
      %1093 = vmatprep.subr.mxu0 0.0
      %1094 = vmatpush1.msra.mxu0 %v1055
      %1095 = vmatprep.subr.mxu0 0.0
      %1096 = vmatpush1.msra.mxu0 %v1056
      %1097 = vmatprep.subr.mxu0 0.0
      %1098 = vmatpush1.msra.mxu0 %v1057
      %1099 = vmatprep.subr.mxu0 0.0
      %1100 = vmatpush1.msra.mxu0 %v1058
      %1101 = vmatprep.subr.mxu0 0.0
      %1102 = vmatpush1.msra.mxu0 %v1059
      %1103 = vmatprep.subr.mxu0 0.0
      %1104 = vmatpush1.msra.mxu0 %v1060
      %1105 = vmatprep.subr.mxu0 0.0
      %1106 = vmatpush1.msra.mxu0 %v1061
      %1107 = vmatprep.subr.mxu0 0.0
      %1108 = vmatpush1.msra.mxu0 %v1062
      %1109 = vmatprep.subr.mxu0 0.0
      %1110 = vmatpush1.msra.mxu0 %v1063
      %1111 = vmatprep.subr.mxu0 0.0
      %1112 = vmatpush1.msra.mxu0 %v1064
      %1113 = vmatprep.subr.mxu0 0.0
      %1114 = vmatpush1.msra.mxu0 0.0
      %1115 = vmatprep.subr.mxu0 0.0
      %1116 = vmatpush1.msra.mxu0 0.0
      %1117 = vmatprep.subr.mxu0 0.0
      %1118 = vmatpush1.msra.mxu0 0.0
      %1119 = vmatprep.subr.mxu0 0.0
      %1120 = vmatpush1.msra.mxu0 0.0
      %1121 = vmatprep.subr.mxu0 0.0
      %1122 = vmatpush1.msra.mxu0 0.0
      %1123 = vmatprep.subr.mxu0 0.0
      %1124 = vmatpush1.msra.mxu0 0.0
      %1125 = vmatprep.subr.mxu0 0.0
      %1126 = vmatpush1.msra.mxu0 0.0
      %1127 = vmatprep.subr.mxu0 0.0
      %1128 = vmatpush1.msra.mxu0 0.0
      %1129 = vmatprep.subr.mxu0 0.0
      %1130 = vmatpush1.msra.mxu0 0.0
      %1131 = vmatprep.subr.mxu0 0.0
      %1132 = vmatpush1.msra.mxu0 0.0
      %1133 = vmatprep.subr.mxu0 0.0
      %1134 = vmatpush1.msra.mxu0 0.0
      %1135 = vmatprep.subr.mxu0 0.0
      %1136 = vmatpush1.msra.mxu0 0.0
      %1137 = vmatprep.subr.mxu0 0.0
      %1138 = vmatpush1.msra.mxu0 0.0
      %1139 = vmatprep.subr.mxu0 0.0
      %1140 = vmatpush1.msra.mxu0 0.0
      %1141 = vmatprep.subr.mxu0 0.0
      %1142 = vmatpush1.msra.mxu0 0.0
      %1143 = vmatprep.subr.mxu0 0.0
      %1144 = vmatpush1.msra.mxu0 0.0
      %1145 = vmatprep.mubr.f32.mxu0 0.0
      %1146 = vmatmul.mubr.f32.gmra.mrb[0].mxu0 %v1073
      %v1147 = vpop.f32.mrb[0].mxu0
      %v1148 = vadd.f32 0.0, %v1147
      %v1149 = vpop.f32.mrb[0].mxu0
      %1150 = vmatprep.mubr.f32.mxu0 0.0
      %1151 = vmatmul.mubr.f32.gmra.mrb[0].mxu0 %v1074
      %v1152 = vpop.f32.mrb[0].mxu0
      %v1153 = vadd.f32 0.0, %v1152
      %v1154 = vpop.f32.mrb[0].mxu0
      %1155 = vmatprep.mubr.f32.mxu0 0.0
      %1156 = vmatmul.mubr.f32.gmra.mrb[0].mxu0 %v1075
      %v1157 = vpop.f32.mrb[0].mxu0
      %v1158 = vadd.f32 0.0, %v1157
      %v1159 = vpop.f32.mrb[0].mxu0
      %1160 = vmatprep.mubr.f32.mxu0 0.0
      %1161 = vmatmul.mubr.f32.gmra.mrb[0].mxu0 %v1076
      %v1162 = vpop.f32.mrb[0].mxu0
      %v1163 = vadd.f32 0.0, %v1162
      %v1164 = vpop.f32.mrb[0].mxu0
      %1165 = vdwg.mxu0
      %v1166 = vadd.f32 %v1028, %v1148
      %v1167 = vadd.f32 %v1029, %v1153
      %v1168 = vadd.f32 %v1030, %v1158
      %v1169 = vadd.f32 %v1031, %v1163
      %v1170 = vld [vmem:[%s314] ss:$2 sm:$0xf]
      %s1171 = scalar_lea.vmem %s314, 16 [#allocation2]
      %v1172 = vld [vmem:[%s1171] ss:$2 sm:$0xf]
      %s1173 = scalar_lea.vmem %s314, 32 [#allocation2]
      %v1174 = vld [vmem:[%s1173] ss:$2 sm:$0xf]
      %s1175 = scalar_lea.vmem %s314, 48 [#allocation2]
      %v1176 = vld [vmem:[%s1175] ss:$2 sm:$0xf]
      %s1177 = scalar_lea.vmem %s314, 80 [#allocation2]
      %v1178 = vld [vmem:[%s1177] ss:$2 sm:$0xf]
      %s1179 = scalar_lea.vmem %s314, 96 [#allocation2]
      %v1180 = vld [vmem:[%s1179] ss:$2 sm:$0xf]
      %s1181 = scalar_lea.vmem %s314, 112 [#allocation2]
      %v1182 = vld [vmem:[%s1181] ss:$2 sm:$0xf]
      %s1183 = scalar_lea.vmem %s314, 128 [#allocation2]
      %v1184 = vld [vmem:[%s1183] ss:$2 sm:$0xf]
      %s1185 = scalar_lea.vmem %s1, 768
      %v1186 = vld [vmem:[%s1185] sm:$0xff]
      %v1187 = vld [vmem:[%s1185 + $0x8] sm:$0xff]
      %v1188 = vld [vmem:[%s1185 + $0x10] sm:$0xff]
      %v1189 = vld [vmem:[%s1185 + $0x18] sm:$0xff]
      %v1190 = vld [vmem:[%s1185 + $0x20] sm:$0xff]
      %v1191 = vld [vmem:[%s1185 + $0x28] sm:$0xff]
      %v1192 = vld [vmem:[%s1185 + $0x30] sm:$0xff]
      %v1193 = vld [vmem:[%s1185 + $0x38] sm:$0xff]
      %v1194 = vld [vmem:[%s1185 + $0x40] sm:$0xff]
      %v1195 = vld [vmem:[%s1185 + $0x48] sm:$0xff]
      %v1196 = vld [vmem:[%s1185 + $0x50] sm:$0xff]
      %v1197 = vld [vmem:[%s1185 + $0x58] sm:$0xff]
      %v1198 = vld [vmem:[%s1185 + $0x60] sm:$0xff]
      %v1199 = vld [vmem:[%s1185 + $0x68] sm:$0xff]
      %v1200 = vld [vmem:[%s1185 + $0x70] sm:$0xff]
      %v1201 = vld [vmem:[%s1185 + $0x78] sm:$0xff]
      %v1210 = vcombine.low %v1170, %v1172
      %v1211 = vcombine.low %v1174, %v1176
      %v1212 = vcombine.low %v1178, %v1180
      %v1213 = vcombine.low %v1182, %v1184
      %1218 = vmatprep.subr.mxu0 0.0
      %1219 = vmatpush1.msra.mxu0 %v1186
      %1220 = vmatprep.subr.mxu0 0.0
      %1221 = vmatpush1.msra.mxu0 %v1187
      %1222 = vmatprep.subr.mxu0 0.0
      %1223 = vmatpush1.msra.mxu0 %v1188
      %1224 = vmatprep.subr.mxu0 0.0
      %1225 = vmatpush1.msra.mxu0 %v1189
      %1226 = vmatprep.subr.mxu0 0.0
      %1227 = vmatpush1.msra.mxu0 %v1190
      %1228 = vmatprep.subr.mxu0 0.0
      %1229 = vmatpush1.msra.mxu0 %v1191
      %1230 = vmatprep.subr.mxu0 0.0
      %1231 = vmatpush1.msra.mxu0 %v1192
      %1232 = vmatprep.subr.mxu0 0.0
      %1233 = vmatpush1.msra.mxu0 %v1193
      %1234 = vmatprep.subr.mxu0 0.0
      %1235 = vmatpush1.msra.mxu0 %v1194
      %1236 = vmatprep.subr.mxu0 0.0
      %1237 = vmatpush1.msra.mxu0 %v1195
      %1238 = vmatprep.subr.mxu0 0.0
      %1239 = vmatpush1.msra.mxu0 %v1196
      %1240 = vmatprep.subr.mxu0 0.0
      %1241 = vmatpush1.msra.mxu0 %v1197
      %1242 = vmatprep.subr.mxu0 0.0
      %1243 = vmatpush1.msra.mxu0 %v1198
      %1244 = vmatprep.subr.mxu0 0.0
      %1245 = vmatpush1.msra.mxu0 %v1199
      %1246 = vmatprep.subr.mxu0 0.0
      %1247 = vmatpush1.msra.mxu0 %v1200
      %1248 = vmatprep.subr.mxu0 0.0
      %1249 = vmatpush1.msra.mxu0 %v1201
      %1250 = vmatprep.subr.mxu0 0.0
      %1251 = vmatpush1.msra.mxu0 0.0
      %1252 = vmatprep.subr.mxu0 0.0
      %1253 = vmatpush1.msra.mxu0 0.0
      %1254 = vmatprep.subr.mxu0 0.0
      %1255 = vmatpush1.msra.mxu0 0.0
      %1256 = vmatprep.subr.mxu0 0.0
      %1257 = vmatpush1.msra.mxu0 0.0
      %1258 = vmatprep.subr.mxu0 0.0
      %1259 = vmatpush1.msra.mxu0 0.0
      %1260 = vmatprep.subr.mxu0 0.0
      %1261 = vmatpush1.msra.mxu0 0.0
      %1262 = vmatprep.subr.mxu0 0.0
      %1263 = vmatpush1.msra.mxu0 0.0
      %1264 = vmatprep.subr.mxu0 0.0
      %1265 = vmatpush1.msra.mxu0 0.0
      %1266 = vmatprep.subr.mxu0 0.0
      %1267 = vmatpush1.msra.mxu0 0.0
      %1268 = vmatprep.subr.mxu0 0.0
      %1269 = vmatpush1.msra.mxu0 0.0
      %1270 = vmatprep.subr.mxu0 0.0
      %1271 = vmatpush1.msra.mxu0 0.0
      %1272 = vmatprep.subr.mxu0 0.0
      %1273 = vmatpush1.msra.mxu0 0.0
      %1274 = vmatprep.subr.mxu0 0.0
      %1275 = vmatpush1.msra.mxu0 0.0
      %1276 = vmatprep.subr.mxu0 0.0
      %1277 = vmatpush1.msra.mxu0 0.0
      %1278 = vmatprep.subr.mxu0 0.0
      %1279 = vmatpush1.msra.mxu0 0.0
      %1280 = vmatprep.subr.mxu0 0.0
      %1281 = vmatpush1.msra.mxu0 0.0
      %1282 = vmatprep.mubr.f32.mxu0 0.0
      %1283 = vmatmul.mubr.f32.gmra.mrb[0].mxu0 %v1210
      %v1284 = vpop.f32.mrb[0].mxu0
      %v1285 = vadd.f32 0.0, %v1284
      %v1286 = vpop.f32.mrb[0].mxu0
      %1287 = vmatprep.mubr.f32.mxu0 0.0
      %1288 = vmatmul.mubr.f32.gmra.mrb[0].mxu0 %v1211
      %v1289 = vpop.f32.mrb[0].mxu0
      %v1290 = vadd.f32 0.0, %v1289
      %v1291 = vpop.f32.mrb[0].mxu0
      %1292 = vmatprep.mubr.f32.mxu0 0.0
      %1293 = vmatmul.mubr.f32.gmra.mrb[0].mxu0 %v1212
      %v1294 = vpop.f32.mrb[0].mxu0
      %v1295 = vadd.f32 0.0, %v1294
      %v1296 = vpop.f32.mrb[0].mxu0
      %1297 = vmatprep.mubr.f32.mxu0 0.0
      %1298 = vmatmul.mubr.f32.gmra.mrb[0].mxu0 %v1213
      %v1299 = vpop.f32.mrb[0].mxu0
      %v1300 = vadd.f32 0.0, %v1299
      %v1301 = vpop.f32.mrb[0].mxu0
      %1302 = vdwg.mxu0
      %v1303 = vadd.f32 %v1166, %v1285
      %v1304 = vadd.f32 %v1167, %v1290
      %v1305 = vadd.f32 %v1168, %v1295
      %v1306 = vadd.f32 %v1169, %v1300
      %s1307 = scalar_lea.vmem %s314, 1 [#allocation2]
      %v1308 = vld [vmem:[%s1307] ss:$2 sm:$0xf]
      %s1309 = scalar_lea.vmem %s314, 17 [#allocation2]
      %v1310 = vld [vmem:[%s1309] ss:$2 sm:$0xf]
      %s1311 = scalar_lea.vmem %s314, 33 [#allocation2]
      %v1312 = vld [vmem:[%s1311] ss:$2 sm:$0xf]
      %s1313 = scalar_lea.vmem %s314, 49 [#allocation2]
      %v1314 = vld [vmem:[%s1313] ss:$2 sm:$0xf]
      %s1315 = scalar_lea.vmem %s314, 81 [#allocation2]
      %v1316 = vld [vmem:[%s1315] ss:$2 sm:$0xf]
      %s1317 = scalar_lea.vmem %s314, 97 [#allocation2]
      %v1318 = vld [vmem:[%s1317] ss:$2 sm:$0xf]
      %s1319 = scalar_lea.vmem %s314, 113 [#allocation2]
      %v1320 = vld [vmem:[%s1319] ss:$2 sm:$0xf]
      %s1321 = scalar_lea.vmem %s314, 129 [#allocation2]
      %v1322 = vld [vmem:[%s1321] ss:$2 sm:$0xf]
      %s1323 = scalar_lea.vmem %s1, 896
      %v1324 = vld [vmem:[%s1323] sm:$0xff]
      %v1325 = vld [vmem:[%s1323 + $0x8] sm:$0xff]
      %v1326 = vld [vmem:[%s1323 + $0x10] sm:$0xff]
      %v1327 = vld [vmem:[%s1323 + $0x18] sm:$0xff]
      %v1328 = vld [vmem:[%s1323 + $0x20] sm:$0xff]
      %v1329 = vld [vmem:[%s1323 + $0x28] sm:$0xff]
      %v1330 = vld [vmem:[%s1323 + $0x30] sm:$0xff]
      %v1331 = vld [vmem:[%s1323 + $0x38] sm:$0xff]
      %v1332 = vld [vmem:[%s1323 + $0x40] sm:$0xff]
      %v1333 = vld [vmem:[%s1323 + $0x48] sm:$0xff]
      %v1334 = vld [vmem:[%s1323 + $0x50] sm:$0xff]
      %v1335 = vld [vmem:[%s1323 + $0x58] sm:$0xff]
      %v1336 = vld [vmem:[%s1323 + $0x60] sm:$0xff]
      %v1337 = vld [vmem:[%s1323 + $0x68] sm:$0xff]
      %v1338 = vld [vmem:[%s1323 + $0x70] sm:$0xff]
      %v1339 = vld [vmem:[%s1323 + $0x78] sm:$0xff]
      %v1348 = vcombine.low %v1308, %v1310
      %v1349 = vcombine.low %v1312, %v1314
      %v1350 = vcombine.low %v1316, %v1318
      %v1351 = vcombine.low %v1320, %v1322
      %1356 = vmatprep.subr.mxu0 0.0
      %1357 = vmatpush1.msra.mxu0 %v1324
      %1358 = vmatprep.subr.mxu0 0.0
      %1359 = vmatpush1.msra.mxu0 %v1325
      %1360 = vmatprep.subr.mxu0 0.0
      %1361 = vmatpush1.msra.mxu0 %v1326
      %1362 = vmatprep.subr.mxu0 0.0
      %1363 = vmatpush1.msra.mxu0 %v1327
      %1364 = vmatprep.subr.mxu0 0.0
      %1365 = vmatpush1.msra.mxu0 %v1328
      %1366 = vmatprep.subr.mxu0 0.0
      %1367 = vmatpush1.msra.mxu0 %v1329
      %1368 = vmatprep.subr.mxu0 0.0
      %1369 = vmatpush1.msra.mxu0 %v1330
      %1370 = vmatprep.subr.mxu0 0.0
      %1371 = vmatpush1.msra.mxu0 %v1331
      %1372 = vmatprep.subr.mxu0 0.0
      %1373 = vmatpush1.msra.mxu0 %v1332
      %1374 = vmatprep.subr.mxu0 0.0
      %1375 = vmatpush1.msra.mxu0 %v1333
      %1376 = vmatprep.subr.mxu0 0.0
      %1377 = vmatpush1.msra.mxu0 %v1334
      %1378 = vmatprep.subr.mxu0 0.0
      %1379 = vmatpush1.msra.mxu0 %v1335
      %1380 = vmatprep.subr.mxu0 0.0
      %1381 = vmatpush1.msra.mxu0 %v1336
      %1382 = vmatprep.subr.mxu0 0.0
      %1383 = vmatpush1.msra.mxu0 %v1337
      %1384 = vmatprep.subr.mxu0 0.0
      %1385 = vmatpush1.msra.mxu0 %v1338
      %1386 = vmatprep.subr.mxu0 0.0
      %1387 = vmatpush1.msra.mxu0 %v1339
      %1388 = vmatprep.subr.mxu0 0.0
      %1389 = vmatpush1.msra.mxu0 0.0
      %1390 = vmatprep.subr.mxu0 0.0
      %1391 = vmatpush1.msra.mxu0 0.0
      %1392 = vmatprep.subr.mxu0 0.0
      %1393 = vmatpush1.msra.mxu0 0.0
      %1394 = vmatprep.subr.mxu0 0.0
      %1395 = vmatpush1.msra.mxu0 0.0
      %1396 = vmatprep.subr.mxu0 0.0
      %1397 = vmatpush1.msra.mxu0 0.0
      %1398 = vmatprep.subr.mxu0 0.0
      %1399 = vmatpush1.msra.mxu0 0.0
      %1400 = vmatprep.subr.mxu0 0.0
      %1401 = vmatpush1.msra.mxu0 0.0
      %1402 = vmatprep.subr.mxu0 0.0
      %1403 = vmatpush1.msra.mxu0 0.0
      %1404 = vmatprep.subr.mxu0 0.0
      %1405 = vmatpush1.msra.mxu0 0.0
      %1406 = vmatprep.subr.mxu0 0.0
      %1407 = vmatpush1.msra.mxu0 0.0
      %1408 = vmatprep.subr.mxu0 0.0
      %1409 = vmatpush1.msra.mxu0 0.0
      %1410 = vmatprep.subr.mxu0 0.0
      %1411 = vmatpush1.msra.mxu0 0.0
      %1412 = vmatprep.subr.mxu0 0.0
      %1413 = vmatpush1.msra.mxu0 0.0
      %1414 = vmatprep.subr.mxu0 0.0
      %1415 = vmatpush1.msra.mxu0 0.0
      %1416 = vmatprep.subr.mxu0 0.0
      %1417 = vmatpush1.msra.mxu0 0.0
      %1418 = vmatprep.subr.mxu0 0.0
      %1419 = vmatpush1.msra.mxu0 0.0
      %1420 = vmatprep.mubr.f32.mxu0 0.0
      %1421 = vmatmul.mubr.f32.gmra.mrb[0].mxu0 %v1348
      %v1422 = vpop.f32.mrb[0].mxu0
      %v1423 = vadd.f32 0.0, %v1422
      %v1424 = vpop.f32.mrb[0].mxu0
      %1425 = vmatprep.mubr.f32.mxu0 0.0
      %1426 = vmatmul.mubr.f32.gmra.mrb[0].mxu0 %v1349
      %v1427 = vpop.f32.mrb[0].mxu0
      %v1428 = vadd.f32 0.0, %v1427
      %v1429 = vpop.f32.mrb[0].mxu0
      %1430 = vmatprep.mubr.f32.mxu0 0.0
      %1431 = vmatmul.mubr.f32.gmra.mrb[0].mxu0 %v1350
      %v1432 = vpop.f32.mrb[0].mxu0
      %v1433 = vadd.f32 0.0, %v1432
      %v1434 = vpop.f32.mrb[0].mxu0
      %1435 = vmatprep.mubr.f32.mxu0 0.0
      %1436 = vmatmul.mubr.f32.gmra.mrb[0].mxu0 %v1351
      %v1437 = vpop.f32.mrb[0].mxu0
      %v1438 = vadd.f32 0.0, %v1437
      %v1439 = vpop.f32.mrb[0].mxu0
      %1440 = vdwg.mxu0
      %v1441 = vadd.f32 %v1303, %v1423
      %v1442 = vadd.f32 %v1304, %v1428
      %v1443 = vadd.f32 %v1305, %v1433
      %v1444 = vadd.f32 %v1306, %v1438
      %s1445 = scalar_lea.vmem %s314, 2 [#allocation2]
      %v1446 = vld [vmem:[%s1445] ss:$2 sm:$0xf]
      %s1447 = scalar_lea.vmem %s314, 18 [#allocation2]
      %v1448 = vld [vmem:[%s1447] ss:$2 sm:$0xf]
      %s1449 = scalar_lea.vmem %s314, 34 [#allocation2]
      %v1450 = vld [vmem:[%s1449] ss:$2 sm:$0xf]
      %s1451 = scalar_lea.vmem %s314, 50 [#allocation2]
      %v1452 = vld [vmem:[%s1451] ss:$2 sm:$0xf]
      %s1453 = scalar_lea.vmem %s314, 82 [#allocation2]
      %v1454 = vld [vmem:[%s1453] ss:$2 sm:$0xf]
      %s1455 = scalar_lea.vmem %s314, 98 [#allocation2]
      %v1456 = vld [vmem:[%s1455] ss:$2 sm:$0xf]
      %s1457 = scalar_lea.vmem %s314, 114 [#allocation2]
      %v1458 = vld [vmem:[%s1457] ss:$2 sm:$0xf]
      %s1459 = scalar_lea.vmem %s314, 130 [#allocation2]
      %v1460 = vld [vmem:[%s1459] ss:$2 sm:$0xf]
      %s1461 = scalar_lea.vmem %s1, 1024
      %v1462 = vld [vmem:[%s1461] sm:$0xff]
      %v1463 = vld [vmem:[%s1461 + $0x8] sm:$0xff]
      %v1464 = vld [vmem:[%s1461 + $0x10] sm:$0xff]
      %v1465 = vld [vmem:[%s1461 + $0x18] sm:$0xff]
      %v1466 = vld [vmem:[%s1461 + $0x20] sm:$0xff]
      %v1467 = vld [vmem:[%s1461 + $0x28] sm:$0xff]
      %v1468 = vld [vmem:[%s1461 + $0x30] sm:$0xff]
      %v1469 = vld [vmem:[%s1461 + $0x38] sm:$0xff]
      %v1470 = vld [vmem:[%s1461 + $0x40] sm:$0xff]
      %v1471 = vld [vmem:[%s1461 + $0x48] sm:$0xff]
      %v1472 = vld [vmem:[%s1461 + $0x50] sm:$0xff]
      %v1473 = vld [vmem:[%s1461 + $0x58] sm:$0xff]
      %v1474 = vld [vmem:[%s1461 + $0x60] sm:$0xff]
      %v1475 = vld [vmem:[%s1461 + $0x68] sm:$0xff]
      %v1476 = vld [vmem:[%s1461 + $0x70] sm:$0xff]
      %v1477 = vld [vmem:[%s1461 + $0x78] sm:$0xff]
      %v1486 = vcombine.low %v1446, %v1448
      %v1487 = vcombine.low %v1450, %v1452
      %v1488 = vcombine.low %v1454, %v1456
      %v1489 = vcombine.low %v1458, %v1460
      %1494 = vmatprep.subr.mxu0 0.0
      %1495 = vmatpush1.msra.mxu0 %v1462
      %1496 = vmatprep.subr.mxu0 0.0
      %1497 = vmatpush1.msra.mxu0 %v1463
      %1498 = vmatprep.subr.mxu0 0.0
      %1499 = vmatpush1.msra.mxu0 %v1464
      %1500 = vmatprep.subr.mxu0 0.0
      %1501 = vmatpush1.msra.mxu0 %v1465
      %1502 = vmatprep.subr.mxu0 0.0
      %1503 = vmatpush1.msra.mxu0 %v1466
      %1504 = vmatprep.subr.mxu0 0.0
      %1505 = vmatpush1.msra.mxu0 %v1467
      %1506 = vmatprep.subr.mxu0 0.0
      %1507 = vmatpush1.msra.mxu0 %v1468
      %1508 = vmatprep.subr.mxu0 0.0
      %1509 = vmatpush1.msra.mxu0 %v1469
      %1510 = vmatprep.subr.mxu0 0.0
      %1511 = vmatpush1.msra.mxu0 %v1470
      %1512 = vmatprep.subr.mxu0 0.0
      %1513 = vmatpush1.msra.mxu0 %v1471
      %1514 = vmatprep.subr.mxu0 0.0
      %1515 = vmatpush1.msra.mxu0 %v1472
      %1516 = vmatprep.subr.mxu0 0.0
      %1517 = vmatpush1.msra.mxu0 %v1473
      %1518 = vmatprep.subr.mxu0 0.0
      %1519 = vmatpush1.msra.mxu0 %v1474
      %1520 = vmatprep.subr.mxu0 0.0
      %1521 = vmatpush1.msra.mxu0 %v1475
      %1522 = vmatprep.subr.mxu0 0.0
      %1523 = vmatpush1.msra.mxu0 %v1476
      %1524 = vmatprep.subr.mxu0 0.0
      %1525 = vmatpush1.msra.mxu0 %v1477
      %1526 = vmatprep.subr.mxu0 0.0
      %1527 = vmatpush1.msra.mxu0 0.0
      %1528 = vmatprep.subr.mxu0 0.0
      %1529 = vmatpush1.msra.mxu0 0.0
      %1530 = vmatprep.subr.mxu0 0.0
      %1531 = vmatpush1.msra.mxu0 0.0
      %1532 = vmatprep.subr.mxu0 0.0
      %1533 = vmatpush1.msra.mxu0 0.0
      %1534 = vmatprep.subr.mxu0 0.0
      %1535 = vmatpush1.msra.mxu0 0.0
      %1536 = vmatprep.subr.mxu0 0.0
      %1537 = vmatpush1.msra.mxu0 0.0
      %1538 = vmatprep.subr.mxu0 0.0
      %1539 = vmatpush1.msra.mxu0 0.0
      %1540 = vmatprep.subr.mxu0 0.0
      %1541 = vmatpush1.msra.mxu0 0.0
      %1542 = vmatprep.subr.mxu0 0.0
      %1543 = vmatpush1.msra.mxu0 0.0
      %1544 = vmatprep.subr.mxu0 0.0
      %1545 = vmatpush1.msra.mxu0 0.0
      %1546 = vmatprep.subr.mxu0 0.0
      %1547 = vmatpush1.msra.mxu0 0.0
      %1548 = vmatprep.subr.mxu0 0.0
      %1549 = vmatpush1.msra.mxu0 0.0
      %1550 = vmatprep.subr.mxu0 0.0
      %1551 = vmatpush1.msra.mxu0 0.0
      %1552 = vmatprep.subr.mxu0 0.0
      %1553 = vmatpush1.msra.mxu0 0.0
      %1554 = vmatprep.subr.mxu0 0.0
      %1555 = vmatpush1.msra.mxu0 0.0
      %1556 = vmatprep.subr.mxu0 0.0
      %1557 = vmatpush1.msra.mxu0 0.0
      %1558 = vmatprep.mubr.f32.mxu0 0.0
      %1559 = vmatmul.mubr.f32.gmra.mrb[0].mxu0 %v1486
      %v1560 = vpop.f32.mrb[0].mxu0
      %v1561 = vadd.f32 0.0, %v1560
      %v1562 = vpop.f32.mrb[0].mxu0
      %1563 = vmatprep.mubr.f32.mxu0 0.0
      %1564 = vmatmul.mubr.f32.gmra.mrb[0].mxu0 %v1487
      %v1565 = vpop.f32.mrb[0].mxu0
      %v1566 = vadd.f32 0.0, %v1565
      %v1567 = vpop.f32.mrb[0].mxu0
      %1568 = vmatprep.mubr.f32.mxu0 0.0
      %1569 = vmatmul.mubr.f32.gmra.mrb[0].mxu0 %v1488
      %v1570 = vpop.f32.mrb[0].mxu0
      %v1571 = vadd.f32 0.0, %v1570
      %v1572 = vpop.f32.mrb[0].mxu0
      %1573 = vmatprep.mubr.f32.mxu0 0.0
      %1574 = vmatmul.mubr.f32.gmra.mrb[0].mxu0 %v1489
      %v1575 = vpop.f32.mrb[0].mxu0
      %v1576 = vadd.f32 0.0, %v1575
      %v1577 = vpop.f32.mrb[0].mxu0
      %1578 = vdwg.mxu0
      %v1579 = vadd.f32 %v1441, %v1561
      %v1580 = vadd.f32 %v1442, %v1566
      %v1581 = vadd.f32 %v1443, %v1571
      %v1582 = vadd.f32 %v1444, %v1576
      %v1583 = vld [vmem:[%s2] sm:$0x1]
      %v1585 = vlaneseq
      %v1586 = vshrl.u32 %v1585, 7
      %v1587 = vsub.s32 0, %v1586
      %v1588 = vrot.slane %v1583, %v1587
      %v1590 = vadd.f32 %v1579, %v1588
      %v1591 = vadd.f32 %v1580, %v1588
      %v1592 = vadd.f32 %v1581, %v1588
      %v1593 = vadd.f32 %v1582, %v1588
      %v1594 = vmax.f32 %v1590, 0.0
      %v1595 = vmax.f32 %v1591, 0.0
      %v1596 = vmax.f32 %v1592, 0.0
      %v1597 = vmax.f32 %v1593, 0.0
      %v1602 = vcombine.high %v1594, %v1594
      %v1603 = vcombine.high %v1595, %v1595
      %v1604 = vcombine.high %v1596, %v1596
      %v1605 = vcombine.high %v1597, %v1597
      %vm1610 = vcmask 520192
      %1611 = vst.msk [vmem:[#allocation3] sm:$0x1f] %vm1610, 0.0
      %1612 = vst.msk [vmem:[#allocation3 + $0x18] sm:$0x1f] %vm1610, 0.0
      %vm1613 = vcmask 516096
      %1614 = vst.msk [vmem:[#allocation3] sm:$0x1] %vm1613, 0.0
      %1615 = vst.msk [vmem:[#allocation3 + $0x8] sm:$0x1] %vm1613, 0.0
      %1616 = vst.msk [vmem:[#allocation3 + $0x10] sm:$0x1] %vm1613, 0.0
      %1617 = vst.msk [vmem:[#allocation3 + $0x18] sm:$0x1] %vm1613, 0.0
      %1618 = vst.msk [vmem:[#allocation3 + $0x20] sm:$0x1] %vm1613, 0.0
      %1619 = vst.msk [vmem:[#allocation3 + $0x28] sm:$0x1] %vm1613, 0.0
      %1620 = vst.msk [vmem:[#allocation3 + $0x30] sm:$0x1] %vm1613, 0.0
      %1621 = vst.msk [vmem:[#allocation3 + $0x38] sm:$0x1] %vm1613, 0.0
      %1622 = vst.msk [vmem:[#allocation3 + $0x40] sm:$0x1] %vm1613, 0.0
      %1623 = vst.msk [vmem:[#allocation3 + $0x48] sm:$0x1] %vm1613, 0.0
      %1624 = vst.msk [vmem:[#allocation3 + $0x50] sm:$0x1] %vm1613, 0.0
      %1625 = vst.msk [vmem:[#allocation3 + $0x58] sm:$0x1] %vm1613, 0.0
      %s1626 = scalar_lea.vmem [#allocation3], 48
      %vm1627 = vcmask 519168
      %1628 = vst.msk [vmem:[%s1626 + $0x1] sm:$0xf] %vm1627, %v1594
      %1629 = vst.msk [vmem:[%s1626 + $0x19] sm:$0xf] %vm1627, %v1596
      %s1630 = scalar_lea.vmem [#allocation3], 8
      %1631 = vst.msk [vmem:[%s1630 + $0x1] sm:$0xf] %vm1627, %v1602
      %1632 = vst.msk [vmem:[%s1630 + $0x19] sm:$0xf] %vm1627, %v1604
      %s1633 = scalar_lea.vmem [#allocation3], 56
      %1634 = vst.msk [vmem:[%s1633 + $0x1] sm:$0xf] %vm1627, %v1595
      %1635 = vst.msk [vmem:[%s1633 + $0x19] sm:$0xf] %vm1627, %v1597
      %s1636 = scalar_lea.vmem [#allocation3], 16
      %1637 = vst.msk [vmem:[%s1636 + $0x1] sm:$0xf] %vm1627, %v1603
      %1638 = vst.msk [vmem:[%s1636 + $0x19] sm:$0xf] %vm1627, %v1605
      %v1639 = vld [vmem:[#allocation3] ss:$2 sm:$0x3]
      %s1640 = scalar_lea.vmem [#allocation3], 8
      %v1641 = vld [vmem:[%s1640] ss:$2 sm:$0x3]
      %s1642 = scalar_lea.vmem [#allocation3], 24
      %v1643 = vld [vmem:[%s1642] ss:$2 sm:$0x3]
      %s1644 = scalar_lea.vmem [#allocation3], 32
      %v1645 = vld [vmem:[%s1644] ss:$2 sm:$0x3]
      %v1646 = vld [vmem:[%s3] sm:$0xff]
      %v1647 = vld [vmem:[%s3 + $0x8] sm:$0xff]
      %v1648 = vld [vmem:[%s3 + $0x10] sm:$0xff]
      %v1649 = vld [vmem:[%s3 + $0x18] sm:$0xff]
      %v1650 = vld [vmem:[%s3 + $0x20] sm:$0xff]
      %v1651 = vld [vmem:[%s3 + $0x28] sm:$0xff]
      %v1652 = vld [vmem:[%s3 + $0x30] sm:$0xff]
      %v1653 = vld [vmem:[%s3 + $0x38] sm:$0xff]
      %s1654 = scalar_lea.vmem [#allocation3], 1
      %v1655 = vld [vmem:[%s1654] ss:$2 sm:$0x3]
      %s1656 = scalar_lea.vmem [#allocation3], 9
      %v1657 = vld [vmem:[%s1656] ss:$2 sm:$0x3]
      %s1658 = scalar_lea.vmem [#allocation3], 25
      %v1659 = vld [vmem:[%s1658] ss:$2 sm:$0x3]
      %s1660 = scalar_lea.vmem [#allocation3], 33
      %v1661 = vld [vmem:[%s1660] ss:$2 sm:$0x3]
      %s1662 = scalar_lea.vmem %s3, 64
      %v1663 = vld [vmem:[%s1662] sm:$0xff]
      %v1664 = vld [vmem:[%s1662 + $0x8] sm:$0xff]
      %v1665 = vld [vmem:[%s1662 + $0x10] sm:$0xff]
      %v1666 = vld [vmem:[%s1662 + $0x18] sm:$0xff]
      %v1667 = vld [vmem:[%s1662 + $0x20] sm:$0xff]
      %v1668 = vld [vmem:[%s1662 + $0x28] sm:$0xff]
      %v1669 = vld [vmem:[%s1662 + $0x30] sm:$0xff]
      %v1670 = vld [vmem:[%s1662 + $0x38] sm:$0xff]
      %v1675 = vcombine.low %v1655, %v1657
      %v1676 = vcombine.low %v1659, %v1661
      %v1678 = vunpack.c.l.s4 1983009808
      %v1679 = vunpack.c.0.s8 %v1678
      %v1680 = vlaneseq
      %v1681 = vshrl.u32 %v1680, 7
      %v1682 = vsub.s32 %v1679, %v1681
      %v1683 = vrot.slane %v1675, %v1682
      %v1685 = vunpack.c.l.s4 1983009808
      %v1686 = vunpack.c.0.s8 %v1685
      %v1687 = vlaneseq
      %v1688 = vshrl.u32 %v1687, 7
      %v1689 = vsub.s32 %v1686, %v1688
      %v1690 = vrot.slane %v1676, %v1689
      %v1691 = vcombine.low %v1683, %v1690
      %vm1692 = vcmask 523264
      %v1693 = vsel %vm1692, %v1691, 0
      %1695 = vmatprep.subr.mxu0 0.0
      %1696 = vmatpush1.msra.mxu0 %v1663
      %1697 = vmatprep.subr.mxu0 0.0
      %1698 = vmatpush1.msra.mxu0 %v1664
      %1699 = vmatprep.subr.mxu0 0.0
      %1700 = vmatpush1.msra.mxu0 %v1665
      %1701 = vmatprep.subr.mxu0 0.0
      %1702 = vmatpush1.msra.mxu0 %v1666
      %1703 = vmatprep.subr.mxu0 0.0
      %1704 = vmatpush1.msra.mxu0 %v1667
      %1705 = vmatprep.subr.mxu0 0.0
      %1706 = vmatpush1.msra.mxu0 %v1668
      %1707 = vmatprep.subr.mxu0 0.0
      %1708 = vmatpush1.msra.mxu0 %v1669
      %1709 = vmatprep.subr.mxu0 0.0
      %1710 = vmatpush1.msra.mxu0 %v1670
      %1711 = vmatprep.subr.mxu0 0.0
      %1712 = vmatpush1.msra.mxu0 0.0
      %1713 = vmatprep.subr.mxu0 0.0
      %1714 = vmatpush1.msra.mxu0 0.0
      %1715 = vmatprep.subr.mxu0 0.0
      %1716 = vmatpush1.msra.mxu0 0.0
      %1717 = vmatprep.subr.mxu0 0.0
      %1718 = vmatpush1.msra.mxu0 0.0
      %1719 = vmatprep.subr.mxu0 0.0
      %1720 = vmatpush1.msra.mxu0 0.0
      %1721 = vmatprep.subr.mxu0 0.0
      %1722 = vmatpush1.msra.mxu0 0.0
      %1723 = vmatprep.subr.mxu0 0.0
      %1724 = vmatpush1.msra.mxu0 0.0
      %1725 = vmatprep.subr.mxu0 0.0
      %1726 = vmatpush1.msra.mxu0 0.0
      %1727 = vmatprep.subr.mxu0 0.0
      %1728 = vmatpush1.msra.mxu0 0.0
      %1729 = vmatprep.subr.mxu0 0.0
      %1730 = vmatpush1.msra.mxu0 0.0
      %1731 = vmatprep.subr.mxu0 0.0
      %1732 = vmatpush1.msra.mxu0 0.0
      %1733 = vmatprep.subr.mxu0 0.0
      %1734 = vmatpush1.msra.mxu0 0.0
      %1735 = vmatprep.subr.mxu0 0.0
      %1736 = vmatpush1.msra.mxu0 0.0
      %1737 = vmatprep.subr.mxu0 0.0
      %1738 = vmatpush1.msra.mxu0 0.0
      %1739 = vmatprep.subr.mxu0 0.0
      %1740 = vmatpush1.msra.mxu0 0.0
      %1741 = vmatprep.subr.mxu0 0.0
      %1742 = vmatpush1.msra.mxu0 0.0
      %1743 = vmatprep.subr.mxu0 0.0
      %1744 = vmatpush1.msra.mxu0 0.0
      %1745 = vmatprep.subr.mxu0 0.0
      %1746 = vmatpush1.msra.mxu0 0.0
      %1747 = vmatprep.subr.mxu0 0.0
      %1748 = vmatpush1.msra.mxu0 0.0
      %1749 = vmatprep.subr.mxu0 0.0
      %1750 = vmatpush1.msra.mxu0 0.0
      %1751 = vmatprep.subr.mxu0 0.0
      %1752 = vmatpush1.msra.mxu0 0.0
      %1753 = vmatprep.subr.mxu0 0.0
      %1754 = vmatpush1.msra.mxu0 0.0
      %1755 = vmatprep.subr.mxu0 0.0
      %1756 = vmatpush1.msra.mxu0 0.0
      %1757 = vmatprep.subr.mxu0 0.0
      %1758 = vmatpush1.msra.mxu0 0.0
      %1759 = vmatprep.mubr.f32.mxu0 0.0
      %1760 = vmatmul.mubr.f32.gmra.mrb[0].mxu0 %v1693
      %v1761 = vpop.f32.mrb[0].mxu0
      %v1762 = vadd.f32 0.0, %v1761
      %v1763 = vpop.f32.mrb[0].mxu0
      %1764 = vdwg.mxu0
      %v1769 = vcombine.low %v1639, %v1641
      %v1770 = vcombine.low %v1643, %v1645
      %v1772 = vunpack.c.l.s4 1983009808
      %v1773 = vunpack.c.0.s8 %v1772
      %v1774 = vlaneseq
      %v1775 = vshrl.u32 %v1774, 7
      %v1776 = vsub.s32 %v1773, %v1775
      %v1777 = vrot.slane %v1769, %v1776
      %v1779 = vunpack.c.l.s4 1983009808
      %v1780 = vunpack.c.0.s8 %v1779
      %v1781 = vlaneseq
      %v1782 = vshrl.u32 %v1781, 7
      %v1783 = vsub.s32 %v1780, %v1782
      %v1784 = vrot.slane %v1770, %v1783
      %v1785 = vcombine.low %v1777, %v1784
      %v1786 = vsel %vm1692, %v1785, 0
      %1788 = vmatprep.subr.mxu0 0.0
      %1789 = vmatpush1.msra.mxu0 %v1646
      %1790 = vmatprep.subr.mxu0 0.0
      %1791 = vmatpush1.msra.mxu0 %v1647
      %1792 = vmatprep.subr.mxu0 0.0
      %1793 = vmatpush1.msra.mxu0 %v1648
      %1794 = vmatprep.subr.mxu0 0.0
      %1795 = vmatpush1.msra.mxu0 %v1649
      %1796 = vmatprep.subr.mxu0 0.0
      %1797 = vmatpush1.msra.mxu0 %v1650
      %1798 = vmatprep.subr.mxu0 0.0
      %1799 = vmatpush1.msra.mxu0 %v1651
      %1800 = vmatprep.subr.mxu0 0.0
      %1801 = vmatpush1.msra.mxu0 %v1652
      %1802 = vmatprep.subr.mxu0 0.0
      %1803 = vmatpush1.msra.mxu0 %v1653
      %1804 = vmatprep.subr.mxu0 0.0
      %1805 = vmatpush1.msra.mxu0 0.0
      %1806 = vmatprep.subr.mxu0 0.0
      %1807 = vmatpush1.msra.mxu0 0.0
      %1808 = vmatprep.subr.mxu0 0.0
      %1809 = vmatpush1.msra.mxu0 0.0
      %1810 = vmatprep.subr.mxu0 0.0
      %1811 = vmatpush1.msra.mxu0 0.0
      %1812 = vmatprep.subr.mxu0 0.0
      %1813 = vmatpush1.msra.mxu0 0.0
      %1814 = vmatprep.subr.mxu0 0.0
      %1815 = vmatpush1.msra.mxu0 0.0
      %1816 = vmatprep.subr.mxu0 0.0
      %1817 = vmatpush1.msra.mxu0 0.0
      %1818 = vmatprep.subr.mxu0 0.0
      %1819 = vmatpush1.msra.mxu0 0.0
      %1820 = vmatprep.subr.mxu0 0.0
      %1821 = vmatpush1.msra.mxu0 0.0
      %1822 = vmatprep.subr.mxu0 0.0
      %1823 = vmatpush1.msra.mxu0 0.0
      %1824 = vmatprep.subr.mxu0 0.0
      %1825 = vmatpush1.msra.mxu0 0.0
      %1826 = vmatprep.subr.mxu0 0.0
      %1827 = vmatpush1.msra.mxu0 0.0
      %1828 = vmatprep.subr.mxu0 0.0
      %1829 = vmatpush1.msra.mxu0 0.0
      %1830 = vmatprep.subr.mxu0 0.0
      %1831 = vmatpush1.msra.mxu0 0.0
      %1832 = vmatprep.subr.mxu0 0.0
      %1833 = vmatpush1.msra.mxu0 0.0
      %1834 = vmatprep.subr.mxu0 0.0
      %1835 = vmatpush1.msra.mxu0 0.0
      %1836 = vmatprep.subr.mxu0 0.0
      %1837 = vmatpush1.msra.mxu0 0.0
      %1838 = vmatprep.subr.mxu0 0.0
      %1839 = vmatpush1.msra.mxu0 0.0
      %1840 = vmatprep.subr.mxu0 0.0
      %1841 = vmatpush1.msra.mxu0 0.0
      %1842 = vmatprep.subr.mxu0 0.0
      %1843 = vmatpush1.msra.mxu0 0.0
      %1844 = vmatprep.subr.mxu0 0.0
      %1845 = vmatpush1.msra.mxu0 0.0
      %1846 = vmatprep.subr.mxu0 0.0
      %1847 = vmatpush1.msra.mxu0 0.0
      %1848 = vmatprep.subr.mxu0 0.0
      %1849 = vmatpush1.msra.mxu0 0.0
      %1850 = vmatprep.subr.mxu0 0.0
      %1851 = vmatpush1.msra.mxu0 0.0
      %1852 = vmatprep.mubr.f32.mxu0 0.0
      %1853 = vmatmul.mubr.f32.gmra.mrb[0].mxu0 %v1786
      %v1854 = vpop.f32.mrb[0].mxu0
      %v1855 = vadd.f32 %v1762, %v1854
      %v1856 = vpop.f32.mrb[0].mxu0
      %1857 = vdwg.mxu0
      %s1858 = scalar_lea.vmem [#allocation3], 2
      %v1859 = vld [vmem:[%s1858] ss:$2 sm:$0x3]
      %s1860 = scalar_lea.vmem [#allocation3], 10
      %v1861 = vld [vmem:[%s1860] ss:$2 sm:$0x3]
      %s1862 = scalar_lea.vmem [#allocation3], 26
      %v1863 = vld [vmem:[%s1862] ss:$2 sm:$0x3]
      %s1864 = scalar_lea.vmem [#allocation3], 34
      %v1865 = vld [vmem:[%s1864] ss:$2 sm:$0x3]
      %s1866 = scalar_lea.vmem %s3, 128
      %v1867 = vld [vmem:[%s1866] sm:$0xff]
      %v1868 = vld [vmem:[%s1866 + $0x8] sm:$0xff]
      %v1869 = vld [vmem:[%s1866 + $0x10] sm:$0xff]
      %v1870 = vld [vmem:[%s1866 + $0x18] sm:$0xff]
      %v1871 = vld [vmem:[%s1866 + $0x20] sm:$0xff]
      %v1872 = vld [vmem:[%s1866 + $0x28] sm:$0xff]
      %v1873 = vld [vmem:[%s1866 + $0x30] sm:$0xff]
      %v1874 = vld [vmem:[%s1866 + $0x38] sm:$0xff]
      %v1879 = vcombine.low %v1859, %v1861
      %v1880 = vcombine.low %v1863, %v1865
      %v1882 = vunpack.c.l.s4 1983009808
      %v1883 = vunpack.c.0.s8 %v1882
      %v1884 = vlaneseq
      %v1885 = vshrl.u32 %v1884, 7
      %v1886 = vsub.s32 %v1883, %v1885
      %v1887 = vrot.slane %v1879, %v1886
      %v1889 = vunpack.c.l.s4 1983009808
      %v1890 = vunpack.c.0.s8 %v1889
      %v1891 = vlaneseq
      %v1892 = vshrl.u32 %v1891, 7
      %v1893 = vsub.s32 %v1890, %v1892
      %v1894 = vrot.slane %v1880, %v1893
      %v1895 = vcombine.low %v1887, %v1894
      %v1896 = vsel %vm1692, %v1895, 0
      %1898 = vmatprep.subr.mxu0 0.0
      %1899 = vmatpush1.msra.mxu0 %v1867
      %1900 = vmatprep.subr.mxu0 0.0
      %1901 = vmatpush1.msra.mxu0 %v1868
      %1902 = vmatprep.subr.mxu0 0.0
      %1903 = vmatpush1.msra.mxu0 %v1869
      %1904 = vmatprep.subr.mxu0 0.0
      %1905 = vmatpush1.msra.mxu0 %v1870
      %1906 = vmatprep.subr.mxu0 0.0
      %1907 = vmatpush1.msra.mxu0 %v1871
      %1908 = vmatprep.subr.mxu0 0.0
      %1909 = vmatpush1.msra.mxu0 %v1872
      %1910 = vmatprep.subr.mxu0 0.0
      %1911 = vmatpush1.msra.mxu0 %v1873
      %1912 = vmatprep.subr.mxu0 0.0
      %1913 = vmatpush1.msra.mxu0 %v1874
      %1914 = vmatprep.subr.mxu0 0.0
      %1915 = vmatpush1.msra.mxu0 0.0
      %1916 = vmatprep.subr.mxu0 0.0
      %1917 = vmatpush1.msra.mxu0 0.0
      %1918 = vmatprep.subr.mxu0 0.0
      %1919 = vmatpush1.msra.mxu0 0.0
      %1920 = vmatprep.subr.mxu0 0.0
      %1921 = vmatpush1.msra.mxu0 0.0
      %1922 = vmatprep.subr.mxu0 0.0
      %1923 = vmatpush1.msra.mxu0 0.0
      %1924 = vmatprep.subr.mxu0 0.0
      %1925 = vmatpush1.msra.mxu0 0.0
      %1926 = vmatprep.subr.mxu0 0.0
      %1927 = vmatpush1.msra.mxu0 0.0
      %1928 = vmatprep.subr.mxu0 0.0
      %1929 = vmatpush1.msra.mxu0 0.0
      %1930 = vmatprep.subr.mxu0 0.0
      %1931 = vmatpush1.msra.mxu0 0.0
      %1932 = vmatprep.subr.mxu0 0.0
      %1933 = vmatpush1.msra.mxu0 0.0
      %1934 = vmatprep.subr.mxu0 0.0
      %1935 = vmatpush1.msra.mxu0 0.0
      %1936 = vmatprep.subr.mxu0 0.0
      %1937 = vmatpush1.msra.mxu0 0.0
      %1938 = vmatprep.subr.mxu0 0.0
      %1939 = vmatpush1.msra.mxu0 0.0
      %1940 = vmatprep.subr.mxu0 0.0
      %1941 = vmatpush1.msra.mxu0 0.0
      %1942 = vmatprep.subr.mxu0 0.0
      %1943 = vmatpush1.msra.mxu0 0.0
      %1944 = vmatprep.subr.mxu0 0.0
      %1945 = vmatpush1.msra.mxu0 0.0
      %1946 = vmatprep.subr.mxu0 0.0
      %1947 = vmatpush1.msra.mxu0 0.0
      %1948 = vmatprep.subr.mxu0 0.0
      %1949 = vmatpush1.msra.mxu0 0.0
      %1950 = vmatprep.subr.mxu0 0.0
      %1951 = vmatpush1.msra.mxu0 0.0
      %1952 = vmatprep.subr.mxu0 0.0
      %1953 = vmatpush1.msra.mxu0 0.0
      %1954 = vmatprep.subr.mxu0 0.0
      %1955 = vmatpush1.msra.mxu0 0.0
      %1956 = vmatprep.subr.mxu0 0.0
      %1957 = vmatpush1.msra.mxu0 0.0
      %1958 = vmatprep.subr.mxu0 0.0
      %1959 = vmatpush1.msra.mxu0 0.0
      %1960 = vmatprep.subr.mxu0 0.0
      %1961 = vmatpush1.msra.mxu0 0.0
      %1962 = vmatprep.mubr.f32.mxu0 0.0
      %1963 = vmatmul.mubr.f32.gmra.mrb[0].mxu0 %v1896
      %v1964 = vpop.f32.mrb[0].mxu0
      %v1965 = vadd.f32 0.0, %v1964
      %v1966 = vpop.f32.mrb[0].mxu0
      %1967 = vdwg.mxu0
      %v1968 = vadd.f32 %v1855, %v1965
      %v1969 = vld [vmem:[%s1626] ss:$2 sm:$0x3]
      %s1970 = scalar_lea.vmem %s1626, 8 [#allocation3]
      %v1971 = vld [vmem:[%s1970] ss:$2 sm:$0x3]
      %s1972 = scalar_lea.vmem %s1626, 24 [#allocation3]
      %v1973 = vld [vmem:[%s1972] ss:$2 sm:$0x3]
      %s1974 = scalar_lea.vmem %s1626, 32 [#allocation3]
      %v1975 = vld [vmem:[%s1974] ss:$2 sm:$0x3]
      %s1976 = scalar_lea.vmem %s3, 192
      %v1977 = vld [vmem:[%s1976] sm:$0xff]
      %v1978 = vld [vmem:[%s1976 + $0x8] sm:$0xff]
      %v1979 = vld [vmem:[%s1976 + $0x10] sm:$0xff]
      %v1980 = vld [vmem:[%s1976 + $0x18] sm:$0xff]
      %v1981 = vld [vmem:[%s1976 + $0x20] sm:$0xff]
      %v1982 = vld [vmem:[%s1976 + $0x28] sm:$0xff]
      %v1983 = vld [vmem:[%s1976 + $0x30] sm:$0xff]
      %v1984 = vld [vmem:[%s1976 + $0x38] sm:$0xff]
      %v1989 = vcombine.low %v1969, %v1971
      %v1990 = vcombine.low %v1973, %v1975
      %v1992 = vunpack.c.l.s4 1983009808
      %v1993 = vunpack.c.0.s8 %v1992
      %v1994 = vlaneseq
      %v1995 = vshrl.u32 %v1994, 7
      %v1996 = vsub.s32 %v1993, %v1995
      %v1997 = vrot.slane %v1989, %v1996
      %v1999 = vunpack.c.l.s4 1983009808
      %v2000 = vunpack.c.0.s8 %v1999
      %v2001 = vlaneseq
      %v2002 = vshrl.u32 %v2001, 7
      %v2003 = vsub.s32 %v2000, %v2002
      %v2004 = vrot.slane %v1990, %v2003
      %v2005 = vcombine.low %v1997, %v2004
      %v2006 = vsel %vm1692, %v2005, 0
      %2008 = vmatprep.subr.mxu0 0.0
      %2009 = vmatpush1.msra.mxu0 %v1977
      %2010 = vmatprep.subr.mxu0 0.0
      %2011 = vmatpush1.msra.mxu0 %v1978
      %2012 = vmatprep.subr.mxu0 0.0
      %2013 = vmatpush1.msra.mxu0 %v1979
      %2014 = vmatprep.subr.mxu0 0.0
      %2015 = vmatpush1.msra.mxu0 %v1980
      %2016 = vmatprep.subr.mxu0 0.0
      %2017 = vmatpush1.msra.mxu0 %v1981
      %2018 = vmatprep.subr.mxu0 0.0
      %2019 = vmatpush1.msra.mxu0 %v1982
      %2020 = vmatprep.subr.mxu0 0.0
      %2021 = vmatpush1.msra.mxu0 %v1983
      %2022 = vmatprep.subr.mxu0 0.0
      %2023 = vmatpush1.msra.mxu0 %v1984
      %2024 = vmatprep.subr.mxu0 0.0
      %2025 = vmatpush1.msra.mxu0 0.0
      %2026 = vmatprep.subr.mxu0 0.0
      %2027 = vmatpush1.msra.mxu0 0.0
      %2028 = vmatprep.subr.mxu0 0.0
      %2029 = vmatpush1.msra.mxu0 0.0
      %2030 = vmatprep.subr.mxu0 0.0
      %2031 = vmatpush1.msra.mxu0 0.0
      %2032 = vmatprep.subr.mxu0 0.0
      %2033 = vmatpush1.msra.mxu0 0.0
      %2034 = vmatprep.subr.mxu0 0.0
      %2035 = vmatpush1.msra.mxu0 0.0
      %2036 = vmatprep.subr.mxu0 0.0
      %2037 = vmatpush1.msra.mxu0 0.0
      %2038 = vmatprep.subr.mxu0 0.0
      %2039 = vmatpush1.msra.mxu0 0.0
      %2040 = vmatprep.subr.mxu0 0.0
      %2041 = vmatpush1.msra.mxu0 0.0
      %2042 = vmatprep.subr.mxu0 0.0
      %2043 = vmatpush1.msra.mxu0 0.0
      %2044 = vmatprep.subr.mxu0 0.0
      %2045 = vmatpush1.msra.mxu0 0.0
      %2046 = vmatprep.subr.mxu0 0.0
      %2047 = vmatpush1.msra.mxu0 0.0
      %2048 = vmatprep.subr.mxu0 0.0
      %2049 = vmatpush1.msra.mxu0 0.0
      %2050 = vmatprep.subr.mxu0 0.0
      %2051 = vmatpush1.msra.mxu0 0.0
      %2052 = vmatprep.subr.mxu0 0.0
      %2053 = vmatpush1.msra.mxu0 0.0
      %2054 = vmatprep.subr.mxu0 0.0
      %2055 = vmatpush1.msra.mxu0 0.0
      %2056 = vmatprep.subr.mxu0 0.0
      %2057 = vmatpush1.msra.mxu0 0.0
      %2058 = vmatprep.subr.mxu0 0.0
      %2059 = vmatpush1.msra.mxu0 0.0
      %2060 = vmatprep.subr.mxu0 0.0
      %2061 = vmatpush1.msra.mxu0 0.0
      %2062 = vmatprep.subr.mxu0 0.0
      %2063 = vmatpush1.msra.mxu0 0.0
      %2064 = vmatprep.subr.mxu0 0.0
      %2065 = vmatpush1.msra.mxu0 0.0
      %2066 = vmatprep.subr.mxu0 0.0
      %2067 = vmatpush1.msra.mxu0 0.0
      %2068 = vmatprep.subr.mxu0 0.0
      %2069 = vmatpush1.msra.mxu0 0.0
      %2070 = vmatprep.subr.mxu0 0.0
      %2071 = vmatpush1.msra.mxu0 0.0
      %2072 = vmatprep.mubr.f32.mxu0 0.0
      %2073 = vmatmul.mubr.f32.gmra.mrb[0].mxu0 %v2006
      %v2074 = vpop.f32.mrb[0].mxu0
      %v2075 = vadd.f32 0.0, %v2074
      %v2076 = vpop.f32.mrb[0].mxu0
      %2077 = vdwg.mxu0
      %v2078 = vadd.f32 %v1968, %v2075
      %s2079 = scalar_lea.vmem %s1626, 1 [#allocation3]
      %v2080 = vld [vmem:[%s2079] ss:$2 sm:$0x3]
      %s2081 = scalar_lea.vmem %s1626, 9 [#allocation3]
      %v2082 = vld [vmem:[%s2081] ss:$2 sm:$0x3]
      %s2083 = scalar_lea.vmem %s1626, 25 [#allocation3]
      %v2084 = vld [vmem:[%s2083] ss:$2 sm:$0x3]
      %s2085 = scalar_lea.vmem %s1626, 33 [#allocation3]
      %v2086 = vld [vmem:[%s2085] ss:$2 sm:$0x3]
      %s2087 = scalar_lea.vmem %s3, 256
      %v2088 = vld [vmem:[%s2087] sm:$0xff]
      %v2089 = vld [vmem:[%s2087 + $0x8] sm:$0xff]
      %v2090 = vld [vmem:[%s2087 + $0x10] sm:$0xff]
      %v2091 = vld [vmem:[%s2087 + $0x18] sm:$0xff]
      %v2092 = vld [vmem:[%s2087 + $0x20] sm:$0xff]
      %v2093 = vld [vmem:[%s2087 + $0x28] sm:$0xff]
      %v2094 = vld [vmem:[%s2087 + $0x30] sm:$0xff]
      %v2095 = vld [vmem:[%s2087 + $0x38] sm:$0xff]
      %v2100 = vcombine.low %v2080, %v2082
      %v2101 = vcombine.low %v2084, %v2086
      %v2103 = vunpack.c.l.s4 1983009808
      %v2104 = vunpack.c.0.s8 %v2103
      %v2105 = vlaneseq
      %v2106 = vshrl.u32 %v2105, 7
      %v2107 = vsub.s32 %v2104, %v2106
      %v2108 = vrot.slane %v2100, %v2107
      %v2110 = vunpack.c.l.s4 1983009808
      %v2111 = vunpack.c.0.s8 %v2110
      %v2112 = vlaneseq
      %v2113 = vshrl.u32 %v2112, 7
      %v2114 = vsub.s32 %v2111, %v2113
      %v2115 = vrot.slane %v2101, %v2114
      %v2116 = vcombine.low %v2108, %v2115
      %v2117 = vsel %vm1692, %v2116, 0
      %2119 = vmatprep.subr.mxu0 0.0
      %2120 = vmatpush1.msra.mxu0 %v2088
      %2121 = vmatprep.subr.mxu0 0.0
      %2122 = vmatpush1.msra.mxu0 %v2089
      %2123 = vmatprep.subr.mxu0 0.0
      %2124 = vmatpush1.msra.mxu0 %v2090
      %2125 = vmatprep.subr.mxu0 0.0
      %2126 = vmatpush1.msra.mxu0 %v2091
      %2127 = vmatprep.subr.mxu0 0.0
      %2128 = vmatpush1.msra.mxu0 %v2092
      %2129 = vmatprep.subr.mxu0 0.0
      %2130 = vmatpush1.msra.mxu0 %v2093
      %2131 = vmatprep.subr.mxu0 0.0
      %2132 = vmatpush1.msra.mxu0 %v2094
      %2133 = vmatprep.subr.mxu0 0.0
      %2134 = vmatpush1.msra.mxu0 %v2095
      %2135 = vmatprep.subr.mxu0 0.0
      %2136 = vmatpush1.msra.mxu0 0.0
      %2137 = vmatprep.subr.mxu0 0.0
      %2138 = vmatpush1.msra.mxu0 0.0
      %2139 = vmatprep.subr.mxu0 0.0
      %2140 = vmatpush1.msra.mxu0 0.0
      %2141 = vmatprep.subr.mxu0 0.0
      %2142 = vmatpush1.msra.mxu0 0.0
      %2143 = vmatprep.subr.mxu0 0.0
      %2144 = vmatpush1.msra.mxu0 0.0
      %2145 = vmatprep.subr.mxu0 0.0
      %2146 = vmatpush1.msra.mxu0 0.0
      %2147 = vmatprep.subr.mxu0 0.0
      %2148 = vmatpush1.msra.mxu0 0.0
      %2149 = vmatprep.subr.mxu0 0.0
      %2150 = vmatpush1.msra.mxu0 0.0
      %2151 = vmatprep.subr.mxu0 0.0
      %2152 = vmatpush1.msra.mxu0 0.0
      %2153 = vmatprep.subr.mxu0 0.0
      %2154 = vmatpush1.msra.mxu0 0.0
      %2155 = vmatprep.subr.mxu0 0.0
      %2156 = vmatpush1.msra.mxu0 0.0
      %2157 = vmatprep.subr.mxu0 0.0
      %2158 = vmatpush1.msra.mxu0 0.0
      %2159 = vmatprep.subr.mxu0 0.0
      %2160 = vmatpush1.msra.mxu0 0.0
      %2161 = vmatprep.subr.mxu0 0.0
      %2162 = vmatpush1.msra.mxu0 0.0
      %2163 = vmatprep.subr.mxu0 0.0
      %2164 = vmatpush1.msra.mxu0 0.0
      %2165 = vmatprep.subr.mxu0 0.0
      %2166 = vmatpush1.msra.mxu0 0.0
      %2167 = vmatprep.subr.mxu0 0.0
      %2168 = vmatpush1.msra.mxu0 0.0
      %2169 = vmatprep.subr.mxu0 0.0
      %2170 = vmatpush1.msra.mxu0 0.0
      %2171 = vmatprep.subr.mxu0 0.0
      %2172 = vmatpush1.msra.mxu0 0.0
      %2173 = vmatprep.subr.mxu0 0.0
      %2174 = vmatpush1.msra.mxu0 0.0
      %2175 = vmatprep.subr.mxu0 0.0
      %2176 = vmatpush1.msra.mxu0 0.0
      %2177 = vmatprep.subr.mxu0 0.0
      %2178 = vmatpush1.msra.mxu0 0.0
      %2179 = vmatprep.subr.mxu0 0.0
      %2180 = vmatpush1.msra.mxu0 0.0
      %2181 = vmatprep.subr.mxu0 0.0
      %2182 = vmatpush1.msra.mxu0 0.0
      %2183 = vmatprep.mubr.f32.mxu0 0.0
      %2184 = vmatmul.mubr.f32.gmra.mrb[0].mxu0 %v2117
      %v2185 = vpop.f32.mrb[0].mxu0
      %v2186 = vadd.f32 0.0, %v2185
      %v2187 = vpop.f32.mrb[0].mxu0
      %2188 = vdwg.mxu0
      %v2189 = vadd.f32 %v2078, %v2186
      %s2190 = scalar_lea.vmem %s1626, 2 [#allocation3]
      %v2191 = vld [vmem:[%s2190] ss:$2 sm:$0x3]
      %s2192 = scalar_lea.vmem %s1626, 10 [#allocation3]
      %v2193 = vld [vmem:[%s2192] ss:$2 sm:$0x3]
      %s2194 = scalar_lea.vmem %s1626, 26 [#allocation3]
      %v2195 = vld [vmem:[%s2194] ss:$2 sm:$0x3]
      %s2196 = scalar_lea.vmem %s1626, 34 [#allocation3]
      %v2197 = vld [vmem:[%s2196] ss:$2 sm:$0x3]
      %s2198 = scalar_lea.vmem %s3, 320
      %v2199 = vld [vmem:[%s2198] sm:$0xff]
      %v2200 = vld [vmem:[%s2198 + $0x8] sm:$0xff]
      %v2201 = vld [vmem:[%s2198 + $0x10] sm:$0xff]
      %v2202 = vld [vmem:[%s2198 + $0x18] sm:$0xff]
      %v2203 = vld [vmem:[%s2198 + $0x20] sm:$0xff]
      %v2204 = vld [vmem:[%s2198 + $0x28] sm:$0xff]
      %v2205 = vld [vmem:[%s2198 + $0x30] sm:$0xff]
      %v2206 = vld [vmem:[%s2198 + $0x38] sm:$0xff]
      %v2211 = vcombine.low %v2191, %v2193
      %v2212 = vcombine.low %v2195, %v2197
      %v2214 = vunpack.c.l.s4 1983009808
      %v2215 = vunpack.c.0.s8 %v2214
      %v2216 = vlaneseq
      %v2217 = vshrl.u32 %v2216, 7
      %v2218 = vsub.s32 %v2215, %v2217
      %v2219 = vrot.slane %v2211, %v2218
      %v2221 = vunpack.c.l.s4 1983009808
      %v2222 = vunpack.c.0.s8 %v2221
      %v2223 = vlaneseq
      %v2224 = vshrl.u32 %v2223, 7
      %v2225 = vsub.s32 %v2222, %v2224
      %v2226 = vrot.slane %v2212, %v2225
      %v2227 = vcombine.low %v2219, %v2226
      %v2228 = vsel %vm1692, %v2227, 0
      %2230 = vmatprep.subr.mxu0 0.0
      %2231 = vmatpush1.msra.mxu0 %v2199
      %2232 = vmatprep.subr.mxu0 0.0
      %2233 = vmatpush1.msra.mxu0 %v2200
      %2234 = vmatprep.subr.mxu0 0.0
      %2235 = vmatpush1.msra.mxu0 %v2201
      %2236 = vmatprep.subr.mxu0 0.0
      %2237 = vmatpush1.msra.mxu0 %v2202
      %2238 = vmatprep.subr.mxu0 0.0
      %2239 = vmatpush1.msra.mxu0 %v2203
      %2240 = vmatprep.subr.mxu0 0.0
      %2241 = vmatpush1.msra.mxu0 %v2204
      %2242 = vmatprep.subr.mxu0 0.0
      %2243 = vmatpush1.msra.mxu0 %v2205
      %2244 = vmatprep.subr.mxu0 0.0
      %2245 = vmatpush1.msra.mxu0 %v2206
      %2246 = vmatprep.subr.mxu0 0.0
      %2247 = vmatpush1.msra.mxu0 0.0
      %2248 = vmatprep.subr.mxu0 0.0
      %2249 = vmatpush1.msra.mxu0 0.0
      %2250 = vmatprep.subr.mxu0 0.0
      %2251 = vmatpush1.msra.mxu0 0.0
      %2252 = vmatprep.subr.mxu0 0.0
      %2253 = vmatpush1.msra.mxu0 0.0
      %2254 = vmatprep.subr.mxu0 0.0
      %2255 = vmatpush1.msra.mxu0 0.0
      %2256 = vmatprep.subr.mxu0 0.0
      %2257 = vmatpush1.msra.mxu0 0.0
      %2258 = vmatprep.subr.mxu0 0.0
      %2259 = vmatpush1.msra.mxu0 0.0
      %2260 = vmatprep.subr.mxu0 0.0
      %2261 = vmatpush1.msra.mxu0 0.0
      %2262 = vmatprep.subr.mxu0 0.0
      %2263 = vmatpush1.msra.mxu0 0.0
      %2264 = vmatprep.subr.mxu0 0.0
      %2265 = vmatpush1.msra.mxu0 0.0
      %2266 = vmatprep.subr.mxu0 0.0
      %2267 = vmatpush1.msra.mxu0 0.0
      %2268 = vmatprep.subr.mxu0 0.0
      %2269 = vmatpush1.msra.mxu0 0.0
      %2270 = vmatprep.subr.mxu0 0.0
      %2271 = vmatpush1.msra.mxu0 0.0
      %2272 = vmatprep.subr.mxu0 0.0
      %2273 = vmatpush1.msra.mxu0 0.0
      %2274 = vmatprep.subr.mxu0 0.0
      %2275 = vmatpush1.msra.mxu0 0.0
      %2276 = vmatprep.subr.mxu0 0.0
      %2277 = vmatpush1.msra.mxu0 0.0
      %2278 = vmatprep.subr.mxu0 0.0
      %2279 = vmatpush1.msra.mxu0 0.0
      %2280 = vmatprep.subr.mxu0 0.0
      %2281 = vmatpush1.msra.mxu0 0.0
      %2282 = vmatprep.subr.mxu0 0.0
      %2283 = vmatpush1.msra.mxu0 0.0
      %2284 = vmatprep.subr.mxu0 0.0
      %2285 = vmatpush1.msra.mxu0 0.0
      %2286 = vmatprep.subr.mxu0 0.0
      %2287 = vmatpush1.msra.mxu0 0.0
      %2288 = vmatprep.subr.mxu0 0.0
      %2289 = vmatpush1.msra.mxu0 0.0
      %2290 = vmatprep.subr.mxu0 0.0
      %2291 = vmatpush1.msra.mxu0 0.0
      %2292 = vmatprep.subr.mxu0 0.0
      %2293 = vmatpush1.msra.mxu0 0.0
      %2294 = vmatprep.mubr.f32.mxu0 0.0
      %2295 = vmatmul.mubr.f32.gmra.mrb[0].mxu0 %v2228
      %v2296 = vpop.f32.mrb[0].mxu0
      %v2297 = vadd.f32 0.0, %v2296
      %v2298 = vpop.f32.mrb[0].mxu0
      %2299 = vdwg.mxu0
      %v2300 = vadd.f32 %v2189, %v2297
      %v2301 = vld [vmem:[%s1630] ss:$2 sm:$0x3]
      %s2302 = scalar_lea.vmem %s1630, 8 [#allocation3]
      %v2303 = vld [vmem:[%s2302] ss:$2 sm:$0x3]
      %s2304 = scalar_lea.vmem %s1630, 24 [#allocation3]
      %v2305 = vld [vmem:[%s2304] ss:$2 sm:$0x3]
      %s2306 = scalar_lea.vmem %s1630, 32 [#allocation3]
      %v2307 = vld [vmem:[%s2306] ss:$2 sm:$0x3]
      %s2308 = scalar_lea.vmem %s3, 384
      %v2309 = vld [vmem:[%s2308] sm:$0xff]
      %v2310 = vld [vmem:[%s2308 + $0x8] sm:$0xff]
      %v2311 = vld [vmem:[%s2308 + $0x10] sm:$0xff]
      %v2312 = vld [vmem:[%s2308 + $0x18] sm:$0xff]
      %v2313 = vld [vmem:[%s2308 + $0x20] sm:$0xff]
      %v2314 = vld [vmem:[%s2308 + $0x28] sm:$0xff]
      %v2315 = vld [vmem:[%s2308 + $0x30] sm:$0xff]
      %v2316 = vld [vmem:[%s2308 + $0x38] sm:$0xff]
      %v2321 = vcombine.low %v2301, %v2303
      %v2322 = vcombine.low %v2305, %v2307
      %v2324 = vunpack.c.l.s4 1983009808
      %v2325 = vunpack.c.0.s8 %v2324
      %v2326 = vlaneseq
      %v2327 = vshrl.u32 %v2326, 7
      %v2328 = vsub.s32 %v2325, %v2327
      %v2329 = vrot.slane %v2321, %v2328
      %v2331 = vunpack.c.l.s4 1983009808
      %v2332 = vunpack.c.0.s8 %v2331
      %v2333 = vlaneseq
      %v2334 = vshrl.u32 %v2333, 7
      %v2335 = vsub.s32 %v2332, %v2334
      %v2336 = vrot.slane %v2322, %v2335
      %v2337 = vcombine.low %v2329, %v2336
      %v2338 = vsel %vm1692, %v2337, 0
      %2340 = vmatprep.subr.mxu0 0.0
      %2341 = vmatpush1.msra.mxu0 %v2309
      %2342 = vmatprep.subr.mxu0 0.0
      %2343 = vmatpush1.msra.mxu0 %v2310
      %2344 = vmatprep.subr.mxu0 0.0
      %2345 = vmatpush1.msra.mxu0 %v2311
      %2346 = vmatprep.subr.mxu0 0.0
      %2347 = vmatpush1.msra.mxu0 %v2312
      %2348 = vmatprep.subr.mxu0 0.0
      %2349 = vmatpush1.msra.mxu0 %v2313
      %2350 = vmatprep.subr.mxu0 0.0
      %2351 = vmatpush1.msra.mxu0 %v2314
      %2352 = vmatprep.subr.mxu0 0.0
      %2353 = vmatpush1.msra.mxu0 %v2315
      %2354 = vmatprep.subr.mxu0 0.0
      %2355 = vmatpush1.msra.mxu0 %v2316
      %2356 = vmatprep.subr.mxu0 0.0
      %2357 = vmatpush1.msra.mxu0 0.0
      %2358 = vmatprep.subr.mxu0 0.0
      %2359 = vmatpush1.msra.mxu0 0.0
      %2360 = vmatprep.subr.mxu0 0.0
      %2361 = vmatpush1.msra.mxu0 0.0
      %2362 = vmatprep.subr.mxu0 0.0
      %2363 = vmatpush1.msra.mxu0 0.0
      %2364 = vmatprep.subr.mxu0 0.0
      %2365 = vmatpush1.msra.mxu0 0.0
      %2366 = vmatprep.subr.mxu0 0.0
      %2367 = vmatpush1.msra.mxu0 0.0
      %2368 = vmatprep.subr.mxu0 0.0
      %2369 = vmatpush1.msra.mxu0 0.0
      %2370 = vmatprep.subr.mxu0 0.0
      %2371 = vmatpush1.msra.mxu0 0.0
      %2372 = vmatprep.subr.mxu0 0.0
      %2373 = vmatpush1.msra.mxu0 0.0
      %2374 = vmatprep.subr.mxu0 0.0
      %2375 = vmatpush1.msra.mxu0 0.0
      %2376 = vmatprep.subr.mxu0 0.0
      %2377 = vmatpush1.msra.mxu0 0.0
      %2378 = vmatprep.subr.mxu0 0.0
      %2379 = vmatpush1.msra.mxu0 0.0
      %2380 = vmatprep.subr.mxu0 0.0
      %2381 = vmatpush1.msra.mxu0 0.0
      %2382 = vmatprep.subr.mxu0 0.0
      %2383 = vmatpush1.msra.mxu0 0.0
      %2384 = vmatprep.subr.mxu0 0.0
      %2385 = vmatpush1.msra.mxu0 0.0
      %2386 = vmatprep.subr.mxu0 0.0
      %2387 = vmatpush1.msra.mxu0 0.0
      %2388 = vmatprep.subr.mxu0 0.0
      %2389 = vmatpush1.msra.mxu0 0.0
      %2390 = vmatprep.subr.mxu0 0.0
      %2391 = vmatpush1.msra.mxu0 0.0
      %2392 = vmatprep.subr.mxu0 0.0
      %2393 = vmatpush1.msra.mxu0 0.0
      %2394 = vmatprep.subr.mxu0 0.0
      %2395 = vmatpush1.msra.mxu0 0.0
      %2396 = vmatprep.subr.mxu0 0.0
      %2397 = vmatpush1.msra.mxu0 0.0
      %2398 = vmatprep.subr.mxu0 0.0
      %2399 = vmatpush1.msra.mxu0 0.0
      %2400 = vmatprep.subr.mxu0 0.0
      %2401 = vmatpush1.msra.mxu0 0.0
      %2402 = vmatprep.subr.mxu0 0.0
      %2403 = vmatpush1.msra.mxu0 0.0
      %2404 = vmatprep.mubr.f32.mxu0 0.0
      %2405 = vmatmul.mubr.f32.gmra.mrb[0].mxu0 %v2338
      %v2406 = vpop.f32.mrb[0].mxu0
      %v2407 = vadd.f32 0.0, %v2406
      %v2408 = vpop.f32.mrb[0].mxu0
      %2409 = vdwg.mxu0
      %v2410 = vadd.f32 %v2300, %v2407
      %s2411 = scalar_lea.vmem %s1630, 1 [#allocation3]
      %v2412 = vld [vmem:[%s2411] ss:$2 sm:$0x3]
      %s2413 = scalar_lea.vmem %s1630, 9 [#allocation3]
      %v2414 = vld [vmem:[%s2413] ss:$2 sm:$0x3]
      %s2415 = scalar_lea.vmem %s1630, 25 [#allocation3]
      %v2416 = vld [vmem:[%s2415] ss:$2 sm:$0x3]
      %s2417 = scalar_lea.vmem %s1630, 33 [#allocation3]
      %v2418 = vld [vmem:[%s2417] ss:$2 sm:$0x3]
      %s2419 = scalar_lea.vmem %s3, 448
      %v2420 = vld [vmem:[%s2419] sm:$0xff]
      %v2421 = vld [vmem:[%s2419 + $0x8] sm:$0xff]
      %v2422 = vld [vmem:[%s2419 + $0x10] sm:$0xff]
      %v2423 = vld [vmem:[%s2419 + $0x18] sm:$0xff]
      %v2424 = vld [vmem:[%s2419 + $0x20] sm:$0xff]
      %v2425 = vld [vmem:[%s2419 + $0x28] sm:$0xff]
      %v2426 = vld [vmem:[%s2419 + $0x30] sm:$0xff]
      %v2427 = vld [vmem:[%s2419 + $0x38] sm:$0xff]
      %v2432 = vcombine.low %v2412, %v2414
      %v2433 = vcombine.low %v2416, %v2418
      %v2435 = vunpack.c.l.s4 1983009808
      %v2436 = vunpack.c.0.s8 %v2435
      %v2437 = vlaneseq
      %v2438 = vshrl.u32 %v2437, 7
      %v2439 = vsub.s32 %v2436, %v2438
      %v2440 = vrot.slane %v2432, %v2439
      %v2442 = vunpack.c.l.s4 1983009808
      %v2443 = vunpack.c.0.s8 %v2442
      %v2444 = vlaneseq
      %v2445 = vshrl.u32 %v2444, 7
      %v2446 = vsub.s32 %v2443, %v2445
      %v2447 = vrot.slane %v2433, %v2446
      %v2448 = vcombine.low %v2440, %v2447
      %v2449 = vsel %vm1692, %v2448, 0
      %2451 = vmatprep.subr.mxu0 0.0
      %2452 = vmatpush1.msra.mxu0 %v2420
      %2453 = vmatprep.subr.mxu0 0.0
      %2454 = vmatpush1.msra.mxu0 %v2421
      %2455 = vmatprep.subr.mxu0 0.0
      %2456 = vmatpush1.msra.mxu0 %v2422
      %2457 = vmatprep.subr.mxu0 0.0
      %2458 = vmatpush1.msra.mxu0 %v2423
      %2459 = vmatprep.subr.mxu0 0.0
      %2460 = vmatpush1.msra.mxu0 %v2424
      %2461 = vmatprep.subr.mxu0 0.0
      %2462 = vmatpush1.msra.mxu0 %v2425
      %2463 = vmatprep.subr.mxu0 0.0
      %2464 = vmatpush1.msra.mxu0 %v2426
      %2465 = vmatprep.subr.mxu0 0.0
      %2466 = vmatpush1.msra.mxu0 %v2427
      %2467 = vmatprep.subr.mxu0 0.0
      %2468 = vmatpush1.msra.mxu0 0.0
      %2469 = vmatprep.subr.mxu0 0.0
      %2470 = vmatpush1.msra.mxu0 0.0
      %2471 = vmatprep.subr.mxu0 0.0
      %2472 = vmatpush1.msra.mxu0 0.0
      %2473 = vmatprep.subr.mxu0 0.0
      %2474 = vmatpush1.msra.mxu0 0.0
      %2475 = vmatprep.subr.mxu0 0.0
      %2476 = vmatpush1.msra.mxu0 0.0
      %2477 = vmatprep.subr.mxu0 0.0
      %2478 = vmatpush1.msra.mxu0 0.0
      %2479 = vmatprep.subr.mxu0 0.0
      %2480 = vmatpush1.msra.mxu0 0.0
      %2481 = vmatprep.subr.mxu0 0.0
      %2482 = vmatpush1.msra.mxu0 0.0
      %2483 = vmatprep.subr.mxu0 0.0
      %2484 = vmatpush1.msra.mxu0 0.0
      %2485 = vmatprep.subr.mxu0 0.0
      %2486 = vmatpush1.msra.mxu0 0.0
      %2487 = vmatprep.subr.mxu0 0.0
      %2488 = vmatpush1.msra.mxu0 0.0
      %2489 = vmatprep.subr.mxu0 0.0
      %2490 = vmatpush1.msra.mxu0 0.0
      %2491 = vmatprep.subr.mxu0 0.0
      %2492 = vmatpush1.msra.mxu0 0.0
      %2493 = vmatprep.subr.mxu0 0.0
      %2494 = vmatpush1.msra.mxu0 0.0
      %2495 = vmatprep.subr.mxu0 0.0
      %2496 = vmatpush1.msra.mxu0 0.0
      %2497 = vmatprep.subr.mxu0 0.0
      %2498 = vmatpush1.msra.mxu0 0.0
      %2499 = vmatprep.subr.mxu0 0.0
      %2500 = vmatpush1.msra.mxu0 0.0
      %2501 = vmatprep.subr.mxu0 0.0
      %2502 = vmatpush1.msra.mxu0 0.0
      %2503 = vmatprep.subr.mxu0 0.0
      %2504 = vmatpush1.msra.mxu0 0.0
      %2505 = vmatprep.subr.mxu0 0.0
      %2506 = vmatpush1.msra.mxu0 0.0
      %2507 = vmatprep.subr.mxu0 0.0
      %2508 = vmatpush1.msra.mxu0 0.0
      %2509 = vmatprep.subr.mxu0 0.0
      %2510 = vmatpush1.msra.mxu0 0.0
      %2511 = vmatprep.subr.mxu0 0.0
      %2512 = vmatpush1.msra.mxu0 0.0
      %2513 = vmatprep.subr.mxu0 0.0
      %2514 = vmatpush1.msra.mxu0 0.0
      %2515 = vmatprep.mubr.f32.mxu0 0.0
      %2516 = vmatmul.mubr.f32.gmra.mrb[0].mxu0 %v2449
      %v2517 = vpop.f32.mrb[0].mxu0
      %v2518 = vadd.f32 0.0, %v2517
      %v2519 = vpop.f32.mrb[0].mxu0
      %2520 = vdwg.mxu0
      %v2521 = vadd.f32 %v2410, %v2518
      %s2522 = scalar_lea.vmem %s1630, 2 [#allocation3]
      %v2523 = vld [vmem:[%s2522] ss:$2 sm:$0x3]
      %s2524 = scalar_lea.vmem %s1630, 10 [#allocation3]
      %v2525 = vld [vmem:[%s2524] ss:$2 sm:$0x3]
      %s2526 = scalar_lea.vmem %s1630, 26 [#allocation3]
      %v2527 = vld [vmem:[%s2526] ss:$2 sm:$0x3]
      %s2528 = scalar_lea.vmem %s1630, 34 [#allocation3]
      %v2529 = vld [vmem:[%s2528] ss:$2 sm:$0x3]
      %s2530 = scalar_lea.vmem %s3, 512
      %v2531 = vld [vmem:[%s2530] sm:$0xff]
      %v2532 = vld [vmem:[%s2530 + $0x8] sm:$0xff]
      %v2533 = vld [vmem:[%s2530 + $0x10] sm:$0xff]
      %v2534 = vld [vmem:[%s2530 + $0x18] sm:$0xff]
      %v2535 = vld [vmem:[%s2530 + $0x20] sm:$0xff]
      %v2536 = vld [vmem:[%s2530 + $0x28] sm:$0xff]
      %v2537 = vld [vmem:[%s2530 + $0x30] sm:$0xff]
      %v2538 = vld [vmem:[%s2530 + $0x38] sm:$0xff]
      %v2543 = vcombine.low %v2523, %v2525
      %v2544 = vcombine.low %v2527, %v2529
      %v2546 = vunpack.c.l.s4 1983009808
      %v2547 = vunpack.c.0.s8 %v2546
      %v2548 = vlaneseq
      %v2549 = vshrl.u32 %v2548, 7
      %v2550 = vsub.s32 %v2547, %v2549
      %v2551 = vrot.slane %v2543, %v2550
      %v2553 = vunpack.c.l.s4 1983009808
      %v2554 = vunpack.c.0.s8 %v2553
      %v2555 = vlaneseq
      %v2556 = vshrl.u32 %v2555, 7
      %v2557 = vsub.s32 %v2554, %v2556
      %v2558 = vrot.slane %v2544, %v2557
      %v2559 = vcombine.low %v2551, %v2558
      %v2560 = vsel %vm1692, %v2559, 0
      %2562 = vmatprep.subr.mxu0 0.0
      %2563 = vmatpush1.msra.mxu0 %v2531
      %2564 = vmatprep.subr.mxu0 0.0
      %2565 = vmatpush1.msra.mxu0 %v2532
      %2566 = vmatprep.subr.mxu0 0.0
      %2567 = vmatpush1.msra.mxu0 %v2533
      %2568 = vmatprep.subr.mxu0 0.0
      %2569 = vmatpush1.msra.mxu0 %v2534
      %2570 = vmatprep.subr.mxu0 0.0
      %2571 = vmatpush1.msra.mxu0 %v2535
      %2572 = vmatprep.subr.mxu0 0.0
      %2573 = vmatpush1.msra.mxu0 %v2536
      %2574 = vmatprep.subr.mxu0 0.0
      %2575 = vmatpush1.msra.mxu0 %v2537
      %2576 = vmatprep.subr.mxu0 0.0
      %2577 = vmatpush1.msra.mxu0 %v2538
      %2578 = vmatprep.subr.mxu0 0.0
      %2579 = vmatpush1.msra.mxu0 0.0
      %2580 = vmatprep.subr.mxu0 0.0
      %2581 = vmatpush1.msra.mxu0 0.0
      %2582 = vmatprep.subr.mxu0 0.0
      %2583 = vmatpush1.msra.mxu0 0.0
      %2584 = vmatprep.subr.mxu0 0.0
      %2585 = vmatpush1.msra.mxu0 0.0
      %2586 = vmatprep.subr.mxu0 0.0
      %2587 = vmatpush1.msra.mxu0 0.0
      %2588 = vmatprep.subr.mxu0 0.0
      %2589 = vmatpush1.msra.mxu0 0.0
      %2590 = vmatprep.subr.mxu0 0.0
      %2591 = vmatpush1.msra.mxu0 0.0
      %2592 = vmatprep.subr.mxu0 0.0
      %2593 = vmatpush1.msra.mxu0 0.0
      %2594 = vmatprep.subr.mxu0 0.0
      %2595 = vmatpush1.msra.mxu0 0.0
      %2596 = vmatprep.subr.mxu0 0.0
      %2597 = vmatpush1.msra.mxu0 0.0
      %2598 = vmatprep.subr.mxu0 0.0
      %2599 = vmatpush1.msra.mxu0 0.0
      %2600 = vmatprep.subr.mxu0 0.0
      %2601 = vmatpush1.msra.mxu0 0.0
      %2602 = vmatprep.subr.mxu0 0.0
      %2603 = vmatpush1.msra.mxu0 0.0
      %2604 = vmatprep.subr.mxu0 0.0
      %2605 = vmatpush1.msra.mxu0 0.0
      %2606 = vmatprep.subr.mxu0 0.0
      %2607 = vmatpush1.msra.mxu0 0.0
      %2608 = vmatprep.subr.mxu0 0.0
      %2609 = vmatpush1.msra.mxu0 0.0
      %2610 = vmatprep.subr.mxu0 0.0
      %2611 = vmatpush1.msra.mxu0 0.0
      %2612 = vmatprep.subr.mxu0 0.0
      %2613 = vmatpush1.msra.mxu0 0.0
      %2614 = vmatprep.subr.mxu0 0.0
      %2615 = vmatpush1.msra.mxu0 0.0
      %2616 = vmatprep.subr.mxu0 0.0
      %2617 = vmatpush1.msra.mxu0 0.0
      %2618 = vmatprep.subr.mxu0 0.0
      %2619 = vmatpush1.msra.mxu0 0.0
      %2620 = vmatprep.subr.mxu0 0.0
      %2621 = vmatpush1.msra.mxu0 0.0
      %2622 = vmatprep.subr.mxu0 0.0
      %2623 = vmatpush1.msra.mxu0 0.0
      %2624 = vmatprep.subr.mxu0 0.0
      %2625 = vmatpush1.msra.mxu0 0.0
      %2626 = vmatprep.mubr.f32.mxu0 0.0
      %2627 = vmatmul.mubr.f32.gmra.mrb[0].mxu0 %v2560
      %v2628 = vpop.f32.mrb[0].mxu0
      %v2629 = vadd.f32 0.0, %v2628
      %v2630 = vpop.f32.mrb[0].mxu0
      %2631 = vdwg.mxu0
      %v2632 = vadd.f32 %v2521, %v2629
      %v2633 = vld [vmem:[%s4] sm:$0x1]
      %v2635 = vlaneseq
      %v2636 = vshrl.u32 %v2635, 7
      %v2637 = vsub.s32 0, %v2636
      %v2638 = vrot.slane %v2633, %v2637
      %v2640 = vadd.f32 %v2632, %v2638
      %v2641 = vmax.f32 %v2640, 0.0
      %v2642 = vld [vmem:[%s5] sm:$0xff]
      %v2643 = vld [vmem:[%s5 + $0x8] sm:$0xff]
      %v2644 = vld [vmem:[%s5 + $0x10] sm:$0xff]
      %v2645 = vld [vmem:[%s5 + $0x18] sm:$0xff]
      %v2646 = vld [vmem:[%s6] sm:$0x1]
      %v2648 = vlaneseq
      %v2649 = vshrl.u32 %v2648, 7
      %v2650 = vsub.s32 0, %v2649
      %v2651 = vrot.slane %v2646, %v2650
      %vm2653 = vcmask 261120
      %v2655 = vsel %vm2653, %v2641, 0
      %2657 = vmatprep.subr.mxu0 0.0
      %2658 = vmatpush1.msra.mxu0 %v2642
      %2659 = vmatprep.subr.mxu0 0.0
      %2660 = vmatpush1.msra.mxu0 %v2643
      %2661 = vmatprep.subr.mxu0 0.0
      %2662 = vmatpush1.msra.mxu0 %v2644
      %2663 = vmatprep.subr.mxu0 0.0
      %2664 = vmatpush1.msra.mxu0 %v2645
      %2665 = vmatprep.subr.mxu0 0.0
      %2666 = vmatpush1.msra.mxu0 0.0
      %2667 = vmatprep.subr.mxu0 0.0
      %2668 = vmatpush1.msra.mxu0 0.0
      %2669 = vmatprep.subr.mxu0 0.0
      %2670 = vmatpush1.msra.mxu0 0.0
      %2671 = vmatprep.subr.mxu0 0.0
      %2672 = vmatpush1.msra.mxu0 0.0
      %2673 = vmatprep.subr.mxu0 0.0
      %2674 = vmatpush1.msra.mxu0 0.0
      %2675 = vmatprep.subr.mxu0 0.0
      %2676 = vmatpush1.msra.mxu0 0.0
      %2677 = vmatprep.subr.mxu0 0.0
      %2678 = vmatpush1.msra.mxu0 0.0
      %2679 = vmatprep.subr.mxu0 0.0
      %2680 = vmatpush1.msra.mxu0 0.0
      %2681 = vmatprep.subr.mxu0 0.0
      %2682 = vmatpush1.msra.mxu0 0.0
      %2683 = vmatprep.subr.mxu0 0.0
      %2684 = vmatpush1.msra.mxu0 0.0
      %2685 = vmatprep.subr.mxu0 0.0
      %2686 = vmatpush1.msra.mxu0 0.0
      %2687 = vmatprep.subr.mxu0 0.0
      %2688 = vmatpush1.msra.mxu0 0.0
      %2689 = vmatprep.subr.mxu0 0.0
      %2690 = vmatpush1.msra.mxu0 0.0
      %2691 = vmatprep.subr.mxu0 0.0
      %2692 = vmatpush1.msra.mxu0 0.0
      %2693 = vmatprep.subr.mxu0 0.0
      %2694 = vmatpush1.msra.mxu0 0.0
      %2695 = vmatprep.subr.mxu0 0.0
      %2696 = vmatpush1.msra.mxu0 0.0
      %2697 = vmatprep.subr.mxu0 0.0
      %2698 = vmatpush1.msra.mxu0 0.0
      %2699 = vmatprep.subr.mxu0 0.0
      %2700 = vmatpush1.msra.mxu0 0.0
      %2701 = vmatprep.subr.mxu0 0.0
      %2702 = vmatpush1.msra.mxu0 0.0
      %2703 = vmatprep.subr.mxu0 0.0
      %2704 = vmatpush1.msra.mxu0 0.0
      %2705 = vmatprep.subr.mxu0 0.0
      %2706 = vmatpush1.msra.mxu0 0.0
      %2707 = vmatprep.subr.mxu0 0.0
      %2708 = vmatpush1.msra.mxu0 0.0
      %2709 = vmatprep.subr.mxu0 0.0
      %2710 = vmatpush1.msra.mxu0 0.0
      %2711 = vmatprep.subr.mxu0 0.0
      %2712 = vmatpush1.msra.mxu0 0.0
      %2713 = vmatprep.subr.mxu0 0.0
      %2714 = vmatpush1.msra.mxu0 0.0
      %2715 = vmatprep.subr.mxu0 0.0
      %2716 = vmatpush1.msra.mxu0 0.0
      %2717 = vmatprep.subr.mxu0 0.0
      %2718 = vmatpush1.msra.mxu0 0.0
      %2719 = vmatprep.subr.mxu0 0.0
      %2720 = vmatpush1.msra.mxu0 0.0
      %2721 = vmatprep.mubr.f32.mxu0 0.0
      %2722 = vmatmul.mubr.f32.gmra.mrb[0].mxu0 %v2655
      %v2723 = vpop.f32.mrb[0].mxu0
      %v2724 = vadd.f32 %v2651, %v2723
      %v2725 = vpop.f32.mrb[0].mxu0
      %2726 = vdwg.mxu0
      %v2727 = vmax.f32 %v2724, 0.0
      %vm2728 = vcmask 130048
      %2729 = vst.msk [vmem:[%s281] sm:$0xff] %vm2728, %v2727
      %p2730 = scmp.lt.s32.totalorder %s18, 1
      %s2731 = scalar_select %p2730, %s18, 1
      %s2732 = smul.addr %s2731, 8
      %s2733 = scalar_lea.vmem %s7, %s2732
      // Predicated region
      $region49: #{_lambda_.1} parent=47 // pred_check
        %p2734 = pneg %p188
      $region50: #{_lambda_.1} parent=47 // pred_check_branch
        %2736 = sbr.rel (%p2734) target = $region52
      $region51: #{_lambda_.1} parent=47 // pred_region
        _
      $region52: #{_lambda_.1} parent=47 // pred_fallthru
        _
    $region48: #{_lambda_.1} parent=5 // pred_fallthru
      _
    %p2737 = scmp.le.s32.totalorder 2, %s13
    // Predicated region
    $region53: #{_lambda_.1} parent=5 // pred_check
      %p2738 = pneg %p2737
    $region54: #{_lambda_.1} parent=5 // pred_check_branch
      %2740 = sbr.rel (%p2738) target = $region56
    $region55: #{_lambda_.1} parent=5 // pred_region
      %s2741 = ssub.s32 %s13, 2
      // Predicated region
      $region57: #{_lambda_.1} parent=55 // pred_check
        %p2742 = pneg %p194
      $region58: #{_lambda_.1} parent=55 // pred_check_branch
        %2744 = sbr.rel (%p2742) target = $region60
      $region59: #{_lambda_.1} parent=55 // pred_region
        %p2745 = scmp.lt.s32.totalorder %s19, 1
        %s2746 = scalar_select %p2745, %s19, 1
        %s2747 = smul.addr %s2746, 8
        %s2748 = scalar_lea.vmem %s7, %s2747
      $region60: #{_lambda_.1} parent=55 // pred_fallthru
        _
    $region56: #{_lambda_.1} parent=5 // pred_fallthru
      _
  $region6: #{_lambda_.1} parent=0 // loop_footer
    %s17 = sadd.s32 1, %s13
  $region7: #{_lambda_.1} parent=0 // loop_footer_branch
    %12 = sbr.rel target = $region3
  $region8: #{_lambda_.1} parent=0 // loop_exit
    _

</llo_original>
